<compile_context>
chip_gen: v6e
topology: v6e:2x2x1
jax: 0.10.0
libtpu: 0.0.40
codegen_flags: <defaults>
</compile_context>

<pallas_src>
import functools

import jax
import jax.numpy as jnp
import numpy as np
from jax.experimental import pallas as pl
from jax.experimental.pallas import tpu as pltpu

EPS = 1e-5                      # PyTorch LayerNorm default eps
LANES = 128                     # lane width of the packed parameter slab
OUT_PAD = 128                   # lane-dense output slab width
PLACEMENT_COLS = slice(0, 4)
ROUTING_COLS = slice(4, 8)
TIMING_COLS = slice(8, 11)


def _ceil8(n):
    return ((n + 7) // 8) * 8


def _layernorm(x, g, b):
    mu = jnp.mean(x, axis=-1, keepdims=True)
    var = jnp.mean(jnp.square(x - mu), axis=-1, keepdims=True)
    return (x - mu) * jax.lax.rsqrt(var + EPS) * g + b


# ----------------------------- fused Pallas kernel ------------------------------

def fused_layout_kernel(meta, num_heads, num_layers, hidden, x_ref, p_ref, o_ref):
    """Whole LayoutGenerator forward for one sequence (S rows), fully in VMEM.

    meta is a static tuple of (row_offset, rows, cols) describing where each
    parameter lives inside the single packed slab `p_ref` (consumption order).
    """
    H = hidden
    dk = H // num_heads
    pos = [0]

    def nxt():
        off, r, c = meta[pos[0]]
        pos[0] += 1
        return p_ref[off:off + r, 0:c]          # static slice of the one slab

    x = x_ref[...]                              # (S, input_size)

    # --- feature encoder: Linear -> LayerNorm -> ReLU (Dropout = identity) ---
    w, b, g, be = nxt(), nxt(), nxt(), nxt()
    h = jnp.dot(x, w, preferred_element_type=jnp.float32) + b
    h = jnp.maximum(_layernorm(h, g, be), 0.0)                      # (S, H)

    # --- transformer encoder layers (post-LN, ReLU FFN, dropout = identity) ---
    for _ in range(num_layers):
        w_qkv, b_qkv = nxt(), nxt()             # (H, 3H), Q block pre-scaled
        w_o, b_o = nxt(), nxt()                 # (H, H), (1, H)
        w1, b1, w2, b2 = nxt(), nxt(), nxt(), nxt()
        g1, be1, g2, be2 = nxt(), nxt(), nxt(), nxt()

        # One fused, lane-dense QKV projection (review item 2).
        qkv = jnp.dot(h, w_qkv, preferred_element_type=jnp.float32) + b_qkv   # (S, 3H)

        ctx_parts = []
        for hh in range(num_heads):             # heads are inherently independent
            qh = qkv[:, hh * dk:(hh + 1) * dk]                      # (S, dk)
            kh = qkv[:, H + hh * dk:H + (hh + 1) * dk]
            vh = qkv[:, 2 * H + hh * dk:2 * H + (hh + 1) * dk]
            s = jnp.dot(qh, kh.T, preferred_element_type=jnp.float32)   # (S, S), pre-scaled
            s = s - jnp.max(s, axis=-1, keepdims=True)              # stable softmax
            p = jnp.exp(s)
            p = p * pl.reciprocal(jnp.sum(p, axis=-1, keepdims=True), approx=True)
            ctx_parts.append(jnp.dot(p, vh, preferred_element_type=jnp.float32))
        ctx = jnp.concatenate(ctx_parts, axis=-1)                   # (S, H)
        # Head-sum inside the MXU via the original (H, H) Wo (review item 3).
        attn = jnp.dot(ctx, w_o, preferred_element_type=jnp.float32) + b_o

        h1 = _layernorm(h + attn, g1, be1)
        ff = jnp.maximum(jnp.dot(h1, w1, preferred_element_type=jnp.float32) + b1, 0.0)
        ff = jnp.dot(ff, w2, preferred_element_type=jnp.float32) + b2
        h = _layernorm(h1 + ff, g2, be2)

    # --- output heads: placement / routing / timing, fused (review items 4/5) ---
    w_prt1, b_prt1 = nxt(), nxt()               # (H, 4H) = [pl1 | rt1]
    g_pl1, be_pl1, g_rt1, be_rt1 = nxt(), nxt(), nxt(), nxt()
    w_tm1, b_tm1, g_tm1, be_tm1 = nxt(), nxt(), nxt(), nxt()
    w_prt2, b_prt2 = nxt(), nxt()               # (4H, 2H) block-diag [pl2 ; rt2]
    g_pl2, be_pl2, g_rt2, be_rt2 = nxt(), nxt(), nxt(), nxt()
    w_fin, b_fin = nxt(), nxt()                 # (3H, OUT_PAD), (1, OUT_PAD)

    # Stage 1: placement & routing first Linears fused into one (H,128) matmul,
    # LayerNorm applied per 64-lane segment.
    y1 = jnp.dot(h, w_prt1, preferred_element_type=jnp.float32) + b_prt1      # (S, 4H)
    pl_h = jnp.maximum(_layernorm(y1[:, :2 * H], g_pl1, be_pl1), 0.0)         # (S, 2H)
    rt_h = jnp.maximum(_layernorm(y1[:, 2 * H:], g_rt1, be_rt1), 0.0)         # (S, 2H)

    y_tm = jnp.dot(h, w_tm1, preferred_element_type=jnp.float32) + b_tm1
    tm_h = jnp.maximum(_layernorm(y_tm, g_tm1, be_tm1), 0.0)                  # (S, H)

    # Stage 2: placement & routing second Linears as one block-diagonal matmul.
    y2 = jnp.dot(jnp.concatenate([pl_h, rt_h], axis=-1), w_prt2,
                 preferred_element_type=jnp.float32) + b_prt2                 # (S, 2H)
    pl_h2 = jnp.maximum(_layernorm(y2[:, :H], g_pl2, be_pl2), 0.0)            # (S, H)
    rt_h2 = jnp.maximum(_layernorm(y2[:, H:], g_rt2, be_rt2), 0.0)            # (S, H)

    # Final three tiny Linears fused into one lane-dense (3H, 128) matmul:
    # cols 0:4 placement, 4:8 routing, 8:11 timing.
    h3 = jnp.concatenate([pl_h2, rt_h2, tm_h], axis=-1)                       # (S, 3H)
    o_ref[...] = jnp.dot(h3, w_fin, preferred_element_type=jnp.float32) + b_fin


# ----------------------------- parameter packing ------------------------------

def _pack_params(entries):
    """Pack parameter arrays (consumption order) into one (P, 128) f32 slab.

    Multi-row matrices are placed first (offsets stay multiples of 8 since all
    row counts are multiples of 8); 1-row vectors follow. Returns (slab, meta)
    where meta[i] = (row_offset, rows, cols) for entries[i].
    """
    norm = []
    for a in entries:
        a = np.asarray(a, np.float32)
        if a.ndim == 1:
            a = a[None, :]
        assert a.ndim == 2 and a.shape[1] <= LANES, a.shape
        norm.append(a)

    mat_rows = sum(a.shape[0] for a in norm if a.shape[0] > 1)
    vec_base = _ceil8(mat_rows)
    num_vecs = sum(1 for a in norm if a.shape[0] == 1)
    P = _ceil8(vec_base + num_vecs)

    slab = np.zeros((P, LANES), np.float32)
    meta = []
    m_off, v_off = 0, vec_base
    for a in norm:
        r, c = a.shape
        if r > 1:
            off, m_off = m_off, m_off + r
        else:
            off, v_off = v_off, v_off + 1
        slab[off:off + r, :c] = a
        meta.append((off, r, c))
    return jnp.asarray(slab), tuple(meta)


def init_params(key, input_size, hidden, num_heads, num_layers):
    """Create random LayoutGenerator parameters and pack them into one slab."""
    H = hidden
    dk = H // num_heads
    scale = 1.0 / float(np.sqrt(dk))

    def nxt_key():
        nonlocal key
        key, sub = jax.random.split(key)
        return sub

    def lin(din, dout):
        w = 0.05 * jax.random.normal(nxt_key(), (din, dout), jnp.float32)
        b = 0.05 * jax.random.normal(nxt_key(), (dout,), jnp.float32)
        return np.asarray(w), np.asarray(b)

    def ln(d):
        return np.ones((d,), np.float32), np.zeros((d,), np.float32)

    entries = []

    def add(*arrs):
        entries.extend(np.asarray(a, np.float32) for a in arrs)

    # feature_encoder: Linear(input, H) + LayerNorm(H) + ReLU (+Dropout=id)
    w, b = lin(input_size, H)
    g, be = ln(H)
    add(w, b, g, be)

    # transformer encoder layers
    for _ in range(num_layers):
        wq, bq = lin(H, H)
        wk, bk = lin(H, H)
        wv, bv = lin(H, H)
        wo, bo = lin(H, H)
        w1, b1 = lin(H, 4 * H)
        w2, b2 = lin(4 * H, H)
        g1, be1 = ln(H)
        g2, be2 = ln(H)
        # Fused QKV weight; 1/sqrt(dk) attention scale folded into the Q block.
        w_qkv = np.concatenate([wq * scale, wk, wv], axis=1)        # (H, 3H)
        b_qkv = np.concatenate([bq * scale, bk, bv], axis=0)        # (3H,)
        add(w_qkv, b_qkv, wo, bo, w1, b1, w2, b2, g1, be1, g2, be2)

    # output branches (placement / routing / timing)
    w_pl1, b_pl1 = lin(H, 2 * H); g_pl1, be_pl1 = ln(2 * H)
    w_pl2, b_pl2 = lin(2 * H, H); g_pl2, be_pl2 = ln(H)
    w_pl3, b_pl3 = lin(H, 4)
    w_rt1, b_rt1 = lin(H, 2 * H); g_rt1, be_rt1 = ln(2 * H)
    w_rt2, b_rt2 = lin(2 * H, H); g_rt2, be_rt2 = ln(H)
    w_rt3, b_rt3 = lin(H, 4)
    w_tm1, b_tm1 = lin(H, H);     g_tm1, be_tm1 = ln(H)
    w_tm2, b_tm2 = lin(H, 3)

    # Stage-1 fusion: [pl1 | rt1] -> (H, 4H) = (32, 128)
    w_prt1 = np.concatenate([w_pl1, w_rt1], axis=1)
    b_prt1 = np.concatenate([b_pl1, b_rt1], axis=0)
    add(w_prt1, b_prt1, g_pl1, be_pl1, g_rt1, be_rt1)
    add(w_tm1, b_tm1, g_tm1, be_tm1)

    # Stage-2 fusion: block-diagonal (4H, 2H) = (128, 64)
    w_prt2 = np.zeros((4 * H, 2 * H), np.float32)
    w_prt2[:2 * H, :H] = w_pl2
    w_prt2[2 * H:, H:] = w_rt2
    b_prt2 = np.concatenate([b_pl2, b_rt2], axis=0)
    add(w_prt2, b_prt2, g_pl2, be_pl2, g_rt2, be_rt2)

    # Final fusion: one (3H, OUT_PAD) weight with disjoint column ranges.
    w_fin = np.zeros((3 * H, OUT_PAD), np.float32)
    w_fin[:H, PLACEMENT_COLS] = w_pl3
    w_fin[H:2 * H, ROUTING_COLS] = w_rt3
    w_fin[2 * H:, TIMING_COLS] = w_tm2
    b_fin = np.zeros((OUT_PAD,), np.float32)
    b_fin[PLACEMENT_COLS] = b_pl3
    b_fin[ROUTING_COLS] = b_rt3
    b_fin[TIMING_COLS] = b_tm2
    add(w_fin, b_fin)

    return _pack_params(entries)


# ----------------------------- forward ------------------------------

def layout_generator_forward(x, slab, meta, *, num_heads, num_layers, hidden):
    B, S, I = x.shape
    rows = x.reshape(B * S, I)
    P = slab.shape[0]

    kernel = functools.partial(fused_layout_kernel, meta, num_heads, num_layers, hidden)
    out = pl.pallas_call(
        kernel,
        out_shape=jax.ShapeDtypeStruct((B * S, OUT_PAD), jnp.float32),
        grid=(B,),
        in_specs=[
            pl.BlockSpec((S, I), lambda b: (b, 0)),          # one sequence per step
            pl.BlockSpec((P, LANES), lambda b: (0, 0)),      # one packed param slab, 1 DMA
        ],
        out_specs=pl.BlockSpec((S, OUT_PAD), lambda b: (b, 0)),
        compiler_params=pltpu.CompilerParams(
            dimension_semantics=("parallel",)),              # v7x: one sequence per TC
    )(rows, slab)

    placement = out[:, PLACEMENT_COLS].reshape(B, S, 4)
    routing = out[:, ROUTING_COLS].reshape(B, S, 4)
    timing = out[:, TIMING_COLS].reshape(B, S, 3)
    return placement, routing, timing


def post_process(placement, routing, timing):
    # Host-side glue identical to the PyTorch module's post-processing.
    placement = np.array(placement)
    placement = np.clip(placement, -1, 1)
    placement[:, :, 2:] = np.abs(placement[:, :, 2:])
    placement_out = placement[0].tolist()

    routing = np.clip(np.array(routing), -1, 1)
    routing_out = routing[0].tolist()

    timing = np.abs(np.array(timing))
    timing_out = {
        'max_delay': float(timing[0, 0, 0]),
        'setup_time': float(timing[0, 0, 1]),
        'hold_time': float(timing[0, 0, 2]),
    }
    return {'placement': placement_out, 'routing': routing_out, 'timing': timing_out}


# ----------------------------- main ------------------------------

if __name__ == "__main__":
    config = {
        'input_size': 32,
        'hidden_size': 32,
        'num_heads': 4,
        'num_layers': 2,
        'dropout': 0.1,   # identity at inference
    }
    B, S = 2, 8

    key = jax.random.PRNGKey(0)
    key, pkey, xkey = jax.random.split(key, 3)
    slab, meta = init_params(pkey, config['input_size'], config['hidden_size'],
                             config['num_heads'], config['num_layers'])
    x = jax.random.normal(xkey, (B, S, config['input_size']), jnp.float32)

    placement, routing, timing = layout_generator_forward(
        x, slab, meta,
        num_heads=config['num_heads'],
        num_layers=config['num_layers'],
        hidden=config['hidden_size'])
    jax.block_until_ready((placement, routing, timing))

    assert np.all(np.isfinite(np.array(placement)))
    assert np.all(np.isfinite(np.array(routing)))
    assert np.all(np.isfinite(np.array(timing)))

    result = post_process(placement, routing, timing)
    assert len(result['placement']) == S and len(result['placement'][0]) == 4
    assert len(result['routing']) == S and len(result['routing'][0]) == 4
    assert set(result['timing']) == {'max_delay', 'setup_time', 'hold_time'}

    print("KERNEL_OK")
</pallas_src>

<mosaic_0001>
module attributes {stable_mosaic.version = 11 : i64} {
  func.func @fused_layout_kernel(%arg0: i32, %arg1: memref<8x32xf32, #tpu.memory_space<vmem>>, %arg2: memref<808x128xf32, #tpu.memory_space<vmem>>, %arg3: memref<8x128xf32, #tpu.memory_space<vmem>>) attributes {dimension_semantics = [#tpu.dimension_semantics<parallel>], iteration_bounds = array<i64: 2>, scalar_prefetch = 0 : i64, scratch_operands = 0 : i64, tpu.core_type = #tpu.core_type<tc>, window_params = [{transform_indices = @transform_0, window_bounds = array<i64: 8, 32>}, {pipeline_mode = #tpu.pipeline_mode<synchronous>, transform_indices = @transform_1, window_bounds = array<i64: 808, 128>}, {transform_indices = @transform_2, window_bounds = array<i64: 8, 128>}]} {
    %c0 = arith.constant 0 : index
    %c0_0 = arith.constant 0 : index
    %0 = vector.load %arg1[%c0, %c0_0] : memref<8x32xf32, #tpu.memory_space<vmem>>, vector<8x32xf32>
    %c0_1 = arith.constant 0 : index
    %c0_2 = arith.constant 0 : index
    %1 = vector.load %arg2[%c0_1, %c0_2] : memref<808x128xf32, #tpu.memory_space<vmem>>, vector<32x32xf32>
    %c768 = arith.constant 768 : index
    %c0_3 = arith.constant 0 : index
    %2 = vector.load %arg2[%c768, %c0_3] : memref<808x128xf32, #tpu.memory_space<vmem>>, vector<1x32xf32>
    %c769 = arith.constant 769 : index
    %c0_4 = arith.constant 0 : index
    %3 = vector.load %arg2[%c769, %c0_4] : memref<808x128xf32, #tpu.memory_space<vmem>>, vector<1x32xf32>
    %c770 = arith.constant 770 : index
    %c0_5 = arith.constant 0 : index
    %4 = vector.load %arg2[%c770, %c0_5] : memref<808x128xf32, #tpu.memory_space<vmem>>, vector<1x32xf32>
    %cst = arith.constant dense<0.000000e+00> : vector<8x32xf32>
    %5 = tpu.matmul %0, %1, %cst {dimension_numbers = #tpu.dot_dimension_numbers<[1], [0], [0], [1], [0, 0, 1, 1], [], []>} : vector<8x32xf32>, vector<32x32xf32>, vector<8x32xf32> -> vector<8x32xf32>
    %6 = vector.broadcast %2 : vector<1x32xf32> to vector<8x32xf32>
    %7 = arith.addf %5, %6 : vector<8x32xf32>
    %cst_6 = arith.constant dense<0.000000e+00> : vector<8xf32>
    %8 = vector.multi_reduction <add>, %7, %cst_6 [1] : vector<8x32xf32> to vector<8xf32>
    %9 = vector.shape_cast %8 : vector<8xf32> to vector<8x1xf32>
    %cst_7 = arith.constant 3.200000e+01 : f32
    %10 = vector.broadcast %cst_7 : f32 to vector<8x1xf32>
    %11 = arith.divf %9, %10 : vector<8x1xf32>
    %12 = vector.broadcast %11 : vector<8x1xf32> to vector<8x32xf32>
    %13 = arith.subf %7, %12 : vector<8x32xf32>
    %14 = arith.mulf %13, %13 : vector<8x32xf32>
    %cst_8 = arith.constant dense<0.000000e+00> : vector<8xf32>
    %15 = vector.multi_reduction <add>, %14, %cst_8 [1] : vector<8x32xf32> to vector<8xf32>
    %16 = vector.shape_cast %15 : vector<8xf32> to vector<8x1xf32>
    %cst_9 = arith.constant 3.200000e+01 : f32
    %17 = vector.broadcast %cst_9 : f32 to vector<8x1xf32>
    %18 = arith.divf %16, %17 : vector<8x1xf32>
    %19 = vector.broadcast %11 : vector<8x1xf32> to vector<8x32xf32>
    %20 = arith.subf %7, %19 : vector<8x32xf32>
    %cst_10 = arith.constant 9.99999974E-6 : f32
    %21 = vector.broadcast %cst_10 : f32 to vector<8x1xf32>
    %22 = arith.addf %18, %21 : vector<8x1xf32>
    %23 = math.rsqrt %22 : vector<8x1xf32>
    %24 = vector.broadcast %23 : vector<8x1xf32> to vector<8x32xf32>
    %25 = arith.mulf %20, %24 : vector<8x32xf32>
    %26 = vector.broadcast %3 : vector<1x32xf32> to vector<8x32xf32>
    %27 = arith.mulf %25, %26 : vector<8x32xf32>
    %28 = vector.broadcast %4 : vector<1x32xf32> to vector<8x32xf32>
    %29 = arith.addf %27, %28 : vector<8x32xf32>
    %cst_11 = arith.constant 0.000000e+00 : f32
    %30 = vector.broadcast %cst_11 : f32 to vector<8x32xf32>
    %31 = arith.maximumf %29, %30 : vector<8x32xf32>
    %c32 = arith.constant 32 : index
    %c0_12 = arith.constant 0 : index
    %32 = vector.load %arg2[%c32, %c0_12] : memref<808x128xf32, #tpu.memory_space<vmem>>, vector<32x96xf32>
    %c771 = arith.constant 771 : index
    %c0_13 = arith.constant 0 : index
    %33 = vector.load %arg2[%c771, %c0_13] : memref<808x128xf32, #tpu.memory_space<vmem>>, vector<1x96xf32>
    %c64 = arith.constant 64 : index
    %c0_14 = arith.constant 0 : index
    %34 = vector.load %arg2[%c64, %c0_14] : memref<808x128xf32, #tpu.memory_space<vmem>>, vector<32x32xf32>
    %c772 = arith.constant 772 : index
    %c0_15 = arith.constant 0 : index
    %35 = vector.load %arg2[%c772, %c0_15] : memref<808x128xf32, #tpu.memory_space<vmem>>, vector<1x32xf32>
    %c96 = arith.constant 96 : index
    %c0_16 = arith.constant 0 : index
    %36 = vector.load %arg2[%c96, %c0_16] : memref<808x128xf32, #tpu.memory_space<vmem>>, vector<32x128xf32>
    %c773 = arith.constant 773 : index
    %c0_17 = arith.constant 0 : index
    %37 = vector.load %arg2[%c773, %c0_17] : memref<808x128xf32, #tpu.memory_space<vmem>>, vector<1x128xf32>
    %c128 = arith.constant 128 : index
    %c0_18 = arith.constant 0 : index
    %38 = vector.load %arg2[%c128, %c0_18] : memref<808x128xf32, #tpu.memory_space<vmem>>, vector<128x32xf32>
    %c774 = arith.constant 774 : index
    %c0_19 = arith.constant 0 : index
    %39 = vector.load %arg2[%c774, %c0_19] : memref<808x128xf32, #tpu.memory_space<vmem>>, vector<1x32xf32>
    %c775 = arith.constant 775 : index
    %c0_20 = arith.constant 0 : index
    %40 = vector.load %arg2[%c775, %c0_20] : memref<808x128xf32, #tpu.memory_space<vmem>>, vector<1x32xf32>
    %c776 = arith.constant 776 : index
    %c0_21 = arith.constant 0 : index
    %41 = vector.load %arg2[%c776, %c0_21] : memref<808x128xf32, #tpu.memory_space<vmem>>, vector<1x32xf32>
    %c777 = arith.constant 777 : index
    %c0_22 = arith.constant 0 : index
    %42 = vector.load %arg2[%c777, %c0_22] : memref<808x128xf32, #tpu.memory_space<vmem>>, vector<1x32xf32>
    %c778 = arith.constant 778 : index
    %c0_23 = arith.constant 0 : index
    %43 = vector.load %arg2[%c778, %c0_23] : memref<808x128xf32, #tpu.memory_space<vmem>>, vector<1x32xf32>
    %cst_24 = arith.constant dense<0.000000e+00> : vector<8x96xf32>
    %44 = tpu.matmul %31, %32, %cst_24 {dimension_numbers = #tpu.dot_dimension_numbers<[1], [0], [0], [1], [0, 0, 1, 1], [], []>} : vector<8x32xf32>, vector<32x96xf32>, vector<8x96xf32> -> vector<8x96xf32>
    %45 = vector.broadcast %33 : vector<1x96xf32> to vector<8x96xf32>
    %46 = arith.addf %44, %45 : vector<8x96xf32>
    %47 = vector.extract_strided_slice %46 {offsets = [0, 0], sizes = [8, 8], strides = [1, 1]} : vector<8x96xf32> to vector<8x8xf32>
    %48 = vector.extract_strided_slice %46 {offsets = [0, 32], sizes = [8, 8], strides = [1, 1]} : vector<8x96xf32> to vector<8x8xf32>
    %49 = vector.extract_strided_slice %46 {offsets = [0, 64], sizes = [8, 8], strides = [1, 1]} : vector<8x96xf32> to vector<8x8xf32>
    %50 = tpu.transpose %48, [1, 0] : vector<8x8xf32> -> vector<8x8xf32>
    %cst_25 = arith.constant dense<0.000000e+00> : vector<8x8xf32>
    %51 = tpu.matmul %47, %50, %cst_25 {dimension_numbers = #tpu.dot_dimension_numbers<[1], [0], [0], [1], [0, 0, 1, 1], [], []>} : vector<8x8xf32>, vector<8x8xf32>, vector<8x8xf32> -> vector<8x8xf32>
    %cst_26 = arith.constant dense<0xFF800000> : vector<8xf32>
    %52 = vector.multi_reduction <maximumf>, %51, %cst_26 [1] : vector<8x8xf32> to vector<8xf32>
    %53 = vector.shape_cast %52 : vector<8xf32> to vector<8x1xf32>
    %54 = vector.broadcast %53 : vector<8x1xf32> to vector<8x8xf32>
    %55 = arith.subf %51, %54 : vector<8x8xf32>
    %56 = math.exp %55 : vector<8x8xf32>
    %cst_27 = arith.constant dense<0.000000e+00> : vector<8xf32>
    %57 = vector.multi_reduction <add>, %56, %cst_27 [1] : vector<8x8xf32> to vector<8xf32>
    %58 = vector.shape_cast %57 : vector<8xf32> to vector<8x1xf32>
    %59 = tpu.reciprocal %58 {approx = true} : vector<8x1xf32> -> vector<8x1xf32>
    %60 = vector.broadcast %59 : vector<8x1xf32> to vector<8x8xf32>
    %61 = arith.mulf %56, %60 : vector<8x8xf32>
    %cst_28 = arith.constant dense<0.000000e+00> : vector<8x8xf32>
    %62 = tpu.matmul %61, %49, %cst_28 {dimension_numbers = #tpu.dot_dimension_numbers<[1], [0], [0], [1], [0, 0, 1, 1], [], []>} : vector<8x8xf32>, vector<8x8xf32>, vector<8x8xf32> -> vector<8x8xf32>
    %63 = vector.extract_strided_slice %46 {offsets = [0, 8], sizes = [8, 8], strides = [1, 1]} : vector<8x96xf32> to vector<8x8xf32>
    %64 = vector.extract_strided_slice %46 {offsets = [0, 40], sizes = [8, 8], strides = [1, 1]} : vector<8x96xf32> to vector<8x8xf32>
    %65 = vector.extract_strided_slice %46 {offsets = [0, 72], sizes = [8, 8], strides = [1, 1]} : vector<8x96xf32> to vector<8x8xf32>
    %66 = tpu.transpose %64, [1, 0] : vector<8x8xf32> -> vector<8x8xf32>
    %cst_29 = arith.constant dense<0.000000e+00> : vector<8x8xf32>
    %67 = tpu.matmul %63, %66, %cst_29 {dimension_numbers = #tpu.dot_dimension_numbers<[1], [0], [0], [1], [0, 0, 1, 1], [], []>} : vector<8x8xf32>, vector<8x8xf32>, vector<8x8xf32> -> vector<8x8xf32>
    %cst_30 = arith.constant dense<0xFF800000> : vector<8xf32>
    %68 = vector.multi_reduction <maximumf>, %67, %cst_30 [1] : vector<8x8xf32> to vector<8xf32>
    %69 = vector.shape_cast %68 : vector<8xf32> to vector<8x1xf32>
    %70 = vector.broadcast %69 : vector<8x1xf32> to vector<8x8xf32>
    %71 = arith.subf %67, %70 : vector<8x8xf32>
    %72 = math.exp %71 : vector<8x8xf32>
    %cst_31 = arith.constant dense<0.000000e+00> : vector<8xf32>
    %73 = vector.multi_reduction <add>, %72, %cst_31 [1] : vector<8x8xf32> to vector<8xf32>
    %74 = vector.shape_cast %73 : vector<8xf32> to vector<8x1xf32>
    %75 = tpu.reciprocal %74 {approx = true} : vector<8x1xf32> -> vector<8x1xf32>
    %76 = vector.broadcast %75 : vector<8x1xf32> to vector<8x8xf32>
    %77 = arith.mulf %72, %76 : vector<8x8xf32>
    %cst_32 = arith.constant dense<0.000000e+00> : vector<8x8xf32>
    %78 = tpu.matmul %77, %65, %cst_32 {dimension_numbers = #tpu.dot_dimension_numbers<[1], [0], [0], [1], [0, 0, 1, 1], [], []>} : vector<8x8xf32>, vector<8x8xf32>, vector<8x8xf32> -> vector<8x8xf32>
    %79 = vector.extract_strided_slice %46 {offsets = [0, 16], sizes = [8, 8], strides = [1, 1]} : vector<8x96xf32> to vector<8x8xf32>
    %80 = vector.extract_strided_slice %46 {offsets = [0, 48], sizes = [8, 8], strides = [1, 1]} : vector<8x96xf32> to vector<8x8xf32>
    %81 = vector.extract_strided_slice %46 {offsets = [0, 80], sizes = [8, 8], strides = [1, 1]} : vector<8x96xf32> to vector<8x8xf32>
    %82 = tpu.transpose %80, [1, 0] : vector<8x8xf32> -> vector<8x8xf32>
    %cst_33 = arith.constant dense<0.000000e+00> : vector<8x8xf32>
    %83 = tpu.matmul %79, %82, %cst_33 {dimension_numbers = #tpu.dot_dimension_numbers<[1], [0], [0], [1], [0, 0, 1, 1], [], []>} : vector<8x8xf32>, vector<8x8xf32>, vector<8x8xf32> -> vector<8x8xf32>
    %cst_34 = arith.constant dense<0xFF800000> : vector<8xf32>
    %84 = vector.multi_reduction <maximumf>, %83, %cst_34 [1] : vector<8x8xf32> to vector<8xf32>
    %85 = vector.shape_cast %84 : vector<8xf32> to vector<8x1xf32>
    %86 = vector.broadcast %85 : vector<8x1xf32> to vector<8x8xf32>
    %87 = arith.subf %83, %86 : vector<8x8xf32>
    %88 = math.exp %87 : vector<8x8xf32>
    %cst_35 = arith.constant dense<0.000000e+00> : vector<8xf32>
    %89 = vector.multi_reduction <add>, %88, %cst_35 [1] : vector<8x8xf32> to vector<8xf32>
    %90 = vector.shape_cast %89 : vector<8xf32> to vector<8x1xf32>
    %91 = tpu.reciprocal %90 {approx = true} : vector<8x1xf32> -> vector<8x1xf32>
    %92 = vector.broadcast %91 : vector<8x1xf32> to vector<8x8xf32>
    %93 = arith.mulf %88, %92 : vector<8x8xf32>
    %cst_36 = arith.constant dense<0.000000e+00> : vector<8x8xf32>
    %94 = tpu.matmul %93, %81, %cst_36 {dimension_numbers = #tpu.dot_dimension_numbers<[1], [0], [0], [1], [0, 0, 1, 1], [], []>} : vector<8x8xf32>, vector<8x8xf32>, vector<8x8xf32> -> vector<8x8xf32>
    %95 = vector.extract_strided_slice %46 {offsets = [0, 24], sizes = [8, 8], strides = [1, 1]} : vector<8x96xf32> to vector<8x8xf32>
    %96 = vector.extract_strided_slice %46 {offsets = [0, 56], sizes = [8, 8], strides = [1, 1]} : vector<8x96xf32> to vector<8x8xf32>
    %97 = vector.extract_strided_slice %46 {offsets = [0, 88], sizes = [8, 8], strides = [1, 1]} : vector<8x96xf32> to vector<8x8xf32>
    %98 = tpu.transpose %96, [1, 0] : vector<8x8xf32> -> vector<8x8xf32>
    %cst_37 = arith.constant dense<0.000000e+00> : vector<8x8xf32>
    %99 = tpu.matmul %95, %98, %cst_37 {dimension_numbers = #tpu.dot_dimension_numbers<[1], [0], [0], [1], [0, 0, 1, 1], [], []>} : vector<8x8xf32>, vector<8x8xf32>, vector<8x8xf32> -> vector<8x8xf32>
    %cst_38 = arith.constant dense<0xFF800000> : vector<8xf32>
    %100 = vector.multi_reduction <maximumf>, %99, %cst_38 [1] : vector<8x8xf32> to vector<8xf32>
    %101 = vector.shape_cast %100 : vector<8xf32> to vector<8x1xf32>
    %102 = vector.broadcast %101 : vector<8x1xf32> to vector<8x8xf32>
    %103 = arith.subf %99, %102 : vector<8x8xf32>
    %104 = math.exp %103 : vector<8x8xf32>
    %cst_39 = arith.constant dense<0.000000e+00> : vector<8xf32>
    %105 = vector.multi_reduction <add>, %104, %cst_39 [1] : vector<8x8xf32> to vector<8xf32>
    %106 = vector.shape_cast %105 : vector<8xf32> to vector<8x1xf32>
    %107 = tpu.reciprocal %106 {approx = true} : vector<8x1xf32> -> vector<8x1xf32>
    %108 = vector.broadcast %107 : vector<8x1xf32> to vector<8x8xf32>
    %109 = arith.mulf %104, %108 : vector<8x8xf32>
    %cst_40 = arith.constant dense<0.000000e+00> : vector<8x8xf32>
    %110 = tpu.matmul %109, %97, %cst_40 {dimension_numbers = #tpu.dot_dimension_numbers<[1], [0], [0], [1], [0, 0, 1, 1], [], []>} : vector<8x8xf32>, vector<8x8xf32>, vector<8x8xf32> -> vector<8x8xf32>
    %111 = tpu.concatenate %62, %78, %94, %110 in 1 : vector<8x8xf32>, vector<8x8xf32>, vector<8x8xf32>, vector<8x8xf32> -> vector<8x32xf32>
    %cst_41 = arith.constant dense<0.000000e+00> : vector<8x32xf32>
    %112 = tpu.matmul %111, %34, %cst_41 {dimension_numbers = #tpu.dot_dimension_numbers<[1], [0], [0], [1], [0, 0, 1, 1], [], []>} : vector<8x32xf32>, vector<32x32xf32>, vector<8x32xf32> -> vector<8x32xf32>
    %113 = vector.broadcast %35 : vector<1x32xf32> to vector<8x32xf32>
    %114 = arith.addf %112, %113 : vector<8x32xf32>
    %115 = arith.addf %31, %114 : vector<8x32xf32>
    %cst_42 = arith.constant dense<0.000000e+00> : vector<8xf32>
    %116 = vector.multi_reduction <add>, %115, %cst_42 [1] : vector<8x32xf32> to vector<8xf32>
    %117 = vector.shape_cast %116 : vector<8xf32> to vector<8x1xf32>
    %cst_43 = arith.constant 3.200000e+01 : f32
    %118 = vector.broadcast %cst_43 : f32 to vector<8x1xf32>
    %119 = arith.divf %117, %118 : vector<8x1xf32>
    %120 = vector.broadcast %119 : vector<8x1xf32> to vector<8x32xf32>
    %121 = arith.subf %115, %120 : vector<8x32xf32>
    %122 = arith.mulf %121, %121 : vector<8x32xf32>
    %cst_44 = arith.constant dense<0.000000e+00> : vector<8xf32>
    %123 = vector.multi_reduction <add>, %122, %cst_44 [1] : vector<8x32xf32> to vector<8xf32>
    %124 = vector.shape_cast %123 : vector<8xf32> to vector<8x1xf32>
    %cst_45 = arith.constant 3.200000e+01 : f32
    %125 = vector.broadcast %cst_45 : f32 to vector<8x1xf32>
    %126 = arith.divf %124, %125 : vector<8x1xf32>
    %127 = vector.broadcast %119 : vector<8x1xf32> to vector<8x32xf32>
    %128 = arith.subf %115, %127 : vector<8x32xf32>
    %cst_46 = arith.constant 9.99999974E-6 : f32
    %129 = vector.broadcast %cst_46 : f32 to vector<8x1xf32>
    %130 = arith.addf %126, %129 : vector<8x1xf32>
    %131 = math.rsqrt %130 : vector<8x1xf32>
    %132 = vector.broadcast %131 : vector<8x1xf32> to vector<8x32xf32>
    %133 = arith.mulf %128, %132 : vector<8x32xf32>
    %134 = vector.broadcast %40 : vector<1x32xf32> to vector<8x32xf32>
    %135 = arith.mulf %133, %134 : vector<8x32xf32>
    %136 = vector.broadcast %41 : vector<1x32xf32> to vector<8x32xf32>
    %137 = arith.addf %135, %136 : vector<8x32xf32>
    %cst_47 = arith.constant dense<0.000000e+00> : vector<8x128xf32>
    %138 = tpu.matmul %137, %36, %cst_47 {dimension_numbers = #tpu.dot_dimension_numbers<[1], [0], [0], [1], [0, 0, 1, 1], [], []>} : vector<8x32xf32>, vector<32x128xf32>, vector<8x128xf32> -> vector<8x128xf32>
    %139 = vector.broadcast %37 : vector<1x128xf32> to vector<8x128xf32>
    %140 = arith.addf %138, %139 : vector<8x128xf32>
    %cst_48 = arith.constant 0.000000e+00 : f32
    %141 = vector.broadcast %cst_48 : f32 to vector<8x128xf32>
    %142 = arith.maximumf %140, %141 : vector<8x128xf32>
    %cst_49 = arith.constant dense<0.000000e+00> : vector<8x32xf32>
    %143 = tpu.matmul %142, %38, %cst_49 {dimension_numbers = #tpu.dot_dimension_numbers<[1], [0], [0], [1], [0, 0, 1, 1], [], []>} : vector<8x128xf32>, vector<128x32xf32>, vector<8x32xf32> -> vector<8x32xf32>
    %144 = vector.broadcast %39 : vector<1x32xf32> to vector<8x32xf32>
    %145 = arith.addf %143, %144 : vector<8x32xf32>
    %146 = arith.addf %137, %145 : vector<8x32xf32>
    %cst_50 = arith.constant dense<0.000000e+00> : vector<8xf32>
    %147 = vector.multi_reduction <add>, %146, %cst_50 [1] : vector<8x32xf32> to vector<8xf32>
    %148 = vector.shape_cast %147 : vector<8xf32> to vector<8x1xf32>
    %cst_51 = arith.constant 3.200000e+01 : f32
    %149 = vector.broadcast %cst_51 : f32 to vector<8x1xf32>
    %150 = arith.divf %148, %149 : vector<8x1xf32>
    %151 = vector.broadcast %150 : vector<8x1xf32> to vector<8x32xf32>
    %152 = arith.subf %146, %151 : vector<8x32xf32>
    %153 = arith.mulf %152, %152 : vector<8x32xf32>
    %cst_52 = arith.constant dense<0.000000e+00> : vector<8xf32>
    %154 = vector.multi_reduction <add>, %153, %cst_52 [1] : vector<8x32xf32> to vector<8xf32>
    %155 = vector.shape_cast %154 : vector<8xf32> to vector<8x1xf32>
    %cst_53 = arith.constant 3.200000e+01 : f32
    %156 = vector.broadcast %cst_53 : f32 to vector<8x1xf32>
    %157 = arith.divf %155, %156 : vector<8x1xf32>
    %158 = vector.broadcast %150 : vector<8x1xf32> to vector<8x32xf32>
    %159 = arith.subf %146, %158 : vector<8x32xf32>
    %cst_54 = arith.constant 9.99999974E-6 : f32
    %160 = vector.broadcast %cst_54 : f32 to vector<8x1xf32>
    %161 = arith.addf %157, %160 : vector<8x1xf32>
    %162 = math.rsqrt %161 : vector<8x1xf32>
    %163 = vector.broadcast %162 : vector<8x1xf32> to vector<8x32xf32>
    %164 = arith.mulf %159, %163 : vector<8x32xf32>
    %165 = vector.broadcast %42 : vector<1x32xf32> to vector<8x32xf32>
    %166 = arith.mulf %164, %165 : vector<8x32xf32>
    %167 = vector.broadcast %43 : vector<1x32xf32> to vector<8x32xf32>
    %168 = arith.addf %166, %167 : vector<8x32xf32>
    %c256 = arith.constant 256 : index
    %c0_55 = arith.constant 0 : index
    %169 = vector.load %arg2[%c256, %c0_55] : memref<808x128xf32, #tpu.memory_space<vmem>>, vector<32x96xf32>
    %c779 = arith.constant 779 : index
    %c0_56 = arith.constant 0 : index
    %170 = vector.load %arg2[%c779, %c0_56] : memref<808x128xf32, #tpu.memory_space<vmem>>, vector<1x96xf32>
    %c288 = arith.constant 288 : index
    %c0_57 = arith.constant 0 : index
    %171 = vector.load %arg2[%c288, %c0_57] : memref<808x128xf32, #tpu.memory_space<vmem>>, vector<32x32xf32>
    %c780 = arith.constant 780 : index
    %c0_58 = arith.constant 0 : index
    %172 = vector.load %arg2[%c780, %c0_58] : memref<808x128xf32, #tpu.memory_space<vmem>>, vector<1x32xf32>
    %c320 = arith.constant 320 : index
    %c0_59 = arith.constant 0 : index
    %173 = vector.load %arg2[%c320, %c0_59] : memref<808x128xf32, #tpu.memory_space<vmem>>, vector<32x128xf32>
    %c781 = arith.constant 781 : index
    %c0_60 = arith.constant 0 : index
    %174 = vector.load %arg2[%c781, %c0_60] : memref<808x128xf32, #tpu.memory_space<vmem>>, vector<1x128xf32>
    %c352 = arith.constant 352 : index
    %c0_61 = arith.constant 0 : index
    %175 = vector.load %arg2[%c352, %c0_61] : memref<808x128xf32, #tpu.memory_space<vmem>>, vector<128x32xf32>
    %c782 = arith.constant 782 : index
    %c0_62 = arith.constant 0 : index
    %176 = vector.load %arg2[%c782, %c0_62] : memref<808x128xf32, #tpu.memory_space<vmem>>, vector<1x32xf32>
    %c783 = arith.constant 783 : index
    %c0_63 = arith.constant 0 : index
    %177 = vector.load %arg2[%c783, %c0_63] : memref<808x128xf32, #tpu.memory_space<vmem>>, vector<1x32xf32>
    %c784 = arith.constant 784 : index
    %c0_64 = arith.constant 0 : index
    %178 = vector.load %arg2[%c784, %c0_64] : memref<808x128xf32, #tpu.memory_space<vmem>>, vector<1x32xf32>
    %c785 = arith.constant 785 : index
    %c0_65 = arith.constant 0 : index
    %179 = vector.load %arg2[%c785, %c0_65] : memref<808x128xf32, #tpu.memory_space<vmem>>, vector<1x32xf32>
    %c786 = arith.constant 786 : index
    %c0_66 = arith.constant 0 : index
    %180 = vector.load %arg2[%c786, %c0_66] : memref<808x128xf32, #tpu.memory_space<vmem>>, vector<1x32xf32>
    %cst_67 = arith.constant dense<0.000000e+00> : vector<8x96xf32>
    %181 = tpu.matmul %168, %169, %cst_67 {dimension_numbers = #tpu.dot_dimension_numbers<[1], [0], [0], [1], [0, 0, 1, 1], [], []>} : vector<8x32xf32>, vector<32x96xf32>, vector<8x96xf32> -> vector<8x96xf32>
    %182 = vector.broadcast %170 : vector<1x96xf32> to vector<8x96xf32>
    %183 = arith.addf %181, %182 : vector<8x96xf32>
    %184 = vector.extract_strided_slice %183 {offsets = [0, 0], sizes = [8, 8], strides = [1, 1]} : vector<8x96xf32> to vector<8x8xf32>
    %185 = vector.extract_strided_slice %183 {offsets = [0, 32], sizes = [8, 8], strides = [1, 1]} : vector<8x96xf32> to vector<8x8xf32>
    %186 = vector.extract_strided_slice %183 {offsets = [0, 64], sizes = [8, 8], strides = [1, 1]} : vector<8x96xf32> to vector<8x8xf32>
    %187 = tpu.transpose %185, [1, 0] : vector<8x8xf32> -> vector<8x8xf32>
    %cst_68 = arith.constant dense<0.000000e+00> : vector<8x8xf32>
    %188 = tpu.matmul %184, %187, %cst_68 {dimension_numbers = #tpu.dot_dimension_numbers<[1], [0], [0], [1], [0, 0, 1, 1], [], []>} : vector<8x8xf32>, vector<8x8xf32>, vector<8x8xf32> -> vector<8x8xf32>
    %cst_69 = arith.constant dense<0xFF800000> : vector<8xf32>
    %189 = vector.multi_reduction <maximumf>, %188, %cst_69 [1] : vector<8x8xf32> to vector<8xf32>
    %190 = vector.shape_cast %189 : vector<8xf32> to vector<8x1xf32>
    %191 = vector.broadcast %190 : vector<8x1xf32> to vector<8x8xf32>
    %192 = arith.subf %188, %191 : vector<8x8xf32>
    %193 = math.exp %192 : vector<8x8xf32>
    %cst_70 = arith.constant dense<0.000000e+00> : vector<8xf32>
    %194 = vector.multi_reduction <add>, %193, %cst_70 [1] : vector<8x8xf32> to vector<8xf32>
    %195 = vector.shape_cast %194 : vector<8xf32> to vector<8x1xf32>
    %196 = tpu.reciprocal %195 {approx = true} : vector<8x1xf32> -> vector<8x1xf32>
    %197 = vector.broadcast %196 : vector<8x1xf32> to vector<8x8xf32>
    %198 = arith.mulf %193, %197 : vector<8x8xf32>
    %cst_71 = arith.constant dense<0.000000e+00> : vector<8x8xf32>
    %199 = tpu.matmul %198, %186, %cst_71 {dimension_numbers = #tpu.dot_dimension_numbers<[1], [0], [0], [1], [0, 0, 1, 1], [], []>} : vector<8x8xf32>, vector<8x8xf32>, vector<8x8xf32> -> vector<8x8xf32>
    %200 = vector.extract_strided_slice %183 {offsets = [0, 8], sizes = [8, 8], strides = [1, 1]} : vector<8x96xf32> to vector<8x8xf32>
    %201 = vector.extract_strided_slice %183 {offsets = [0, 40], sizes = [8, 8], strides = [1, 1]} : vector<8x96xf32> to vector<8x8xf32>
    %202 = vector.extract_strided_slice %183 {offsets = [0, 72], sizes = [8, 8], strides = [1, 1]} : vector<8x96xf32> to vector<8x8xf32>
    %203 = tpu.transpose %201, [1, 0] : vector<8x8xf32> -> vector<8x8xf32>
    %cst_72 = arith.constant dense<0.000000e+00> : vector<8x8xf32>
    %204 = tpu.matmul %200, %203, %cst_72 {dimension_numbers = #tpu.dot_dimension_numbers<[1], [0], [0], [1], [0, 0, 1, 1], [], []>} : vector<8x8xf32>, vector<8x8xf32>, vector<8x8xf32> -> vector<8x8xf32>
    %cst_73 = arith.constant dense<0xFF800000> : vector<8xf32>
    %205 = vector.multi_reduction <maximumf>, %204, %cst_73 [1] : vector<8x8xf32> to vector<8xf32>
    %206 = vector.shape_cast %205 : vector<8xf32> to vector<8x1xf32>
    %207 = vector.broadcast %206 : vector<8x1xf32> to vector<8x8xf32>
    %208 = arith.subf %204, %207 : vector<8x8xf32>
    %209 = math.exp %208 : vector<8x8xf32>
    %cst_74 = arith.constant dense<0.000000e+00> : vector<8xf32>
    %210 = vector.multi_reduction <add>, %209, %cst_74 [1] : vector<8x8xf32> to vector<8xf32>
    %211 = vector.shape_cast %210 : vector<8xf32> to vector<8x1xf32>
    %212 = tpu.reciprocal %211 {approx = true} : vector<8x1xf32> -> vector<8x1xf32>
    %213 = vector.broadcast %212 : vector<8x1xf32> to vector<8x8xf32>
    %214 = arith.mulf %209, %213 : vector<8x8xf32>
    %cst_75 = arith.constant dense<0.000000e+00> : vector<8x8xf32>
    %215 = tpu.matmul %214, %202, %cst_75 {dimension_numbers = #tpu.dot_dimension_numbers<[1], [0], [0], [1], [0, 0, 1, 1], [], []>} : vector<8x8xf32>, vector<8x8xf32>, vector<8x8xf32> -> vector<8x8xf32>
    %216 = vector.extract_strided_slice %183 {offsets = [0, 16], sizes = [8, 8], strides = [1, 1]} : vector<8x96xf32> to vector<8x8xf32>
    %217 = vector.extract_strided_slice %183 {offsets = [0, 48], sizes = [8, 8], strides = [1, 1]} : vector<8x96xf32> to vector<8x8xf32>
    %218 = vector.extract_strided_slice %183 {offsets = [0, 80], sizes = [8, 8], strides = [1, 1]} : vector<8x96xf32> to vector<8x8xf32>
    %219 = tpu.transpose %217, [1, 0] : vector<8x8xf32> -> vector<8x8xf32>
    %cst_76 = arith.constant dense<0.000000e+00> : vector<8x8xf32>
    %220 = tpu.matmul %216, %219, %cst_76 {dimension_numbers = #tpu.dot_dimension_numbers<[1], [0], [0], [1], [0, 0, 1, 1], [], []>} : vector<8x8xf32>, vector<8x8xf32>, vector<8x8xf32> -> vector<8x8xf32>
    %cst_77 = arith.constant dense<0xFF800000> : vector<8xf32>
    %221 = vector.multi_reduction <maximumf>, %220, %cst_77 [1] : vector<8x8xf32> to vector<8xf32>
    %222 = vector.shape_cast %221 : vector<8xf32> to vector<8x1xf32>
    %223 = vector.broadcast %222 : vector<8x1xf32> to vector<8x8xf32>
    %224 = arith.subf %220, %223 : vector<8x8xf32>
    %225 = math.exp %224 : vector<8x8xf32>
    %cst_78 = arith.constant dense<0.000000e+00> : vector<8xf32>
    %226 = vector.multi_reduction <add>, %225, %cst_78 [1] : vector<8x8xf32> to vector<8xf32>
    %227 = vector.shape_cast %226 : vector<8xf32> to vector<8x1xf32>
    %228 = tpu.reciprocal %227 {approx = true} : vector<8x1xf32> -> vector<8x1xf32>
    %229 = vector.broadcast %228 : vector<8x1xf32> to vector<8x8xf32>
    %230 = arith.mulf %225, %229 : vector<8x8xf32>
    %cst_79 = arith.constant dense<0.000000e+00> : vector<8x8xf32>
    %231 = tpu.matmul %230, %218, %cst_79 {dimension_numbers = #tpu.dot_dimension_numbers<[1], [0], [0], [1], [0, 0, 1, 1], [], []>} : vector<8x8xf32>, vector<8x8xf32>, vector<8x8xf32> -> vector<8x8xf32>
    %232 = vector.extract_strided_slice %183 {offsets = [0, 24], sizes = [8, 8], strides = [1, 1]} : vector<8x96xf32> to vector<8x8xf32>
    %233 = vector.extract_strided_slice %183 {offsets = [0, 56], sizes = [8, 8], strides = [1, 1]} : vector<8x96xf32> to vector<8x8xf32>
    %234 = vector.extract_strided_slice %183 {offsets = [0, 88], sizes = [8, 8], strides = [1, 1]} : vector<8x96xf32> to vector<8x8xf32>
    %235 = tpu.transpose %233, [1, 0] : vector<8x8xf32> -> vector<8x8xf32>
    %cst_80 = arith.constant dense<0.000000e+00> : vector<8x8xf32>
    %236 = tpu.matmul %232, %235, %cst_80 {dimension_numbers = #tpu.dot_dimension_numbers<[1], [0], [0], [1], [0, 0, 1, 1], [], []>} : vector<8x8xf32>, vector<8x8xf32>, vector<8x8xf32> -> vector<8x8xf32>
    %cst_81 = arith.constant dense<0xFF800000> : vector<8xf32>
    %237 = vector.multi_reduction <maximumf>, %236, %cst_81 [1] : vector<8x8xf32> to vector<8xf32>
    %238 = vector.shape_cast %237 : vector<8xf32> to vector<8x1xf32>
    %239 = vector.broadcast %238 : vector<8x1xf32> to vector<8x8xf32>
    %240 = arith.subf %236, %239 : vector<8x8xf32>
    %241 = math.exp %240 : vector<8x8xf32>
    %cst_82 = arith.constant dense<0.000000e+00> : vector<8xf32>
    %242 = vector.multi_reduction <add>, %241, %cst_82 [1] : vector<8x8xf32> to vector<8xf32>
    %243 = vector.shape_cast %242 : vector<8xf32> to vector<8x1xf32>
    %244 = tpu.reciprocal %243 {approx = true} : vector<8x1xf32> -> vector<8x1xf32>
    %245 = vector.broadcast %244 : vector<8x1xf32> to vector<8x8xf32>
    %246 = arith.mulf %241, %245 : vector<8x8xf32>
    %cst_83 = arith.constant dense<0.000000e+00> : vector<8x8xf32>
    %247 = tpu.matmul %246, %234, %cst_83 {dimension_numbers = #tpu.dot_dimension_numbers<[1], [0], [0], [1], [0, 0, 1, 1], [], []>} : vector<8x8xf32>, vector<8x8xf32>, vector<8x8xf32> -> vector<8x8xf32>
    %248 = tpu.concatenate %199, %215, %231, %247 in 1 : vector<8x8xf32>, vector<8x8xf32>, vector<8x8xf32>, vector<8x8xf32> -> vector<8x32xf32>
    %cst_84 = arith.constant dense<0.000000e+00> : vector<8x32xf32>
    %249 = tpu.matmul %248, %171, %cst_84 {dimension_numbers = #tpu.dot_dimension_numbers<[1], [0], [0], [1], [0, 0, 1, 1], [], []>} : vector<8x32xf32>, vector<32x32xf32>, vector<8x32xf32> -> vector<8x32xf32>
    %250 = vector.broadcast %172 : vector<1x32xf32> to vector<8x32xf32>
    %251 = arith.addf %249, %250 : vector<8x32xf32>
    %252 = arith.addf %168, %251 : vector<8x32xf32>
    %cst_85 = arith.constant dense<0.000000e+00> : vector<8xf32>
    %253 = vector.multi_reduction <add>, %252, %cst_85 [1] : vector<8x32xf32> to vector<8xf32>
    %254 = vector.shape_cast %253 : vector<8xf32> to vector<8x1xf32>
    %cst_86 = arith.constant 3.200000e+01 : f32
    %255 = vector.broadcast %cst_86 : f32 to vector<8x1xf32>
    %256 = arith.divf %254, %255 : vector<8x1xf32>
    %257 = vector.broadcast %256 : vector<8x1xf32> to vector<8x32xf32>
    %258 = arith.subf %252, %257 : vector<8x32xf32>
    %259 = arith.mulf %258, %258 : vector<8x32xf32>
    %cst_87 = arith.constant dense<0.000000e+00> : vector<8xf32>
    %260 = vector.multi_reduction <add>, %259, %cst_87 [1] : vector<8x32xf32> to vector<8xf32>
    %261 = vector.shape_cast %260 : vector<8xf32> to vector<8x1xf32>
    %cst_88 = arith.constant 3.200000e+01 : f32
    %262 = vector.broadcast %cst_88 : f32 to vector<8x1xf32>
    %263 = arith.divf %261, %262 : vector<8x1xf32>
    %264 = vector.broadcast %256 : vector<8x1xf32> to vector<8x32xf32>
    %265 = arith.subf %252, %264 : vector<8x32xf32>
    %cst_89 = arith.constant 9.99999974E-6 : f32
    %266 = vector.broadcast %cst_89 : f32 to vector<8x1xf32>
    %267 = arith.addf %263, %266 : vector<8x1xf32>
    %268 = math.rsqrt %267 : vector<8x1xf32>
    %269 = vector.broadcast %268 : vector<8x1xf32> to vector<8x32xf32>
    %270 = arith.mulf %265, %269 : vector<8x32xf32>
    %271 = vector.broadcast %177 : vector<1x32xf32> to vector<8x32xf32>
    %272 = arith.mulf %270, %271 : vector<8x32xf32>
    %273 = vector.broadcast %178 : vector<1x32xf32> to vector<8x32xf32>
    %274 = arith.addf %272, %273 : vector<8x32xf32>
    %cst_90 = arith.constant dense<0.000000e+00> : vector<8x128xf32>
    %275 = tpu.matmul %274, %173, %cst_90 {dimension_numbers = #tpu.dot_dimension_numbers<[1], [0], [0], [1], [0, 0, 1, 1], [], []>} : vector<8x32xf32>, vector<32x128xf32>, vector<8x128xf32> -> vector<8x128xf32>
    %276 = vector.broadcast %174 : vector<1x128xf32> to vector<8x128xf32>
    %277 = arith.addf %275, %276 : vector<8x128xf32>
    %cst_91 = arith.constant 0.000000e+00 : f32
    %278 = vector.broadcast %cst_91 : f32 to vector<8x128xf32>
    %279 = arith.maximumf %277, %278 : vector<8x128xf32>
    %cst_92 = arith.constant dense<0.000000e+00> : vector<8x32xf32>
    %280 = tpu.matmul %279, %175, %cst_92 {dimension_numbers = #tpu.dot_dimension_numbers<[1], [0], [0], [1], [0, 0, 1, 1], [], []>} : vector<8x128xf32>, vector<128x32xf32>, vector<8x32xf32> -> vector<8x32xf32>
    %281 = vector.broadcast %176 : vector<1x32xf32> to vector<8x32xf32>
    %282 = arith.addf %280, %281 : vector<8x32xf32>
    %283 = arith.addf %274, %282 : vector<8x32xf32>
    %cst_93 = arith.constant dense<0.000000e+00> : vector<8xf32>
    %284 = vector.multi_reduction <add>, %283, %cst_93 [1] : vector<8x32xf32> to vector<8xf32>
    %285 = vector.shape_cast %284 : vector<8xf32> to vector<8x1xf32>
    %cst_94 = arith.constant 3.200000e+01 : f32
    %286 = vector.broadcast %cst_94 : f32 to vector<8x1xf32>
    %287 = arith.divf %285, %286 : vector<8x1xf32>
    %288 = vector.broadcast %287 : vector<8x1xf32> to vector<8x32xf32>
    %289 = arith.subf %283, %288 : vector<8x32xf32>
    %290 = arith.mulf %289, %289 : vector<8x32xf32>
    %cst_95 = arith.constant dense<0.000000e+00> : vector<8xf32>
    %291 = vector.multi_reduction <add>, %290, %cst_95 [1] : vector<8x32xf32> to vector<8xf32>
    %292 = vector.shape_cast %291 : vector<8xf32> to vector<8x1xf32>
    %cst_96 = arith.constant 3.200000e+01 : f32
    %293 = vector.broadcast %cst_96 : f32 to vector<8x1xf32>
    %294 = arith.divf %292, %293 : vector<8x1xf32>
    %295 = vector.broadcast %287 : vector<8x1xf32> to vector<8x32xf32>
    %296 = arith.subf %283, %295 : vector<8x32xf32>
    %cst_97 = arith.constant 9.99999974E-6 : f32
    %297 = vector.broadcast %cst_97 : f32 to vector<8x1xf32>
    %298 = arith.addf %294, %297 : vector<8x1xf32>
    %299 = math.rsqrt %298 : vector<8x1xf32>
    %300 = vector.broadcast %299 : vector<8x1xf32> to vector<8x32xf32>
    %301 = arith.mulf %296, %300 : vector<8x32xf32>
    %302 = vector.broadcast %179 : vector<1x32xf32> to vector<8x32xf32>
    %303 = arith.mulf %301, %302 : vector<8x32xf32>
    %304 = vector.broadcast %180 : vector<1x32xf32> to vector<8x32xf32>
    %305 = arith.addf %303, %304 : vector<8x32xf32>
    %c480 = arith.constant 480 : index
    %c0_98 = arith.constant 0 : index
    %306 = vector.load %arg2[%c480, %c0_98] : memref<808x128xf32, #tpu.memory_space<vmem>>, vector<32x128xf32>
    %c787 = arith.constant 787 : index
    %c0_99 = arith.constant 0 : index
    %307 = vector.load %arg2[%c787, %c0_99] : memref<808x128xf32, #tpu.memory_space<vmem>>, vector<1x128xf32>
    %c788 = arith.constant 788 : index
    %c0_100 = arith.constant 0 : index
    %308 = vector.load %arg2[%c788, %c0_100] : memref<808x128xf32, #tpu.memory_space<vmem>>, vector<1x64xf32>
    %c789 = arith.constant 789 : index
    %c0_101 = arith.constant 0 : index
    %309 = vector.load %arg2[%c789, %c0_101] : memref<808x128xf32, #tpu.memory_space<vmem>>, vector<1x64xf32>
    %c790 = arith.constant 790 : index
    %c0_102 = arith.constant 0 : index
    %310 = vector.load %arg2[%c790, %c0_102] : memref<808x128xf32, #tpu.memory_space<vmem>>, vector<1x64xf32>
    %c791 = arith.constant 791 : index
    %c0_103 = arith.constant 0 : index
    %311 = vector.load %arg2[%c791, %c0_103] : memref<808x128xf32, #tpu.memory_space<vmem>>, vector<1x64xf32>
    %c512 = arith.constant 512 : index
    %c0_104 = arith.constant 0 : index
    %312 = vector.load %arg2[%c512, %c0_104] : memref<808x128xf32, #tpu.memory_space<vmem>>, vector<32x32xf32>
    %c792 = arith.constant 792 : index
    %c0_105 = arith.constant 0 : index
    %313 = vector.load %arg2[%c792, %c0_105] : memref<808x128xf32, #tpu.memory_space<vmem>>, vector<1x32xf32>
    %c793 = arith.constant 793 : index
    %c0_106 = arith.constant 0 : index
    %314 = vector.load %arg2[%c793, %c0_106] : memref<808x128xf32, #tpu.memory_space<vmem>>, vector<1x32xf32>
    %c794 = arith.constant 794 : index
    %c0_107 = arith.constant 0 : index
    %315 = vector.load %arg2[%c794, %c0_107] : memref<808x128xf32, #tpu.memory_space<vmem>>, vector<1x32xf32>
    %c544 = arith.constant 544 : index
    %c0_108 = arith.constant 0 : index
    %316 = vector.load %arg2[%c544, %c0_108] : memref<808x128xf32, #tpu.memory_space<vmem>>, vector<128x64xf32>
    %c795 = arith.constant 795 : index
    %c0_109 = arith.constant 0 : index
    %317 = vector.load %arg2[%c795, %c0_109] : memref<808x128xf32, #tpu.memory_space<vmem>>, vector<1x64xf32>
    %c796 = arith.constant 796 : index
    %c0_110 = arith.constant 0 : index
    %318 = vector.load %arg2[%c796, %c0_110] : memref<808x128xf32, #tpu.memory_space<vmem>>, vector<1x32xf32>
    %c797 = arith.constant 797 : index
    %c0_111 = arith.constant 0 : index
    %319 = vector.load %arg2[%c797, %c0_111] : memref<808x128xf32, #tpu.memory_space<vmem>>, vector<1x32xf32>
    %c798 = arith.constant 798 : index
    %c0_112 = arith.constant 0 : index
    %320 = vector.load %arg2[%c798, %c0_112] : memref<808x128xf32, #tpu.memory_space<vmem>>, vector<1x32xf32>
    %c799 = arith.constant 799 : index
    %c0_113 = arith.constant 0 : index
    %321 = vector.load %arg2[%c799, %c0_113] : memref<808x128xf32, #tpu.memory_space<vmem>>, vector<1x32xf32>
    %c672 = arith.constant 672 : index
    %c0_114 = arith.constant 0 : index
    %322 = vector.load %arg2[%c672, %c0_114] : memref<808x128xf32, #tpu.memory_space<vmem>>, vector<96x128xf32>
    %c800 = arith.constant 800 : index
    %c0_115 = arith.constant 0 : index
    %323 = vector.load %arg2[%c800, %c0_115] : memref<808x128xf32, #tpu.memory_space<vmem>>, vector<1x128xf32>
    %cst_116 = arith.constant dense<0.000000e+00> : vector<8x128xf32>
    %324 = tpu.matmul %305, %306, %cst_116 {dimension_numbers = #tpu.dot_dimension_numbers<[1], [0], [0], [1], [0, 0, 1, 1], [], []>} : vector<8x32xf32>, vector<32x128xf32>, vector<8x128xf32> -> vector<8x128xf32>
    %325 = vector.broadcast %307 : vector<1x128xf32> to vector<8x128xf32>
    %326 = arith.addf %324, %325 : vector<8x128xf32>
    %327 = vector.extract_strided_slice %326 {offsets = [0, 0], sizes = [8, 64], strides = [1, 1]} : vector<8x128xf32> to vector<8x64xf32>
    %cst_117 = arith.constant dense<0.000000e+00> : vector<8xf32>
    %328 = vector.multi_reduction <add>, %327, %cst_117 [1] : vector<8x64xf32> to vector<8xf32>
    %329 = vector.shape_cast %328 : vector<8xf32> to vector<8x1xf32>
    %cst_118 = arith.constant 6.400000e+01 : f32
    %330 = vector.broadcast %cst_118 : f32 to vector<8x1xf32>
    %331 = arith.divf %329, %330 : vector<8x1xf32>
    %332 = vector.broadcast %331 : vector<8x1xf32> to vector<8x64xf32>
    %333 = arith.subf %327, %332 : vector<8x64xf32>
    %334 = arith.mulf %333, %333 : vector<8x64xf32>
    %cst_119 = arith.constant dense<0.000000e+00> : vector<8xf32>
    %335 = vector.multi_reduction <add>, %334, %cst_119 [1] : vector<8x64xf32> to vector<8xf32>
    %336 = vector.shape_cast %335 : vector<8xf32> to vector<8x1xf32>
    %cst_120 = arith.constant 6.400000e+01 : f32
    %337 = vector.broadcast %cst_120 : f32 to vector<8x1xf32>
    %338 = arith.divf %336, %337 : vector<8x1xf32>
    %339 = vector.broadcast %331 : vector<8x1xf32> to vector<8x64xf32>
    %340 = arith.subf %327, %339 : vector<8x64xf32>
    %cst_121 = arith.constant 9.99999974E-6 : f32
    %341 = vector.broadcast %cst_121 : f32 to vector<8x1xf32>
    %342 = arith.addf %338, %341 : vector<8x1xf32>
    %343 = math.rsqrt %342 : vector<8x1xf32>
    %344 = vector.broadcast %343 : vector<8x1xf32> to vector<8x64xf32>
    %345 = arith.mulf %340, %344 : vector<8x64xf32>
    %346 = vector.broadcast %308 : vector<1x64xf32> to vector<8x64xf32>
    %347 = arith.mulf %345, %346 : vector<8x64xf32>
    %348 = vector.broadcast %309 : vector<1x64xf32> to vector<8x64xf32>
    %349 = arith.addf %347, %348 : vector<8x64xf32>
    %cst_122 = arith.constant 0.000000e+00 : f32
    %350 = vector.broadcast %cst_122 : f32 to vector<8x64xf32>
    %351 = arith.maximumf %349, %350 : vector<8x64xf32>
    %352 = vector.extract_strided_slice %326 {offsets = [0, 64], sizes = [8, 64], strides = [1, 1]} : vector<8x128xf32> to vector<8x64xf32>
    %cst_123 = arith.constant dense<0.000000e+00> : vector<8xf32>
    %353 = vector.multi_reduction <add>, %352, %cst_123 [1] : vector<8x64xf32> to vector<8xf32>
    %354 = vector.shape_cast %353 : vector<8xf32> to vector<8x1xf32>
    %cst_124 = arith.constant 6.400000e+01 : f32
    %355 = vector.broadcast %cst_124 : f32 to vector<8x1xf32>
    %356 = arith.divf %354, %355 : vector<8x1xf32>
    %357 = vector.broadcast %356 : vector<8x1xf32> to vector<8x64xf32>
    %358 = arith.subf %352, %357 : vector<8x64xf32>
    %359 = arith.mulf %358, %358 : vector<8x64xf32>
    %cst_125 = arith.constant dense<0.000000e+00> : vector<8xf32>
    %360 = vector.multi_reduction <add>, %359, %cst_125 [1] : vector<8x64xf32> to vector<8xf32>
    %361 = vector.shape_cast %360 : vector<8xf32> to vector<8x1xf32>
    %cst_126 = arith.constant 6.400000e+01 : f32
    %362 = vector.broadcast %cst_126 : f32 to vector<8x1xf32>
    %363 = arith.divf %361, %362 : vector<8x1xf32>
    %364 = vector.broadcast %356 : vector<8x1xf32> to vector<8x64xf32>
    %365 = arith.subf %352, %364 : vector<8x64xf32>
    %cst_127 = arith.constant 9.99999974E-6 : f32
    %366 = vector.broadcast %cst_127 : f32 to vector<8x1xf32>
    %367 = arith.addf %363, %366 : vector<8x1xf32>
    %368 = math.rsqrt %367 : vector<8x1xf32>
    %369 = vector.broadcast %368 : vector<8x1xf32> to vector<8x64xf32>
    %370 = arith.mulf %365, %369 : vector<8x64xf32>
    %371 = vector.broadcast %310 : vector<1x64xf32> to vector<8x64xf32>
    %372 = arith.mulf %370, %371 : vector<8x64xf32>
    %373 = vector.broadcast %311 : vector<1x64xf32> to vector<8x64xf32>
    %374 = arith.addf %372, %373 : vector<8x64xf32>
    %cst_128 = arith.constant 0.000000e+00 : f32
    %375 = vector.broadcast %cst_128 : f32 to vector<8x64xf32>
    %376 = arith.maximumf %374, %375 : vector<8x64xf32>
    %cst_129 = arith.constant dense<0.000000e+00> : vector<8x32xf32>
    %377 = tpu.matmul %305, %312, %cst_129 {dimension_numbers = #tpu.dot_dimension_numbers<[1], [0], [0], [1], [0, 0, 1, 1], [], []>} : vector<8x32xf32>, vector<32x32xf32>, vector<8x32xf32> -> vector<8x32xf32>
    %378 = vector.broadcast %313 : vector<1x32xf32> to vector<8x32xf32>
    %379 = arith.addf %377, %378 : vector<8x32xf32>
    %cst_130 = arith.constant dense<0.000000e+00> : vector<8xf32>
    %380 = vector.multi_reduction <add>, %379, %cst_130 [1] : vector<8x32xf32> to vector<8xf32>
    %381 = vector.shape_cast %380 : vector<8xf32> to vector<8x1xf32>
    %cst_131 = arith.constant 3.200000e+01 : f32
    %382 = vector.broadcast %cst_131 : f32 to vector<8x1xf32>
    %383 = arith.divf %381, %382 : vector<8x1xf32>
    %384 = vector.broadcast %383 : vector<8x1xf32> to vector<8x32xf32>
    %385 = arith.subf %379, %384 : vector<8x32xf32>
    %386 = arith.mulf %385, %385 : vector<8x32xf32>
    %cst_132 = arith.constant dense<0.000000e+00> : vector<8xf32>
    %387 = vector.multi_reduction <add>, %386, %cst_132 [1] : vector<8x32xf32> to vector<8xf32>
    %388 = vector.shape_cast %387 : vector<8xf32> to vector<8x1xf32>
    %cst_133 = arith.constant 3.200000e+01 : f32
    %389 = vector.broadcast %cst_133 : f32 to vector<8x1xf32>
    %390 = arith.divf %388, %389 : vector<8x1xf32>
    %391 = vector.broadcast %383 : vector<8x1xf32> to vector<8x32xf32>
    %392 = arith.subf %379, %391 : vector<8x32xf32>
    %cst_134 = arith.constant 9.99999974E-6 : f32
    %393 = vector.broadcast %cst_134 : f32 to vector<8x1xf32>
    %394 = arith.addf %390, %393 : vector<8x1xf32>
    %395 = math.rsqrt %394 : vector<8x1xf32>
    %396 = vector.broadcast %395 : vector<8x1xf32> to vector<8x32xf32>
    %397 = arith.mulf %392, %396 : vector<8x32xf32>
    %398 = vector.broadcast %314 : vector<1x32xf32> to vector<8x32xf32>
    %399 = arith.mulf %397, %398 : vector<8x32xf32>
    %400 = vector.broadcast %315 : vector<1x32xf32> to vector<8x32xf32>
    %401 = arith.addf %399, %400 : vector<8x32xf32>
    %cst_135 = arith.constant 0.000000e+00 : f32
    %402 = vector.broadcast %cst_135 : f32 to vector<8x32xf32>
    %403 = arith.maximumf %401, %402 : vector<8x32xf32>
    %404 = tpu.concatenate %351, %376 in 1 : vector<8x64xf32>, vector<8x64xf32> -> vector<8x128xf32>
    %cst_136 = arith.constant dense<0.000000e+00> : vector<8x64xf32>
    %405 = tpu.matmul %404, %316, %cst_136 {dimension_numbers = #tpu.dot_dimension_numbers<[1], [0], [0], [1], [0, 0, 1, 1], [], []>} : vector<8x128xf32>, vector<128x64xf32>, vector<8x64xf32> -> vector<8x64xf32>
    %406 = vector.broadcast %317 : vector<1x64xf32> to vector<8x64xf32>
    %407 = arith.addf %405, %406 : vector<8x64xf32>
    %408 = vector.extract_strided_slice %407 {offsets = [0, 0], sizes = [8, 32], strides = [1, 1]} : vector<8x64xf32> to vector<8x32xf32>
    %cst_137 = arith.constant dense<0.000000e+00> : vector<8xf32>
    %409 = vector.multi_reduction <add>, %408, %cst_137 [1] : vector<8x32xf32> to vector<8xf32>
    %410 = vector.shape_cast %409 : vector<8xf32> to vector<8x1xf32>
    %cst_138 = arith.constant 3.200000e+01 : f32
    %411 = vector.broadcast %cst_138 : f32 to vector<8x1xf32>
    %412 = arith.divf %410, %411 : vector<8x1xf32>
    %413 = vector.broadcast %412 : vector<8x1xf32> to vector<8x32xf32>
    %414 = arith.subf %408, %413 : vector<8x32xf32>
    %415 = arith.mulf %414, %414 : vector<8x32xf32>
    %cst_139 = arith.constant dense<0.000000e+00> : vector<8xf32>
    %416 = vector.multi_reduction <add>, %415, %cst_139 [1] : vector<8x32xf32> to vector<8xf32>
    %417 = vector.shape_cast %416 : vector<8xf32> to vector<8x1xf32>
    %cst_140 = arith.constant 3.200000e+01 : f32
    %418 = vector.broadcast %cst_140 : f32 to vector<8x1xf32>
    %419 = arith.divf %417, %418 : vector<8x1xf32>
    %420 = vector.broadcast %412 : vector<8x1xf32> to vector<8x32xf32>
    %421 = arith.subf %408, %420 : vector<8x32xf32>
    %cst_141 = arith.constant 9.99999974E-6 : f32
    %422 = vector.broadcast %cst_141 : f32 to vector<8x1xf32>
    %423 = arith.addf %419, %422 : vector<8x1xf32>
    %424 = math.rsqrt %423 : vector<8x1xf32>
    %425 = vector.broadcast %424 : vector<8x1xf32> to vector<8x32xf32>
    %426 = arith.mulf %421, %425 : vector<8x32xf32>
    %427 = vector.broadcast %318 : vector<1x32xf32> to vector<8x32xf32>
    %428 = arith.mulf %426, %427 : vector<8x32xf32>
    %429 = vector.broadcast %319 : vector<1x32xf32> to vector<8x32xf32>
    %430 = arith.addf %428, %429 : vector<8x32xf32>
    %cst_142 = arith.constant 0.000000e+00 : f32
    %431 = vector.broadcast %cst_142 : f32 to vector<8x32xf32>
    %432 = arith.maximumf %430, %431 : vector<8x32xf32>
    %433 = vector.extract_strided_slice %407 {offsets = [0, 32], sizes = [8, 32], strides = [1, 1]} : vector<8x64xf32> to vector<8x32xf32>
    %cst_143 = arith.constant dense<0.000000e+00> : vector<8xf32>
    %434 = vector.multi_reduction <add>, %433, %cst_143 [1] : vector<8x32xf32> to vector<8xf32>
    %435 = vector.shape_cast %434 : vector<8xf32> to vector<8x1xf32>
    %cst_144 = arith.constant 3.200000e+01 : f32
    %436 = vector.broadcast %cst_144 : f32 to vector<8x1xf32>
    %437 = arith.divf %435, %436 : vector<8x1xf32>
    %438 = vector.broadcast %437 : vector<8x1xf32> to vector<8x32xf32>
    %439 = arith.subf %433, %438 : vector<8x32xf32>
    %440 = arith.mulf %439, %439 : vector<8x32xf32>
    %cst_145 = arith.constant dense<0.000000e+00> : vector<8xf32>
    %441 = vector.multi_reduction <add>, %440, %cst_145 [1] : vector<8x32xf32> to vector<8xf32>
    %442 = vector.shape_cast %441 : vector<8xf32> to vector<8x1xf32>
    %cst_146 = arith.constant 3.200000e+01 : f32
    %443 = vector.broadcast %cst_146 : f32 to vector<8x1xf32>
    %444 = arith.divf %442, %443 : vector<8x1xf32>
    %445 = vector.broadcast %437 : vector<8x1xf32> to vector<8x32xf32>
    %446 = arith.subf %433, %445 : vector<8x32xf32>
    %cst_147 = arith.constant 9.99999974E-6 : f32
    %447 = vector.broadcast %cst_147 : f32 to vector<8x1xf32>
    %448 = arith.addf %444, %447 : vector<8x1xf32>
    %449 = math.rsqrt %448 : vector<8x1xf32>
    %450 = vector.broadcast %449 : vector<8x1xf32> to vector<8x32xf32>
    %451 = arith.mulf %446, %450 : vector<8x32xf32>
    %452 = vector.broadcast %320 : vector<1x32xf32> to vector<8x32xf32>
    %453 = arith.mulf %451, %452 : vector<8x32xf32>
    %454 = vector.broadcast %321 : vector<1x32xf32> to vector<8x32xf32>
    %455 = arith.addf %453, %454 : vector<8x32xf32>
    %cst_148 = arith.constant 0.000000e+00 : f32
    %456 = vector.broadcast %cst_148 : f32 to vector<8x32xf32>
    %457 = arith.maximumf %455, %456 : vector<8x32xf32>
    %458 = tpu.concatenate %432, %457, %403 in 1 : vector<8x32xf32>, vector<8x32xf32>, vector<8x32xf32> -> vector<8x96xf32>
    %cst_149 = arith.constant dense<0.000000e+00> : vector<8x128xf32>
    %459 = tpu.matmul %458, %322, %cst_149 {dimension_numbers = #tpu.dot_dimension_numbers<[1], [0], [0], [1], [0, 0, 1, 1], [], []>} : vector<8x96xf32>, vector<96x128xf32>, vector<8x128xf32> -> vector<8x128xf32>
    %460 = vector.broadcast %323 : vector<1x128xf32> to vector<8x128xf32>
    %461 = arith.addf %459, %460 : vector<8x128xf32>
    %c0_150 = arith.constant 0 : index
    %c0_151 = arith.constant 0 : index
    %462 = vector.load %arg3[%c0_150, %c0_151] : memref<8x128xf32, #tpu.memory_space<vmem>>, vector<8x128xf32>
    tpu.vector_store %arg3[%c0_150, %c0_151], %461 {strides = array<i32>} : memref<8x128xf32, #tpu.memory_space<vmem>>, vector<8x128xf32>,
    return
  }
  func.func @transform_0(%arg0: i32) -> (i32, i32) {
    %c0_i32 = arith.constant 0 : i32
    %c0_i32_0 = arith.constant 0 : i32
    return %arg0, %c0_i32 : i32, i32
  }
  func.func @transform_1(%arg0: i32) -> (i32, i32) {
    %c0_i32 = arith.constant 0 : i32
    %c0_i32_0 = arith.constant 0 : i32
    %c0_i32_1 = arith.constant 0 : i32
    return %c0_i32, %c0_i32_0 : i32, i32
  }
  func.func @transform_2(%arg0: i32) -> (i32, i32) {
    %c0_i32 = arith.constant 0 : i32
    %c0_i32_0 = arith.constant 0 : i32
    return %arg0, %c0_i32 : i32, i32
  }
}

</mosaic_0001>

<llo_original>
// kernel: tpu_custom_call.1
$region0: #{tpu_custom_call.1}
  #allocation0 [shape = 'u32[]', space=smem, size = 0x4, offset = 0x4, fixed_abs, tag = 'smem constant byte address 0x4 - core index']
  #allocation1 [shape = 'u32[144,128]{1,0:T(1,128)}', space=vmem, size = 0x12000, scoped, tag = 'internal scratch']
  %s0 = inlined_call_operand.hbm [shape: f32[16,32], index: 0, kind: input, shape index: {}]
  %s1 = inlined_call_operand.hbm [shape: f32[808,128], index: 1, kind: input, shape index: {}]
  %s2 = inlined_call_operand.hbm [shape: f32[16,128], index: 2, kind: output, shape index: {}]
  %s3 = sld [smem:[#allocation0]]
  $region49: #{tpu_custom_call.1} parent=0
    _
  %s5 = ssub.s32 1, %s3
  %s6 = scalar_select 0, %s5, %s3
  $region1: #{tpu_custom_call.1} parent=0
    #allocation2 [shape = 'u8[8192]{0}', space=vmem, size = 0x2000, scoped, tag = 'input window, operand 0']
    #allocation3 [shape = 's32[2]{0}', space=sflag, size = 0x8, scoped, tag = 'scoped memory for tpu_custom_call.1']
    #allocation4 [shape = 's32[2]{0}', space=sflag, size = 0x8, scoped, tag = 'scoped memory for tpu_custom_call.1']
    #allocation5 [shape = 'u8[413696]{0}', space=vmem, size = 0x65000, scoped, tag = 'input window, operand 1, single buffered']
    #allocation6 [shape = 's32[1]{0}', space=sflag, size = 0x4, scoped, tag = 'scoped memory for tpu_custom_call.1']
    #allocation7 [shape = 'u8[8192]{0}', space=vmem, size = 0x2000, scoped, tag = 'output window, operand 0']
    %7 = vsyncpa [#allocation3], 0
    %s8 = scalar_lea.sflag [#allocation3], 1
    %9 = vsyncpa %s8, 0
    %10 = vsyncpa [#allocation6], 0
    %11 = vsyncpa [#allocation4], 0
    %s12 = scalar_lea.sflag [#allocation4], 1
    %13 = vsyncpa %s12, 0
    loop: start=0, step=1, limit=4
    $region2: #{tpu_custom_call.1} parent=1 // loop_pre_header
      _
    $region3: #{tpu_custom_call.1} parent=1 // loop_header
      %s15 = sphi 0, %s19
      %p16 = scmp.ge.s32.totalorder %s15, 4
      %s25 = sphi 0, %s27
      %s28 = sphi 0, %s25
      %s29 = sphi 0, %s28
      %s45 = sphi 0, %s29
      %s49 = sphi 0, %s49
      %s51 = sphi 0, %s49
      %s52 = sphi 0, %s51
      %s66 = sphi 0, %s52
      %s72 = sphi 0, %s74
      %s75 = sphi 0, %s72
      %s76 = sphi 0, %s75
      %s92 = sphi 0, %s76
    $region4: #{tpu_custom_call.1} parent=1 // loop_header_branch
      %18 = sbr.rel (%p16) target = $region8
    $region5: #{tpu_custom_call.1} parent=1 // loop_body
      %s20 = ssub.s32 %s15, 1
      %s21 = ssub.s32 %s15, 2
      %s22 = sadd.s32 %s15, 1
      %s23 = ssub.s32 %s15, %s22
      %p24 = scmp.eq.s32.totalorder %s23, 0
      %s26 = sadd.s32 %s25, 1
      %s27 = scalar_select %p24, %s25, %s26
      %p30 = pneg %p24
      %p31 = scmp.eq.s32.totalorder %s15, 1
      %p32 = por %p30, %p31
      %p33 = scmp.ne.s32.totalorder %s25, %s28
      %p34 = scmp.eq.s32.totalorder %s15, 0
      %p35 = por %p33, %p34
      %p36 = scmp.ne.s32.totalorder %s25, %s28
      %p37 = scmp.eq.s32.totalorder %s20, 1
      %p38 = por %p36, %p37
      %p39 = scmp.ne.s32.totalorder %s28, %s29
      %p40 = scmp.eq.s32.totalorder %s20, 0
      %p41 = por %p39, %p40
      %p42 = scmp.ne.s32.totalorder %s28, %s29
      %p43 = scmp.eq.s32.totalorder %s21, 1
      %p44 = por %p42, %p43
      %p46 = scmp.ne.s32.totalorder %s29, %s45
      %p47 = scmp.eq.s32.totalorder %s21, 0
      %p48 = por %p46, %p47
      %s50 = sadd.s32 %s49, 1
      %p53 = scmp.eq.s32.totalorder %s15, 1
      %p54 = scmp.ne.s32.totalorder %s49, %s51
      %p55 = scmp.eq.s32.totalorder %s15, 0
      %p56 = por %p54, %p55
      %p57 = scmp.ne.s32.totalorder %s49, %s51
      %p58 = scmp.eq.s32.totalorder %s20, 1
      %p59 = por %p57, %p58
      %p60 = scmp.ne.s32.totalorder %s51, %s52
      %p61 = scmp.eq.s32.totalorder %s20, 0
      %p62 = por %p60, %p61
      %p63 = scmp.ne.s32.totalorder %s51, %s52
      %p64 = scmp.eq.s32.totalorder %s21, 1
      %p65 = por %p63, %p64
      %p67 = scmp.ne.s32.totalorder %s52, %s66
      %p68 = scmp.eq.s32.totalorder %s21, 0
      %p69 = por %p67, %p68
      %s70 = ssub.s32 %s15, %s22
      %p71 = scmp.eq.s32.totalorder %s70, 0
      %s73 = sadd.s32 %s72, 1
      %s74 = scalar_select %p71, %s72, %s73
      %p77 = pneg %p71
      %p78 = scmp.eq.s32.totalorder %s15, 1
      %p79 = por %p77, %p78
      %p80 = scmp.ne.s32.totalorder %s72, %s75
      %p81 = scmp.eq.s32.totalorder %s15, 0
      %p82 = por %p80, %p81
      %p83 = scmp.ne.s32.totalorder %s72, %s75
      %p84 = scmp.eq.s32.totalorder %s20, 1
      %p85 = por %p83, %p84
      %p86 = scmp.ne.s32.totalorder %s75, %s76
      %p87 = scmp.eq.s32.totalorder %s20, 0
      %p88 = por %p86, %p87
      %p89 = scmp.ne.s32.totalorder %s75, %s76
      %p90 = scmp.eq.s32.totalorder %s21, 1
      %p91 = por %p89, %p90
      %p93 = scmp.ne.s32.totalorder %s76, %s92
      %p94 = scmp.eq.s32.totalorder %s21, 0
      %p95 = por %p93, %p94
      %p96 = scmp.le.s32.totalorder 1, %s15
      %p97 = scmp.lt.s32.totalorder %s15, 3
      %p98 = pnand %p96, %p97
      %p99 = pneg %p98
      // Predicated region
      $region9: #{tpu_custom_call.1} parent=5 // pred_check
        _
      $region10: #{tpu_custom_call.1} parent=5 // pred_check_branch
        %101 = sbr.rel (%p98) target = $region12
      $region11: #{tpu_custom_call.1} parent=5 // pred_region
        %s102 = ssub.s32 %s15, 1
        // Predicated region
        $region13: #{tpu_custom_call.1} parent=11 // pred_check
          %p103 = pneg %p62
        $region14: #{tpu_custom_call.1} parent=11 // pred_check_branch
          %105 = sbr.rel (%p103) target = $region16
        $region15: #{tpu_custom_call.1} parent=11 // pred_region
          %s107 = ssub.s32 12928, 12928
          %108 = vsyncadd [#allocation6], %s107
          %s109 = sshll.u32 [#allocation5], 4
          %s110 = int_to_ptr.vmem [resolvable:$true] %s109
          %115 = dma.hbm_to_vmem [thread:$0]  %s1, 12928, %s110, [#allocation6], 128, 128, 8
        $region16: #{tpu_custom_call.1} parent=11 // pred_fallthru
          _
      $region12: #{tpu_custom_call.1} parent=5 // pred_fallthru
        _
      %p116 = scmp.lt.s32.totalorder %s15, 2
      // Predicated region
      $region17: #{tpu_custom_call.1} parent=5 // pred_check
        %p117 = pneg %p116
      $region18: #{tpu_custom_call.1} parent=5 // pred_check_branch
        %119 = sbr.rel (%p117) target = $region20
      $region19: #{tpu_custom_call.1} parent=5 // pred_region
        // Predicated region
        $region21: #{tpu_custom_call.1} parent=19 // pred_check
          %p120 = pneg %p35
        $region22: #{tpu_custom_call.1} parent=19 // pred_check_branch
          %122 = sbr.rel (%p120) target = $region24
        $region23: #{tpu_custom_call.1} parent=19 // pred_region
          %s123 = sand.u32 %s25, 1
          %s124 = scalar_lea.sflag [#allocation3], %s123
          %s125 = sand.u32 %s25, 1
          %s126 = smul.addr %s125, 8
          %s127 = scalar_lea.vmem [#allocation2], %s126
          %s129 = ssub.s32 128, 128
          %130 = vsyncadd %s124, %s129
          %s131 = smul.addr %s15, 128
          %s132 = scalar_lea.hbm %s0, %s131
          %s134 = sshll.u32 %s127, 4
          %s135 = int_to_ptr.vmem [resolvable:$true] %s134
          %137 = dma.hbm_to_vmem [thread:$0]  %s132, 128, %s135, %s124
        $region24: #{tpu_custom_call.1} parent=19 // pred_fallthru
          _
      $region20: #{tpu_custom_call.1} parent=5 // pred_fallthru
        _
      %p138 = scmp.le.s32.totalorder 1, %s15
      %p139 = scmp.lt.s32.totalorder %s15, 3
      %p140 = pnand %p138, %p139
      %p141 = pneg %p140
      // Predicated region
      $region25: #{tpu_custom_call.1} parent=5 // pred_check
        _
      $region26: #{tpu_custom_call.1} parent=5 // pred_check_branch
        %143 = sbr.rel (%p140) target = $region28
      $region27: #{tpu_custom_call.1} parent=5 // pred_region
        %s144 = ssub.s32 %s15, 1
        %s145 = sand.u32 %s28, 1
        %s146 = scalar_lea.sflag [#allocation3], %s145
        %s147 = sand.u32 %s28, 1
        %s148 = smul.addr %s147, 8
        %s149 = scalar_lea.vmem [#allocation2], %s148
        // Predicated region
        $region29: #{tpu_custom_call.1} parent=27 // pred_check
          %p150 = pneg %p41
        $region30: #{tpu_custom_call.1} parent=27 // pred_check_branch
          %152 = sbr.rel (%p150) target = $region32
        $region31: #{tpu_custom_call.1} parent=27 // pred_region
          %153 = dma.done %s146, 128
        $region32: #{tpu_custom_call.1} parent=27 // pred_fallthru
          _
        // Predicated region
        $region33: #{tpu_custom_call.1} parent=27 // pred_check
          %p154 = pneg %p62
        $region34: #{tpu_custom_call.1} parent=27 // pred_check_branch
          %156 = sbr.rel (%p154) target = $region36
        $region35: #{tpu_custom_call.1} parent=27 // pred_region
          %157 = dma.done [#allocation6], 12928
        $region36: #{tpu_custom_call.1} parent=27 // pred_fallthru
          _
        %s158 = sand.u32 %s28, 1
        %s159 = scalar_lea.sflag [#allocation3], %s158
        %s160 = sand.u32 %s28, 1
        %s161 = smul.addr %s160, 8
        %s162 = scalar_lea.vmem [#allocation2], %s161
        %p163 = pneg %p41
        %p164 = pneg %p38
        %p165 = pneg %p62
        %p166 = pneg %p59
        %p167 = pneg %p88
        %p168 = pneg %p85
        %s169 = sand.u32 %s75, 1
        %s170 = scalar_lea.sflag [#allocation4], %s169
        %s171 = sand.u32 %s75, 1
        %s172 = smul.addr %s171, 8
        %s173 = scalar_lea.vmem [#allocation7], %s172
        %v174 = vld [vmem:[%s149] sm:$0xff]
        %v175 = vld [vmem:[#allocation5] sm:$0xff]
        %v176 = vld [vmem:[#allocation5 + $0x8] sm:$0xff]
        %v177 = vld [vmem:[#allocation5 + $0x10] sm:$0xff]
        %v178 = vld [vmem:[#allocation5 + $0x18] sm:$0xff]
        %v179 = vld [vmem:[#allocation5 + $0x300] sm:$0x1]
        %v180 = vld [vmem:[#allocation5 + $0x301] sm:$0x1]
        %v181 = vld [vmem:[#allocation5 + $0x302] sm:$0x1]
        %v182 = vlaneseq
        %v183 = vshrl.u32 %v182, 7
        %v184 = vsub.s32 0, %v183
        %v185 = vrot.slane %v179, %v184
        %vm186 = vcmask 261120
        %v188 = vsel %vm186, %v174, 0
        %190 = vmatprep.subr.mxu0 0.0
        %191 = vmatpush1.msra.mxu0 0.0
        %192 = vmatprep.subr.mxu0 0.0
        %193 = vmatpush1.msra.mxu0 0.0
        %194 = vmatprep.subr.mxu0 0.0
        %195 = vmatpush1.msra.mxu0 0.0
        %196 = vmatprep.subr.mxu0 0.0
        %197 = vmatpush1.msra.mxu0 0.0
        %198 = vmatprep.subr.mxu0 0.0
        %199 = vmatpush1.msra.mxu0 0.0
        %200 = vmatprep.subr.mxu0 0.0
        %201 = vmatpush1.msra.mxu0 0.0
        %202 = vmatprep.subr.mxu0 0.0
        %203 = vmatpush1.msra.mxu0 0.0
        %204 = vmatprep.subr.mxu0 0.0
        %205 = vmatpush1.msra.mxu0 0.0
        %206 = vmatprep.subr.mxu0 0.0
        %207 = vmatpush1.msra.mxu0 0.0
        %208 = vmatprep.subr.mxu0 0.0
        %209 = vmatpush1.msra.mxu0 0.0
        %210 = vmatprep.subr.mxu0 0.0
        %211 = vmatpush1.msra.mxu0 0.0
        %212 = vmatprep.subr.mxu0 0.0
        %213 = vmatpush1.msra.mxu0 0.0
        %214 = vmatprep.subr.mxu0 0.0
        %215 = vmatpush1.msra.mxu0 %v178
        %216 = vmatprep.subr.mxu0 0.0
        %217 = vmatpush1.msra.mxu0 %v177
        %218 = vmatprep.subr.mxu0 0.0
        %219 = vmatpush1.msra.mxu0 %v176
        %220 = vmatprep.subr.mxu0 0.0
        %221 = vmatpush1.msra.mxu0 %v175
        %222 = vmatprep.subr.mxu0 0.0
        %223 = vmatpush2.msra.mxu0 0.0
        %224 = vmatprep.subr.mxu0 0.0
        %225 = vmatpush2.msra.mxu0 0.0
        %226 = vmatprep.subr.mxu0 0.0
        %227 = vmatpush2.msra.mxu0 0.0
        %228 = vmatprep.subr.mxu0 0.0
        %229 = vmatpush2.msra.mxu0 0.0
        %230 = vmatprep.subr.mxu0 0.0
        %231 = vmatpush2.msra.mxu0 0.0
        %232 = vmatprep.subr.mxu0 0.0
        %233 = vmatpush2.msra.mxu0 0.0
        %234 = vmatprep.subr.mxu0 0.0
        %235 = vmatpush2.msra.mxu0 0.0
        %236 = vmatprep.subr.mxu0 0.0
        %237 = vmatpush2.msra.mxu0 0.0
        %238 = vmatprep.subr.mxu0 0.0
        %239 = vmatpush2.msra.mxu0 0.0
        %240 = vmatprep.subr.mxu0 0.0
        %241 = vmatpush2.msra.mxu0 0.0
        %242 = vmatprep.subr.mxu0 0.0
        %243 = vmatpush2.msra.mxu0 0.0
        %244 = vmatprep.subr.mxu0 0.0
        %245 = vmatpush2.msra.mxu0 0.0
        %246 = vmatprep.subr.mxu0 0.0
        %247 = vmatpush2.msra.mxu0 0.0
        %248 = vmatprep.subr.mxu0 0.0
        %249 = vmatpush2.msra.mxu0 0.0
        %250 = vmatprep.subr.mxu0 0.0
        %251 = vmatpush2.msra.mxu0 0.0
        %252 = vmatprep.subr.mxu0 0.0
        %253 = vmatpush2.msra.mxu0 0.0
        %254 = vmatprep.mubr.f32.mxu0 0.0
        %255 = vmatmul.mubr.f32.gmra.mxu0 %v188
        %v256 = vpop.f32.mrf.mxu0
        %v257 = vadd.f32 %v185, %v256
        %v258 = vpop.f32.mrf.mxu0
        %259 = vdwg.mxu0
        %v260 = vsel %vm186, %v257, 0.0
        %261 = vadd.xlane.f32.xlu0 %v260
        %v262 = vpop.xlane.xlu0 %261
        %v263 = vrcp.pop 32.0
        %v264 = vmul.f32 %v262, %v263
        %v265 = vsub.f32 %v257, %v264
        %v266 = vmul.f32 %v265, %v265
        %v267 = vsel %vm186, %v266, 0.0
        %268 = vadd.xlane.f32.xlu0 %v267
        %v269 = vpop.xlane.xlu0 %268
        %v270 = vmul.f32 %v269, %v263
        %v271 = vadd.f32 %v270, 1e-05
        %v272 = vrsqrt.pop %v271
        %v273 = vmul.f32 %v265, %v272
        %v274 = vlaneseq
        %v275 = vshrl.u32 %v274, 7
        %v276 = vsub.s32 0, %v275
        %v277 = vrot.slane %v180, %v276
        %v278 = vmul.f32 %v273, %v277
        %v279 = vlaneseq
        %v280 = vshrl.u32 %v279, 7
        %v281 = vsub.s32 0, %v280
        %v282 = vrot.slane %v181, %v281
        %v283 = vadd.f32 %v278, %v282
        %v284 = vmax.f32 %v283, 0.0
        %v285 = vld [vmem:[#allocation5 + $0x20] sm:$0xff]
        %v286 = vld [vmem:[#allocation5 + $0x28] sm:$0xff]
        %v287 = vld [vmem:[#allocation5 + $0x30] sm:$0xff]
        %v288 = vld [vmem:[#allocation5 + $0x38] sm:$0xff]
        %v289 = vld [vmem:[#allocation5 + $0x303] sm:$0x1]
        %v290 = vld [vmem:[#allocation5 + $0x40] sm:$0xff]
        %v291 = vld [vmem:[#allocation5 + $0x48] sm:$0xff]
        %v292 = vld [vmem:[#allocation5 + $0x50] sm:$0xff]
        %v293 = vld [vmem:[#allocation5 + $0x58] sm:$0xff]
        %v294 = vld [vmem:[#allocation5 + $0x304] sm:$0x1]
        %v295 = vld [vmem:[#allocation5 + $0x60] sm:$0xff]
        %v296 = vld [vmem:[#allocation5 + $0x68] sm:$0xff]
        %v297 = vld [vmem:[#allocation5 + $0x70] sm:$0xff]
        %v298 = vld [vmem:[#allocation5 + $0x78] sm:$0xff]
        %v299 = vld [vmem:[#allocation5 + $0x305] sm:$0x1]
        %v300 = vld [vmem:[#allocation5 + $0x80] sm:$0xff]
        %v301 = vld [vmem:[#allocation5 + $0x88] sm:$0xff]
        %v302 = vld [vmem:[#allocation5 + $0x90] sm:$0xff]
        %v303 = vld [vmem:[#allocation5 + $0x98] sm:$0xff]
        %v304 = vld [vmem:[#allocation5 + $0xa0] sm:$0xff]
        %v305 = vld [vmem:[#allocation5 + $0xa8] sm:$0xff]
        %v306 = vld [vmem:[#allocation5 + $0xb0] sm:$0xff]
        %v307 = vld [vmem:[#allocation5 + $0xb8] sm:$0xff]
        %v308 = vld [vmem:[#allocation5 + $0xc0] sm:$0xff]
        %v309 = vld [vmem:[#allocation5 + $0xc8] sm:$0xff]
        %v310 = vld [vmem:[#allocation5 + $0xd0] sm:$0xff]
        %v311 = vld [vmem:[#allocation5 + $0xd8] sm:$0xff]
        %v312 = vld [vmem:[#allocation5 + $0xe0] sm:$0xff]
        %v313 = vld [vmem:[#allocation5 + $0xe8] sm:$0xff]
        %v314 = vld [vmem:[#allocation5 + $0xf0] sm:$0xff]
        %v315 = vld [vmem:[#allocation5 + $0xf8] sm:$0xff]
        %v316 = vld [vmem:[#allocation5 + $0x306] sm:$0x1]
        %v317 = vld [vmem:[#allocation5 + $0x307] sm:$0x1]
        %v318 = vld [vmem:[#allocation5 + $0x308] sm:$0x1]
        %v319 = vld [vmem:[#allocation5 + $0x309] sm:$0x1]
        %v320 = vld [vmem:[#allocation5 + $0x30a] sm:$0x1]
        %v321 = vlaneseq
        %v322 = vshrl.u32 %v321, 7
        %v323 = vsub.s32 0, %v322
        %v324 = vrot.slane %v289, %v323
        %v326 = vsel %vm186, %v284, 0
        %328 = vmatprep.subr.mxu0 0.0
        %329 = vmatpush1.msra.mxu0 0.0
        %330 = vmatprep.subr.mxu0 0.0
        %331 = vmatpush1.msra.mxu0 0.0
        %332 = vmatprep.subr.mxu0 0.0
        %333 = vmatpush1.msra.mxu0 0.0
        %334 = vmatprep.subr.mxu0 0.0
        %335 = vmatpush1.msra.mxu0 0.0
        %336 = vmatprep.subr.mxu0 0.0
        %337 = vmatpush1.msra.mxu0 0.0
        %338 = vmatprep.subr.mxu0 0.0
        %339 = vmatpush1.msra.mxu0 0.0
        %340 = vmatprep.subr.mxu0 0.0
        %341 = vmatpush1.msra.mxu0 0.0
        %342 = vmatprep.subr.mxu0 0.0
        %343 = vmatpush1.msra.mxu0 0.0
        %344 = vmatprep.subr.mxu0 0.0
        %345 = vmatpush1.msra.mxu0 0.0
        %346 = vmatprep.subr.mxu0 0.0
        %347 = vmatpush1.msra.mxu0 0.0
        %348 = vmatprep.subr.mxu0 0.0
        %349 = vmatpush1.msra.mxu0 0.0
        %350 = vmatprep.subr.mxu0 0.0
        %351 = vmatpush1.msra.mxu0 0.0
        %352 = vmatprep.subr.mxu0 0.0
        %353 = vmatpush1.msra.mxu0 %v288
        %354 = vmatprep.subr.mxu0 0.0
        %355 = vmatpush1.msra.mxu0 %v287
        %356 = vmatprep.subr.mxu0 0.0
        %357 = vmatpush1.msra.mxu0 %v286
        %358 = vmatprep.subr.mxu0 0.0
        %359 = vmatpush1.msra.mxu0 %v285
        %360 = vmatprep.subr.mxu0 0.0
        %361 = vmatpush2.msra.mxu0 0.0
        %362 = vmatprep.subr.mxu0 0.0
        %363 = vmatpush2.msra.mxu0 0.0
        %364 = vmatprep.subr.mxu0 0.0
        %365 = vmatpush2.msra.mxu0 0.0
        %366 = vmatprep.subr.mxu0 0.0
        %367 = vmatpush2.msra.mxu0 0.0
        %368 = vmatprep.subr.mxu0 0.0
        %369 = vmatpush2.msra.mxu0 0.0
        %370 = vmatprep.subr.mxu0 0.0
        %371 = vmatpush2.msra.mxu0 0.0
        %372 = vmatprep.subr.mxu0 0.0
        %373 = vmatpush2.msra.mxu0 0.0
        %374 = vmatprep.subr.mxu0 0.0
        %375 = vmatpush2.msra.mxu0 0.0
        %376 = vmatprep.subr.mxu0 0.0
        %377 = vmatpush2.msra.mxu0 0.0
        %378 = vmatprep.subr.mxu0 0.0
        %379 = vmatpush2.msra.mxu0 0.0
        %380 = vmatprep.subr.mxu0 0.0
        %381 = vmatpush2.msra.mxu0 0.0
        %382 = vmatprep.subr.mxu0 0.0
        %383 = vmatpush2.msra.mxu0 0.0
        %384 = vmatprep.subr.mxu0 0.0
        %385 = vmatpush2.msra.mxu0 0.0
        %386 = vmatprep.subr.mxu0 0.0
        %387 = vmatpush2.msra.mxu0 0.0
        %388 = vmatprep.subr.mxu0 0.0
        %389 = vmatpush2.msra.mxu0 0.0
        %390 = vmatprep.subr.mxu0 0.0
        %391 = vmatpush2.msra.mxu0 0.0
        %392 = vmatprep.mubr.f32.mxu0 0.0
        %393 = vmatmul.mubr.f32.gmra.mxu0 %v326
        %v394 = vpop.f32.mrf.mxu0
        %v395 = vadd.f32 %v324, %v394
        %v396 = vpop.f32.mrf.mxu0
        %397 = vdwg.mxu0
        %399 = vrot.lane.b32.xlu0 %v395, 96
        %v400 = vpop.permute.xlu0 %399
        %vm401 = vcmask 64512
        %v402 = vsel %vm401, %v395, 0
        %v404 = vsel %vm401, %v400, 0
        %406 = vmatprep.subr.mxu0 0.0
        %407 = vmatpush1.xpose.msra.mxu0 0.0
        %408 = vmatprep.subr.mxu0 0.0
        %409 = vmatpush1.xpose.msra.mxu0 0.0
        %410 = vmatprep.subr.mxu0 0.0
        %411 = vmatpush1.xpose.msra.mxu0 0.0
        %412 = vmatprep.subr.mxu0 0.0
        %413 = vmatpush1.xpose.msra.mxu0 0.0
        %414 = vmatprep.subr.mxu0 0.0
        %415 = vmatpush1.xpose.msra.mxu0 0.0
        %416 = vmatprep.subr.mxu0 0.0
        %417 = vmatpush1.xpose.msra.mxu0 0.0
        %418 = vmatprep.subr.mxu0 0.0
        %419 = vmatpush1.xpose.msra.mxu0 0.0
        %420 = vmatprep.subr.mxu0 0.0
        %421 = vmatpush1.xpose.msra.mxu0 0.0
        %422 = vmatprep.subr.mxu0 0.0
        %423 = vmatpush1.xpose.msra.mxu0 0.0
        %424 = vmatprep.subr.mxu0 0.0
        %425 = vmatpush1.xpose.msra.mxu0 0.0
        %426 = vmatprep.subr.mxu0 0.0
        %427 = vmatpush1.xpose.msra.mxu0 0.0
        %428 = vmatprep.subr.mxu0 0.0
        %429 = vmatpush1.xpose.msra.mxu0 0.0
        %430 = vmatprep.subr.mxu0 0.0
        %431 = vmatpush1.xpose.msra.mxu0 0.0
        %432 = vmatprep.subr.mxu0 0.0
        %433 = vmatpush1.xpose.msra.mxu0 0.0
        %434 = vmatprep.subr.mxu0 0.0
        %435 = vmatpush1.xpose.msra.mxu0 0.0
        %436 = vmatprep.subr.mxu0 0.0
        %437 = vmatpush1.xpose.msra.mxu0 %v404
        %438 = vmatprep.subr.mxu0 0.0
        %439 = vmatpush2.xpose.msra.mxu0 0.0
        %440 = vmatprep.subr.mxu0 0.0
        %441 = vmatpush2.xpose.msra.mxu0 0.0
        %442 = vmatprep.subr.mxu0 0.0
        %443 = vmatpush2.xpose.msra.mxu0 0.0
        %444 = vmatprep.subr.mxu0 0.0
        %445 = vmatpush2.xpose.msra.mxu0 0.0
        %446 = vmatprep.subr.mxu0 0.0
        %447 = vmatpush2.xpose.msra.mxu0 0.0
        %448 = vmatprep.subr.mxu0 0.0
        %449 = vmatpush2.xpose.msra.mxu0 0.0
        %450 = vmatprep.subr.mxu0 0.0
        %451 = vmatpush2.xpose.msra.mxu0 0.0
        %452 = vmatprep.subr.mxu0 0.0
        %453 = vmatpush2.xpose.msra.mxu0 0.0
        %454 = vmatprep.subr.mxu0 0.0
        %455 = vmatpush2.xpose.msra.mxu0 0.0
        %456 = vmatprep.subr.mxu0 0.0
        %457 = vmatpush2.xpose.msra.mxu0 0.0
        %458 = vmatprep.subr.mxu0 0.0
        %459 = vmatpush2.xpose.msra.mxu0 0.0
        %460 = vmatprep.subr.mxu0 0.0
        %461 = vmatpush2.xpose.msra.mxu0 0.0
        %462 = vmatprep.subr.mxu0 0.0
        %463 = vmatpush2.xpose.msra.mxu0 0.0
        %464 = vmatprep.subr.mxu0 0.0
        %465 = vmatpush2.xpose.msra.mxu0 0.0
        %466 = vmatprep.subr.mxu0 0.0
        %467 = vmatpush2.xpose.msra.mxu0 0.0
        %468 = vmatprep.subr.mxu0 0.0
        %469 = vmatpush2.xpose.msra.mxu0 0.0
        %470 = vmatprep.mubr.f32.mxu0 0.0
        %471 = vmatmul.mubr.f32.gmra.mxu0 %v402
        %v472 = vpop.f32.mrf.mxu0
        %v473 = vadd.f32 0.0, %v472
        %v474 = vpop.f32.mrf.mxu0
        %475 = vdwg.mxu0
        %v476 = vsel %vm401, %v473, -inf
        %477 = vmax.xlane.f32.xlu0 %v476
        %v478 = vpop.xlane.xlu0 %477
        %v479 = vsub.f32 %v473, %v478
        %v480 = vmul.f32 %v479, 1.442695
        %v481 = vpow.pop %v480
        %v482 = vsel %vm401, %v481, 0.0
        %483 = vadd.xlane.f32.xlu0 %v482
        %v484 = vpop.xlane.xlu0 %483
        %v485 = vrcp.pop %v484
        %v486 = vmul.f32 %v481, %v485
        %487 = vrot.lane.b32.xlu0 %v395, 64
        %v488 = vpop.permute.xlu0 %487
        %v491 = vsel %vm401, %v486, 0
        %493 = vmatprep.subr.mxu0 0.0
        %494 = vmatpush1.msra.mxu0 0.0
        %495 = vmatprep.subr.mxu0 0.0
        %496 = vmatpush1.msra.mxu0 0.0
        %497 = vmatprep.subr.mxu0 0.0
        %498 = vmatpush1.msra.mxu0 0.0
        %499 = vmatprep.subr.mxu0 0.0
        %500 = vmatpush1.msra.mxu0 0.0
        %501 = vmatprep.subr.mxu0 0.0
        %502 = vmatpush1.msra.mxu0 0.0
        %503 = vmatprep.subr.mxu0 0.0
        %504 = vmatpush1.msra.mxu0 0.0
        %505 = vmatprep.subr.mxu0 0.0
        %506 = vmatpush1.msra.mxu0 0.0
        %507 = vmatprep.subr.mxu0 0.0
        %508 = vmatpush1.msra.mxu0 0.0
        %509 = vmatprep.subr.mxu0 0.0
        %510 = vmatpush1.msra.mxu0 0.0
        %511 = vmatprep.subr.mxu0 0.0
        %512 = vmatpush1.msra.mxu0 0.0
        %513 = vmatprep.subr.mxu0 0.0
        %514 = vmatpush1.msra.mxu0 0.0
        %515 = vmatprep.subr.mxu0 0.0
        %516 = vmatpush1.msra.mxu0 0.0
        %517 = vmatprep.subr.mxu0 0.0
        %518 = vmatpush1.msra.mxu0 0.0
        %519 = vmatprep.subr.mxu0 0.0
        %520 = vmatpush1.msra.mxu0 0.0
        %521 = vmatprep.subr.mxu0 0.0
        %522 = vmatpush1.msra.mxu0 0.0
        %523 = vmatprep.subr.mxu0 0.0
        %524 = vmatpush1.msra.mxu0 %v488
        %525 = vmatprep.subr.mxu0 0.0
        %526 = vmatpush2.msra.mxu0 0.0
        %527 = vmatprep.subr.mxu0 0.0
        %528 = vmatpush2.msra.mxu0 0.0
        %529 = vmatprep.subr.mxu0 0.0
        %530 = vmatpush2.msra.mxu0 0.0
        %531 = vmatprep.subr.mxu0 0.0
        %532 = vmatpush2.msra.mxu0 0.0
        %533 = vmatprep.subr.mxu0 0.0
        %534 = vmatpush2.msra.mxu0 0.0
        %535 = vmatprep.subr.mxu0 0.0
        %536 = vmatpush2.msra.mxu0 0.0
        %537 = vmatprep.subr.mxu0 0.0
        %538 = vmatpush2.msra.mxu0 0.0
        %539 = vmatprep.subr.mxu0 0.0
        %540 = vmatpush2.msra.mxu0 0.0
        %541 = vmatprep.subr.mxu0 0.0
        %542 = vmatpush2.msra.mxu0 0.0
        %543 = vmatprep.subr.mxu0 0.0
        %544 = vmatpush2.msra.mxu0 0.0
        %545 = vmatprep.subr.mxu0 0.0
        %546 = vmatpush2.msra.mxu0 0.0
        %547 = vmatprep.subr.mxu0 0.0
        %548 = vmatpush2.msra.mxu0 0.0
        %549 = vmatprep.subr.mxu0 0.0
        %550 = vmatpush2.msra.mxu0 0.0
        %551 = vmatprep.subr.mxu0 0.0
        %552 = vmatpush2.msra.mxu0 0.0
        %553 = vmatprep.subr.mxu0 0.0
        %554 = vmatpush2.msra.mxu0 0.0
        %555 = vmatprep.subr.mxu0 0.0
        %556 = vmatpush2.msra.mxu0 0.0
        %557 = vmatprep.mubr.f32.mxu0 0.0
        %558 = vmatmul.mubr.f32.gmra.mxu0 %v491
        %v559 = vpop.f32.mrf.mxu0
        %v560 = vadd.f32 0.0, %v559
        %v561 = vpop.f32.mrf.mxu0
        %562 = vdwg.mxu0
        %563 = vrot.lane.b32.xlu0 %v395, 120
        %v564 = vpop.permute.xlu0 %563
        %565 = vrot.lane.b32.xlu0 %v395, 88
        %v566 = vpop.permute.xlu0 %565
        %v567 = vsel %vm401, %v564, 0
        %v569 = vsel %vm401, %v566, 0
        %571 = vmatprep.subr.mxu0 0.0
        %572 = vmatpush1.xpose.msra.mxu0 0.0
        %573 = vmatprep.subr.mxu0 0.0
        %574 = vmatpush1.xpose.msra.mxu0 0.0
        %575 = vmatprep.subr.mxu0 0.0
        %576 = vmatpush1.xpose.msra.mxu0 0.0
        %577 = vmatprep.subr.mxu0 0.0
        %578 = vmatpush1.xpose.msra.mxu0 0.0
        %579 = vmatprep.subr.mxu0 0.0
        %580 = vmatpush1.xpose.msra.mxu0 0.0
        %581 = vmatprep.subr.mxu0 0.0
        %582 = vmatpush1.xpose.msra.mxu0 0.0
        %583 = vmatprep.subr.mxu0 0.0
        %584 = vmatpush1.xpose.msra.mxu0 0.0
        %585 = vmatprep.subr.mxu0 0.0
        %586 = vmatpush1.xpose.msra.mxu0 0.0
        %587 = vmatprep.subr.mxu0 0.0
        %588 = vmatpush1.xpose.msra.mxu0 0.0
        %589 = vmatprep.subr.mxu0 0.0
        %590 = vmatpush1.xpose.msra.mxu0 0.0
        %591 = vmatprep.subr.mxu0 0.0
        %592 = vmatpush1.xpose.msra.mxu0 0.0
        %593 = vmatprep.subr.mxu0 0.0
        %594 = vmatpush1.xpose.msra.mxu0 0.0
        %595 = vmatprep.subr.mxu0 0.0
        %596 = vmatpush1.xpose.msra.mxu0 0.0
        %597 = vmatprep.subr.mxu0 0.0
        %598 = vmatpush1.xpose.msra.mxu0 0.0
        %599 = vmatprep.subr.mxu0 0.0
        %600 = vmatpush1.xpose.msra.mxu0 0.0
        %601 = vmatprep.subr.mxu0 0.0
        %602 = vmatpush1.xpose.msra.mxu0 %v569
        %603 = vmatprep.subr.mxu0 0.0
        %604 = vmatpush2.xpose.msra.mxu0 0.0
        %605 = vmatprep.subr.mxu0 0.0
        %606 = vmatpush2.xpose.msra.mxu0 0.0
        %607 = vmatprep.subr.mxu0 0.0
        %608 = vmatpush2.xpose.msra.mxu0 0.0
        %609 = vmatprep.subr.mxu0 0.0
        %610 = vmatpush2.xpose.msra.mxu0 0.0
        %611 = vmatprep.subr.mxu0 0.0
        %612 = vmatpush2.xpose.msra.mxu0 0.0
        %613 = vmatprep.subr.mxu0 0.0
        %614 = vmatpush2.xpose.msra.mxu0 0.0
        %615 = vmatprep.subr.mxu0 0.0
        %616 = vmatpush2.xpose.msra.mxu0 0.0
        %617 = vmatprep.subr.mxu0 0.0
        %618 = vmatpush2.xpose.msra.mxu0 0.0
        %619 = vmatprep.subr.mxu0 0.0
        %620 = vmatpush2.xpose.msra.mxu0 0.0
        %621 = vmatprep.subr.mxu0 0.0
        %622 = vmatpush2.xpose.msra.mxu0 0.0
        %623 = vmatprep.subr.mxu0 0.0
        %624 = vmatpush2.xpose.msra.mxu0 0.0
        %625 = vmatprep.subr.mxu0 0.0
        %626 = vmatpush2.xpose.msra.mxu0 0.0
        %627 = vmatprep.subr.mxu0 0.0
        %628 = vmatpush2.xpose.msra.mxu0 0.0
        %629 = vmatprep.subr.mxu0 0.0
        %630 = vmatpush2.xpose.msra.mxu0 0.0
        %631 = vmatprep.subr.mxu0 0.0
        %632 = vmatpush2.xpose.msra.mxu0 0.0
        %633 = vmatprep.subr.mxu0 0.0
        %634 = vmatpush2.xpose.msra.mxu0 0.0
        %635 = vmatprep.mubr.f32.mxu0 0.0
        %636 = vmatmul.mubr.f32.gmra.mxu0 %v567
        %v637 = vpop.f32.mrf.mxu0
        %v638 = vadd.f32 0.0, %v637
        %v639 = vpop.f32.mrf.mxu0
        %640 = vdwg.mxu0
        %v641 = vsel %vm401, %v638, -inf
        %642 = vmax.xlane.f32.xlu0 %v641
        %v643 = vpop.xlane.xlu0 %642
        %v644 = vsub.f32 %v638, %v643
        %v645 = vmul.f32 %v644, 1.442695
        %v646 = vpow.pop %v645
        %v647 = vsel %vm401, %v646, 0.0
        %648 = vadd.xlane.f32.xlu0 %v647
        %v649 = vpop.xlane.xlu0 %648
        %v650 = vrcp.pop %v649
        %v651 = vmul.f32 %v646, %v650
        %652 = vrot.lane.b32.xlu0 %v395, 56
        %v653 = vpop.permute.xlu0 %652
        %v656 = vsel %vm401, %v651, 0
        %658 = vmatprep.subr.mxu0 0.0
        %659 = vmatpush1.msra.mxu0 0.0
        %660 = vmatprep.subr.mxu0 0.0
        %661 = vmatpush1.msra.mxu0 0.0
        %662 = vmatprep.subr.mxu0 0.0
        %663 = vmatpush1.msra.mxu0 0.0
        %664 = vmatprep.subr.mxu0 0.0
        %665 = vmatpush1.msra.mxu0 0.0
        %666 = vmatprep.subr.mxu0 0.0
        %667 = vmatpush1.msra.mxu0 0.0
        %668 = vmatprep.subr.mxu0 0.0
        %669 = vmatpush1.msra.mxu0 0.0
        %670 = vmatprep.subr.mxu0 0.0
        %671 = vmatpush1.msra.mxu0 0.0
        %672 = vmatprep.subr.mxu0 0.0
        %673 = vmatpush1.msra.mxu0 0.0
        %674 = vmatprep.subr.mxu0 0.0
        %675 = vmatpush1.msra.mxu0 0.0
        %676 = vmatprep.subr.mxu0 0.0
        %677 = vmatpush1.msra.mxu0 0.0
        %678 = vmatprep.subr.mxu0 0.0
        %679 = vmatpush1.msra.mxu0 0.0
        %680 = vmatprep.subr.mxu0 0.0
        %681 = vmatpush1.msra.mxu0 0.0
        %682 = vmatprep.subr.mxu0 0.0
        %683 = vmatpush1.msra.mxu0 0.0
        %684 = vmatprep.subr.mxu0 0.0
        %685 = vmatpush1.msra.mxu0 0.0
        %686 = vmatprep.subr.mxu0 0.0
        %687 = vmatpush1.msra.mxu0 0.0
        %688 = vmatprep.subr.mxu0 0.0
        %689 = vmatpush1.msra.mxu0 %v653
        %690 = vmatprep.subr.mxu0 0.0
        %691 = vmatpush2.msra.mxu0 0.0
        %692 = vmatprep.subr.mxu0 0.0
        %693 = vmatpush2.msra.mxu0 0.0
        %694 = vmatprep.subr.mxu0 0.0
        %695 = vmatpush2.msra.mxu0 0.0
        %696 = vmatprep.subr.mxu0 0.0
        %697 = vmatpush2.msra.mxu0 0.0
        %698 = vmatprep.subr.mxu0 0.0
        %699 = vmatpush2.msra.mxu0 0.0
        %700 = vmatprep.subr.mxu0 0.0
        %701 = vmatpush2.msra.mxu0 0.0
        %702 = vmatprep.subr.mxu0 0.0
        %703 = vmatpush2.msra.mxu0 0.0
        %704 = vmatprep.subr.mxu0 0.0
        %705 = vmatpush2.msra.mxu0 0.0
        %706 = vmatprep.subr.mxu0 0.0
        %707 = vmatpush2.msra.mxu0 0.0
        %708 = vmatprep.subr.mxu0 0.0
        %709 = vmatpush2.msra.mxu0 0.0
        %710 = vmatprep.subr.mxu0 0.0
        %711 = vmatpush2.msra.mxu0 0.0
        %712 = vmatprep.subr.mxu0 0.0
        %713 = vmatpush2.msra.mxu0 0.0
        %714 = vmatprep.subr.mxu0 0.0
        %715 = vmatpush2.msra.mxu0 0.0
        %716 = vmatprep.subr.mxu0 0.0
        %717 = vmatpush2.msra.mxu0 0.0
        %718 = vmatprep.subr.mxu0 0.0
        %719 = vmatpush2.msra.mxu0 0.0
        %720 = vmatprep.subr.mxu0 0.0
        %721 = vmatpush2.msra.mxu0 0.0
        %722 = vmatprep.mubr.f32.mxu0 0.0
        %723 = vmatmul.mubr.f32.gmra.mxu0 %v656
        %v724 = vpop.f32.mrf.mxu0
        %v725 = vadd.f32 0.0, %v724
        %v726 = vpop.f32.mrf.mxu0
        %727 = vdwg.mxu0
        %728 = vrot.lane.b32.xlu0 %v395, 112
        %v729 = vpop.permute.xlu0 %728
        %730 = vrot.lane.b32.xlu0 %v395, 80
        %v731 = vpop.permute.xlu0 %730
        %v732 = vsel %vm401, %v729, 0
        %v734 = vsel %vm401, %v731, 0
        %736 = vmatprep.subr.mxu0 0.0
        %737 = vmatpush1.xpose.msra.mxu0 0.0
        %738 = vmatprep.subr.mxu0 0.0
        %739 = vmatpush1.xpose.msra.mxu0 0.0
        %740 = vmatprep.subr.mxu0 0.0
        %741 = vmatpush1.xpose.msra.mxu0 0.0
        %742 = vmatprep.subr.mxu0 0.0
        %743 = vmatpush1.xpose.msra.mxu0 0.0
        %744 = vmatprep.subr.mxu0 0.0
        %745 = vmatpush1.xpose.msra.mxu0 0.0
        %746 = vmatprep.subr.mxu0 0.0
        %747 = vmatpush1.xpose.msra.mxu0 0.0
        %748 = vmatprep.subr.mxu0 0.0
        %749 = vmatpush1.xpose.msra.mxu0 0.0
        %750 = vmatprep.subr.mxu0 0.0
        %751 = vmatpush1.xpose.msra.mxu0 0.0
        %752 = vmatprep.subr.mxu0 0.0
        %753 = vmatpush1.xpose.msra.mxu0 0.0
        %754 = vmatprep.subr.mxu0 0.0
        %755 = vmatpush1.xpose.msra.mxu0 0.0
        %756 = vmatprep.subr.mxu0 0.0
        %757 = vmatpush1.xpose.msra.mxu0 0.0
        %758 = vmatprep.subr.mxu0 0.0
        %759 = vmatpush1.xpose.msra.mxu0 0.0
        %760 = vmatprep.subr.mxu0 0.0
        %761 = vmatpush1.xpose.msra.mxu0 0.0
        %762 = vmatprep.subr.mxu0 0.0
        %763 = vmatpush1.xpose.msra.mxu0 0.0
        %764 = vmatprep.subr.mxu0 0.0
        %765 = vmatpush1.xpose.msra.mxu0 0.0
        %766 = vmatprep.subr.mxu0 0.0
        %767 = vmatpush1.xpose.msra.mxu0 %v734
        %768 = vmatprep.subr.mxu0 0.0
        %769 = vmatpush2.xpose.msra.mxu0 0.0
        %770 = vmatprep.subr.mxu0 0.0
        %771 = vmatpush2.xpose.msra.mxu0 0.0
        %772 = vmatprep.subr.mxu0 0.0
        %773 = vmatpush2.xpose.msra.mxu0 0.0
        %774 = vmatprep.subr.mxu0 0.0
        %775 = vmatpush2.xpose.msra.mxu0 0.0
        %776 = vmatprep.subr.mxu0 0.0
        %777 = vmatpush2.xpose.msra.mxu0 0.0
        %778 = vmatprep.subr.mxu0 0.0
        %779 = vmatpush2.xpose.msra.mxu0 0.0
        %780 = vmatprep.subr.mxu0 0.0
        %781 = vmatpush2.xpose.msra.mxu0 0.0
        %782 = vmatprep.subr.mxu0 0.0
        %783 = vmatpush2.xpose.msra.mxu0 0.0
        %784 = vmatprep.subr.mxu0 0.0
        %785 = vmatpush2.xpose.msra.mxu0 0.0
        %786 = vmatprep.subr.mxu0 0.0
        %787 = vmatpush2.xpose.msra.mxu0 0.0
        %788 = vmatprep.subr.mxu0 0.0
        %789 = vmatpush2.xpose.msra.mxu0 0.0
        %790 = vmatprep.subr.mxu0 0.0
        %791 = vmatpush2.xpose.msra.mxu0 0.0
        %792 = vmatprep.subr.mxu0 0.0
        %793 = vmatpush2.xpose.msra.mxu0 0.0
        %794 = vmatprep.subr.mxu0 0.0
        %795 = vmatpush2.xpose.msra.mxu0 0.0
        %796 = vmatprep.subr.mxu0 0.0
        %797 = vmatpush2.xpose.msra.mxu0 0.0
        %798 = vmatprep.subr.mxu0 0.0
        %799 = vmatpush2.xpose.msra.mxu0 0.0
        %800 = vmatprep.mubr.f32.mxu0 0.0
        %801 = vmatmul.mubr.f32.gmra.mxu0 %v732
        %v802 = vpop.f32.mrf.mxu0
        %v803 = vadd.f32 0.0, %v802
        %v804 = vpop.f32.mrf.mxu0
        %805 = vdwg.mxu0
        %v806 = vsel %vm401, %v803, -inf
        %807 = vmax.xlane.f32.xlu0 %v806
        %v808 = vpop.xlane.xlu0 %807
        %v809 = vsub.f32 %v803, %v808
        %v810 = vmul.f32 %v809, 1.442695
        %v811 = vpow.pop %v810
        %v812 = vsel %vm401, %v811, 0.0
        %813 = vadd.xlane.f32.xlu0 %v812
        %v814 = vpop.xlane.xlu0 %813
        %v815 = vrcp.pop %v814
        %v816 = vmul.f32 %v811, %v815
        %817 = vrot.lane.b32.xlu0 %v395, 48
        %v818 = vpop.permute.xlu0 %817
        %v821 = vsel %vm401, %v816, 0
        %823 = vmatprep.subr.mxu0 0.0
        %824 = vmatpush1.msra.mxu0 0.0
        %825 = vmatprep.subr.mxu0 0.0
        %826 = vmatpush1.msra.mxu0 0.0
        %827 = vmatprep.subr.mxu0 0.0
        %828 = vmatpush1.msra.mxu0 0.0
        %829 = vmatprep.subr.mxu0 0.0
        %830 = vmatpush1.msra.mxu0 0.0
        %831 = vmatprep.subr.mxu0 0.0
        %832 = vmatpush1.msra.mxu0 0.0
        %833 = vmatprep.subr.mxu0 0.0
        %834 = vmatpush1.msra.mxu0 0.0
        %835 = vmatprep.subr.mxu0 0.0
        %836 = vmatpush1.msra.mxu0 0.0
        %837 = vmatprep.subr.mxu0 0.0
        %838 = vmatpush1.msra.mxu0 0.0
        %839 = vmatprep.subr.mxu0 0.0
        %840 = vmatpush1.msra.mxu0 0.0
        %841 = vmatprep.subr.mxu0 0.0
        %842 = vmatpush1.msra.mxu0 0.0
        %843 = vmatprep.subr.mxu0 0.0
        %844 = vmatpush1.msra.mxu0 0.0
        %845 = vmatprep.subr.mxu0 0.0
        %846 = vmatpush1.msra.mxu0 0.0
        %847 = vmatprep.subr.mxu0 0.0
        %848 = vmatpush1.msra.mxu0 0.0
        %849 = vmatprep.subr.mxu0 0.0
        %850 = vmatpush1.msra.mxu0 0.0
        %851 = vmatprep.subr.mxu0 0.0
        %852 = vmatpush1.msra.mxu0 0.0
        %853 = vmatprep.subr.mxu0 0.0
        %854 = vmatpush1.msra.mxu0 %v818
        %855 = vmatprep.subr.mxu0 0.0
        %856 = vmatpush2.msra.mxu0 0.0
        %857 = vmatprep.subr.mxu0 0.0
        %858 = vmatpush2.msra.mxu0 0.0
        %859 = vmatprep.subr.mxu0 0.0
        %860 = vmatpush2.msra.mxu0 0.0
        %861 = vmatprep.subr.mxu0 0.0
        %862 = vmatpush2.msra.mxu0 0.0
        %863 = vmatprep.subr.mxu0 0.0
        %864 = vmatpush2.msra.mxu0 0.0
        %865 = vmatprep.subr.mxu0 0.0
        %866 = vmatpush2.msra.mxu0 0.0
        %867 = vmatprep.subr.mxu0 0.0
        %868 = vmatpush2.msra.mxu0 0.0
        %869 = vmatprep.subr.mxu0 0.0
        %870 = vmatpush2.msra.mxu0 0.0
        %871 = vmatprep.subr.mxu0 0.0
        %872 = vmatpush2.msra.mxu0 0.0
        %873 = vmatprep.subr.mxu0 0.0
        %874 = vmatpush2.msra.mxu0 0.0
        %875 = vmatprep.subr.mxu0 0.0
        %876 = vmatpush2.msra.mxu0 0.0
        %877 = vmatprep.subr.mxu0 0.0
        %878 = vmatpush2.msra.mxu0 0.0
        %879 = vmatprep.subr.mxu0 0.0
        %880 = vmatpush2.msra.mxu0 0.0
        %881 = vmatprep.subr.mxu0 0.0
        %882 = vmatpush2.msra.mxu0 0.0
        %883 = vmatprep.subr.mxu0 0.0
        %884 = vmatpush2.msra.mxu0 0.0
        %885 = vmatprep.subr.mxu0 0.0
        %886 = vmatpush2.msra.mxu0 0.0
        %887 = vmatprep.mubr.f32.mxu0 0.0
        %888 = vmatmul.mubr.f32.gmra.mxu0 %v821
        %v889 = vpop.f32.mrf.mxu0
        %v890 = vadd.f32 0.0, %v889
        %v891 = vpop.f32.mrf.mxu0
        %892 = vdwg.mxu0
        %893 = vrot.lane.b32.xlu0 %v395, 104
        %v894 = vpop.permute.xlu0 %893
        %895 = vrot.lane.b32.xlu0 %v395, 72
        %v896 = vpop.permute.xlu0 %895
        %v897 = vsel %vm401, %v894, 0
        %v899 = vsel %vm401, %v896, 0
        %901 = vmatprep.subr.mxu0 0.0
        %902 = vmatpush1.xpose.msra.mxu0 0.0
        %903 = vmatprep.subr.mxu0 0.0
        %904 = vmatpush1.xpose.msra.mxu0 0.0
        %905 = vmatprep.subr.mxu0 0.0
        %906 = vmatpush1.xpose.msra.mxu0 0.0
        %907 = vmatprep.subr.mxu0 0.0
        %908 = vmatpush1.xpose.msra.mxu0 0.0
        %909 = vmatprep.subr.mxu0 0.0
        %910 = vmatpush1.xpose.msra.mxu0 0.0
        %911 = vmatprep.subr.mxu0 0.0
        %912 = vmatpush1.xpose.msra.mxu0 0.0
        %913 = vmatprep.subr.mxu0 0.0
        %914 = vmatpush1.xpose.msra.mxu0 0.0
        %915 = vmatprep.subr.mxu0 0.0
        %916 = vmatpush1.xpose.msra.mxu0 0.0
        %917 = vmatprep.subr.mxu0 0.0
        %918 = vmatpush1.xpose.msra.mxu0 0.0
        %919 = vmatprep.subr.mxu0 0.0
        %920 = vmatpush1.xpose.msra.mxu0 0.0
        %921 = vmatprep.subr.mxu0 0.0
        %922 = vmatpush1.xpose.msra.mxu0 0.0
        %923 = vmatprep.subr.mxu0 0.0
        %924 = vmatpush1.xpose.msra.mxu0 0.0
        %925 = vmatprep.subr.mxu0 0.0
        %926 = vmatpush1.xpose.msra.mxu0 0.0
        %927 = vmatprep.subr.mxu0 0.0
        %928 = vmatpush1.xpose.msra.mxu0 0.0
        %929 = vmatprep.subr.mxu0 0.0
        %930 = vmatpush1.xpose.msra.mxu0 0.0
        %931 = vmatprep.subr.mxu0 0.0
        %932 = vmatpush1.xpose.msra.mxu0 %v899
        %933 = vmatprep.subr.mxu0 0.0
        %934 = vmatpush2.xpose.msra.mxu0 0.0
        %935 = vmatprep.subr.mxu0 0.0
        %936 = vmatpush2.xpose.msra.mxu0 0.0
        %937 = vmatprep.subr.mxu0 0.0
        %938 = vmatpush2.xpose.msra.mxu0 0.0
        %939 = vmatprep.subr.mxu0 0.0
        %940 = vmatpush2.xpose.msra.mxu0 0.0
        %941 = vmatprep.subr.mxu0 0.0
        %942 = vmatpush2.xpose.msra.mxu0 0.0
        %943 = vmatprep.subr.mxu0 0.0
        %944 = vmatpush2.xpose.msra.mxu0 0.0
        %945 = vmatprep.subr.mxu0 0.0
        %946 = vmatpush2.xpose.msra.mxu0 0.0
        %947 = vmatprep.subr.mxu0 0.0
        %948 = vmatpush2.xpose.msra.mxu0 0.0
        %949 = vmatprep.subr.mxu0 0.0
        %950 = vmatpush2.xpose.msra.mxu0 0.0
        %951 = vmatprep.subr.mxu0 0.0
        %952 = vmatpush2.xpose.msra.mxu0 0.0
        %953 = vmatprep.subr.mxu0 0.0
        %954 = vmatpush2.xpose.msra.mxu0 0.0
        %955 = vmatprep.subr.mxu0 0.0
        %956 = vmatpush2.xpose.msra.mxu0 0.0
        %957 = vmatprep.subr.mxu0 0.0
        %958 = vmatpush2.xpose.msra.mxu0 0.0
        %959 = vmatprep.subr.mxu0 0.0
        %960 = vmatpush2.xpose.msra.mxu0 0.0
        %961 = vmatprep.subr.mxu0 0.0
        %962 = vmatpush2.xpose.msra.mxu0 0.0
        %963 = vmatprep.subr.mxu0 0.0
        %964 = vmatpush2.xpose.msra.mxu0 0.0
        %965 = vmatprep.mubr.f32.mxu0 0.0
        %966 = vmatmul.mubr.f32.gmra.mxu0 %v897
        %v967 = vpop.f32.mrf.mxu0
        %v968 = vadd.f32 0.0, %v967
        %v969 = vpop.f32.mrf.mxu0
        %970 = vdwg.mxu0
        %v971 = vsel %vm401, %v968, -inf
        %972 = vmax.xlane.f32.xlu0 %v971
        %v973 = vpop.xlane.xlu0 %972
        %v974 = vsub.f32 %v968, %v973
        %v975 = vmul.f32 %v974, 1.442695
        %v976 = vpow.pop %v975
        %v977 = vsel %vm401, %v976, 0.0
        %978 = vadd.xlane.f32.xlu0 %v977
        %v979 = vpop.xlane.xlu0 %978
        %v980 = vrcp.pop %v979
        %v981 = vmul.f32 %v976, %v980
        %982 = vrot.lane.b32.xlu0 %v395, 40
        %v983 = vpop.permute.xlu0 %982
        %v986 = vsel %vm401, %v981, 0
        %988 = vmatprep.subr.mxu0 0.0
        %989 = vmatpush1.msra.mxu0 0.0
        %990 = vmatprep.subr.mxu0 0.0
        %991 = vmatpush1.msra.mxu0 0.0
        %992 = vmatprep.subr.mxu0 0.0
        %993 = vmatpush1.msra.mxu0 0.0
        %994 = vmatprep.subr.mxu0 0.0
        %995 = vmatpush1.msra.mxu0 0.0
        %996 = vmatprep.subr.mxu0 0.0
        %997 = vmatpush1.msra.mxu0 0.0
        %998 = vmatprep.subr.mxu0 0.0
        %999 = vmatpush1.msra.mxu0 0.0
        %1000 = vmatprep.subr.mxu0 0.0
        %1001 = vmatpush1.msra.mxu0 0.0
        %1002 = vmatprep.subr.mxu0 0.0
        %1003 = vmatpush1.msra.mxu0 0.0
        %1004 = vmatprep.subr.mxu0 0.0
        %1005 = vmatpush1.msra.mxu0 0.0
        %1006 = vmatprep.subr.mxu0 0.0
        %1007 = vmatpush1.msra.mxu0 0.0
        %1008 = vmatprep.subr.mxu0 0.0
        %1009 = vmatpush1.msra.mxu0 0.0
        %1010 = vmatprep.subr.mxu0 0.0
        %1011 = vmatpush1.msra.mxu0 0.0
        %1012 = vmatprep.subr.mxu0 0.0
        %1013 = vmatpush1.msra.mxu0 0.0
        %1014 = vmatprep.subr.mxu0 0.0
        %1015 = vmatpush1.msra.mxu0 0.0
        %1016 = vmatprep.subr.mxu0 0.0
        %1017 = vmatpush1.msra.mxu0 0.0
        %1018 = vmatprep.subr.mxu0 0.0
        %1019 = vmatpush1.msra.mxu0 %v983
        %1020 = vmatprep.subr.mxu0 0.0
        %1021 = vmatpush2.msra.mxu0 0.0
        %1022 = vmatprep.subr.mxu0 0.0
        %1023 = vmatpush2.msra.mxu0 0.0
        %1024 = vmatprep.subr.mxu0 0.0
        %1025 = vmatpush2.msra.mxu0 0.0
        %1026 = vmatprep.subr.mxu0 0.0
        %1027 = vmatpush2.msra.mxu0 0.0
        %1028 = vmatprep.subr.mxu0 0.0
        %1029 = vmatpush2.msra.mxu0 0.0
        %1030 = vmatprep.subr.mxu0 0.0
        %1031 = vmatpush2.msra.mxu0 0.0
        %1032 = vmatprep.subr.mxu0 0.0
        %1033 = vmatpush2.msra.mxu0 0.0
        %1034 = vmatprep.subr.mxu0 0.0
        %1035 = vmatpush2.msra.mxu0 0.0
        %1036 = vmatprep.subr.mxu0 0.0
        %1037 = vmatpush2.msra.mxu0 0.0
        %1038 = vmatprep.subr.mxu0 0.0
        %1039 = vmatpush2.msra.mxu0 0.0
        %1040 = vmatprep.subr.mxu0 0.0
        %1041 = vmatpush2.msra.mxu0 0.0
        %1042 = vmatprep.subr.mxu0 0.0
        %1043 = vmatpush2.msra.mxu0 0.0
        %1044 = vmatprep.subr.mxu0 0.0
        %1045 = vmatpush2.msra.mxu0 0.0
        %1046 = vmatprep.subr.mxu0 0.0
        %1047 = vmatpush2.msra.mxu0 0.0
        %1048 = vmatprep.subr.mxu0 0.0
        %1049 = vmatpush2.msra.mxu0 0.0
        %1050 = vmatprep.subr.mxu0 0.0
        %1051 = vmatpush2.msra.mxu0 0.0
        %1052 = vmatprep.mubr.f32.mxu0 0.0
        %1053 = vmatmul.mubr.f32.gmra.mxu0 %v986
        %v1054 = vpop.f32.mrf.mxu0
        %v1055 = vadd.f32 0.0, %v1054
        %v1056 = vpop.f32.mrf.mxu0
        %1057 = vdwg.mxu0
        %1059 = vrot.lane.b32.xlu0 %v725, 8
        %v1060 = vpop.permute.xlu0 %1059
        %1063 = vrot.lane.b32.xlu0 %v890, 16
        %v1064 = vpop.permute.xlu0 %1063
        %1067 = vrot.lane.b32.xlu0 %v1055, 24
        %v1068 = vpop.permute.xlu0 %1067
        %v1070 = vsel %vm401, %v560, %v1060
        %vm1071 = vcmask 130048
        %v1072 = vsel %vm1071, %v1070, %v1064
        %vm1073 = vcmask 195584
        %v1074 = vsel %vm1073, %v1072, %v1068
        %v1075 = vlaneseq
        %v1076 = vshrl.u32 %v1075, 7
        %v1077 = vsub.s32 0, %v1076
        %v1078 = vrot.slane %v294, %v1077
        %v1080 = vsel %vm186, %v1074, 0
        %1082 = vmatprep.subr.mxu0 0.0
        %1083 = vmatpush1.msra.mxu0 0.0
        %1084 = vmatprep.subr.mxu0 0.0
        %1085 = vmatpush1.msra.mxu0 0.0
        %1086 = vmatprep.subr.mxu0 0.0
        %1087 = vmatpush1.msra.mxu0 0.0
        %1088 = vmatprep.subr.mxu0 0.0
        %1089 = vmatpush1.msra.mxu0 0.0
        %1090 = vmatprep.subr.mxu0 0.0
        %1091 = vmatpush1.msra.mxu0 0.0
        %1092 = vmatprep.subr.mxu0 0.0
        %1093 = vmatpush1.msra.mxu0 0.0
        %1094 = vmatprep.subr.mxu0 0.0
        %1095 = vmatpush1.msra.mxu0 0.0
        %1096 = vmatprep.subr.mxu0 0.0
        %1097 = vmatpush1.msra.mxu0 0.0
        %1098 = vmatprep.subr.mxu0 0.0
        %1099 = vmatpush1.msra.mxu0 0.0
        %1100 = vmatprep.subr.mxu0 0.0
        %1101 = vmatpush1.msra.mxu0 0.0
        %1102 = vmatprep.subr.mxu0 0.0
        %1103 = vmatpush1.msra.mxu0 0.0
        %1104 = vmatprep.subr.mxu0 0.0
        %1105 = vmatpush1.msra.mxu0 0.0
        %1106 = vmatprep.subr.mxu0 0.0
        %1107 = vmatpush1.msra.mxu0 %v293
        %1108 = vmatprep.subr.mxu0 0.0
        %1109 = vmatpush1.msra.mxu0 %v292
        %1110 = vmatprep.subr.mxu0 0.0
        %1111 = vmatpush1.msra.mxu0 %v291
        %1112 = vmatprep.subr.mxu0 0.0
        %1113 = vmatpush1.msra.mxu0 %v290
        %1114 = vmatprep.subr.mxu0 0.0
        %1115 = vmatpush2.msra.mxu0 0.0
        %1116 = vmatprep.subr.mxu0 0.0
        %1117 = vmatpush2.msra.mxu0 0.0
        %1118 = vmatprep.subr.mxu0 0.0
        %1119 = vmatpush2.msra.mxu0 0.0
        %1120 = vmatprep.subr.mxu0 0.0
        %1121 = vmatpush2.msra.mxu0 0.0
        %1122 = vmatprep.subr.mxu0 0.0
        %1123 = vmatpush2.msra.mxu0 0.0
        %1124 = vmatprep.subr.mxu0 0.0
        %1125 = vmatpush2.msra.mxu0 0.0
        %1126 = vmatprep.subr.mxu0 0.0
        %1127 = vmatpush2.msra.mxu0 0.0
        %1128 = vmatprep.subr.mxu0 0.0
        %1129 = vmatpush2.msra.mxu0 0.0
        %1130 = vmatprep.subr.mxu0 0.0
        %1131 = vmatpush2.msra.mxu0 0.0
        %1132 = vmatprep.subr.mxu0 0.0
        %1133 = vmatpush2.msra.mxu0 0.0
        %1134 = vmatprep.subr.mxu0 0.0
        %1135 = vmatpush2.msra.mxu0 0.0
        %1136 = vmatprep.subr.mxu0 0.0
        %1137 = vmatpush2.msra.mxu0 0.0
        %1138 = vmatprep.subr.mxu0 0.0
        %1139 = vmatpush2.msra.mxu0 0.0
        %1140 = vmatprep.subr.mxu0 0.0
        %1141 = vmatpush2.msra.mxu0 0.0
        %1142 = vmatprep.subr.mxu0 0.0
        %1143 = vmatpush2.msra.mxu0 0.0
        %1144 = vmatprep.subr.mxu0 0.0
        %1145 = vmatpush2.msra.mxu0 0.0
        %1146 = vmatprep.mubr.f32.mxu0 0.0
        %1147 = vmatmul.mubr.f32.gmra.mxu0 %v1080
        %v1148 = vpop.f32.mrf.mxu0
        %v1149 = vadd.f32 %v1078, %v1148
        %v1150 = vpop.f32.mrf.mxu0
        %1151 = vdwg.mxu0
        %v1152 = vadd.f32 %v284, %v1149
        %v1153 = vsel %vm186, %v1152, 0.0
        %1154 = vadd.xlane.f32.xlu0 %v1153
        %v1155 = vpop.xlane.xlu0 %1154
        %v1156 = vmul.f32 %v1155, %v263
        %v1157 = vsub.f32 %v1152, %v1156
        %v1158 = vmul.f32 %v1157, %v1157
        %v1159 = vsel %vm186, %v1158, 0.0
        %1160 = vadd.xlane.f32.xlu0 %v1159
        %v1161 = vpop.xlane.xlu0 %1160
        %v1162 = vmul.f32 %v1161, %v263
        %v1163 = vadd.f32 %v1162, 1e-05
        %v1164 = vrsqrt.pop %v1163
        %v1165 = vmul.f32 %v1157, %v1164
        %v1166 = vlaneseq
        %v1167 = vshrl.u32 %v1166, 7
        %v1168 = vsub.s32 0, %v1167
        %v1169 = vrot.slane %v317, %v1168
        %v1170 = vmul.f32 %v1165, %v1169
        %v1171 = vlaneseq
        %v1172 = vshrl.u32 %v1171, 7
        %v1173 = vsub.s32 0, %v1172
        %v1174 = vrot.slane %v318, %v1173
        %v1175 = vadd.f32 %v1170, %v1174
        %v1176 = vlaneseq
        %v1177 = vshrl.u32 %v1176, 7
        %v1178 = vsub.s32 0, %v1177
        %v1179 = vrot.slane %v299, %v1178
        %v1181 = vsel %vm186, %v1175, 0
        %1183 = vmatprep.subr.mxu0 0.0
        %1184 = vmatpush1.msra.mxu0 0.0
        %1185 = vmatprep.subr.mxu0 0.0
        %1186 = vmatpush1.msra.mxu0 0.0
        %1187 = vmatprep.subr.mxu0 0.0
        %1188 = vmatpush1.msra.mxu0 0.0
        %1189 = vmatprep.subr.mxu0 0.0
        %1190 = vmatpush1.msra.mxu0 0.0
        %1191 = vmatprep.subr.mxu0 0.0
        %1192 = vmatpush1.msra.mxu0 0.0
        %1193 = vmatprep.subr.mxu0 0.0
        %1194 = vmatpush1.msra.mxu0 0.0
        %1195 = vmatprep.subr.mxu0 0.0
        %1196 = vmatpush1.msra.mxu0 0.0
        %1197 = vmatprep.subr.mxu0 0.0
        %1198 = vmatpush1.msra.mxu0 0.0
        %1199 = vmatprep.subr.mxu0 0.0
        %1200 = vmatpush1.msra.mxu0 0.0
        %1201 = vmatprep.subr.mxu0 0.0
        %1202 = vmatpush1.msra.mxu0 0.0
        %1203 = vmatprep.subr.mxu0 0.0
        %1204 = vmatpush1.msra.mxu0 0.0
        %1205 = vmatprep.subr.mxu0 0.0
        %1206 = vmatpush1.msra.mxu0 0.0
        %1207 = vmatprep.subr.mxu0 0.0
        %1208 = vmatpush1.msra.mxu0 %v298
        %1209 = vmatprep.subr.mxu0 0.0
        %1210 = vmatpush1.msra.mxu0 %v297
        %1211 = vmatprep.subr.mxu0 0.0
        %1212 = vmatpush1.msra.mxu0 %v296
        %1213 = vmatprep.subr.mxu0 0.0
        %1214 = vmatpush1.msra.mxu0 %v295
        %1215 = vmatprep.subr.mxu0 0.0
        %1216 = vmatpush2.msra.mxu0 0.0
        %1217 = vmatprep.subr.mxu0 0.0
        %1218 = vmatpush2.msra.mxu0 0.0
        %1219 = vmatprep.subr.mxu0 0.0
        %1220 = vmatpush2.msra.mxu0 0.0
        %1221 = vmatprep.subr.mxu0 0.0
        %1222 = vmatpush2.msra.mxu0 0.0
        %1223 = vmatprep.subr.mxu0 0.0
        %1224 = vmatpush2.msra.mxu0 0.0
        %1225 = vmatprep.subr.mxu0 0.0
        %1226 = vmatpush2.msra.mxu0 0.0
        %1227 = vmatprep.subr.mxu0 0.0
        %1228 = vmatpush2.msra.mxu0 0.0
        %1229 = vmatprep.subr.mxu0 0.0
        %1230 = vmatpush2.msra.mxu0 0.0
        %1231 = vmatprep.subr.mxu0 0.0
        %1232 = vmatpush2.msra.mxu0 0.0
        %1233 = vmatprep.subr.mxu0 0.0
        %1234 = vmatpush2.msra.mxu0 0.0
        %1235 = vmatprep.subr.mxu0 0.0
        %1236 = vmatpush2.msra.mxu0 0.0
        %1237 = vmatprep.subr.mxu0 0.0
        %1238 = vmatpush2.msra.mxu0 0.0
        %1239 = vmatprep.subr.mxu0 0.0
        %1240 = vmatpush2.msra.mxu0 0.0
        %1241 = vmatprep.subr.mxu0 0.0
        %1242 = vmatpush2.msra.mxu0 0.0
        %1243 = vmatprep.subr.mxu0 0.0
        %1244 = vmatpush2.msra.mxu0 0.0
        %1245 = vmatprep.subr.mxu0 0.0
        %1246 = vmatpush2.msra.mxu0 0.0
        %1247 = vmatprep.mubr.f32.mxu0 0.0
        %1248 = vmatmul.mubr.f32.gmra.mxu0 %v1181
        %v1249 = vpop.f32.mrf.mxu0
        %v1250 = vadd.f32 %v1179, %v1249
        %v1251 = vpop.f32.mrf.mxu0
        %1252 = vdwg.mxu0
        %v1253 = vmax.f32 %v1250, 0.0
        %v1254 = vlaneseq
        %v1255 = vshrl.u32 %v1254, 7
        %v1256 = vsub.s32 0, %v1255
        %v1257 = vrot.slane %v316, %v1256
        %1258 = vmatprep.subr.mxu0 0.0
        %1259 = vmatpush1.msra.mxu0 %v315
        %1260 = vmatprep.subr.mxu0 0.0
        %1261 = vmatpush1.msra.mxu0 %v314
        %1262 = vmatprep.subr.mxu0 0.0
        %1263 = vmatpush1.msra.mxu0 %v313
        %1264 = vmatprep.subr.mxu0 0.0
        %1265 = vmatpush1.msra.mxu0 %v312
        %1266 = vmatprep.subr.mxu0 0.0
        %1267 = vmatpush1.msra.mxu0 %v311
        %1268 = vmatprep.subr.mxu0 0.0
        %1269 = vmatpush1.msra.mxu0 %v310
        %1270 = vmatprep.subr.mxu0 0.0
        %1271 = vmatpush1.msra.mxu0 %v309
        %1272 = vmatprep.subr.mxu0 0.0
        %1273 = vmatpush1.msra.mxu0 %v308
        %1274 = vmatprep.subr.mxu0 0.0
        %1275 = vmatpush1.msra.mxu0 %v307
        %1276 = vmatprep.subr.mxu0 0.0
        %1277 = vmatpush1.msra.mxu0 %v306
        %1278 = vmatprep.subr.mxu0 0.0
        %1279 = vmatpush1.msra.mxu0 %v305
        %1280 = vmatprep.subr.mxu0 0.0
        %1281 = vmatpush1.msra.mxu0 %v304
        %1282 = vmatprep.subr.mxu0 0.0
        %1283 = vmatpush1.msra.mxu0 %v303
        %1284 = vmatprep.subr.mxu0 0.0
        %1285 = vmatpush1.msra.mxu0 %v302
        %1286 = vmatprep.subr.mxu0 0.0
        %1287 = vmatpush1.msra.mxu0 %v301
        %1288 = vmatprep.subr.mxu0 0.0
        %1289 = vmatpush1.msra.mxu0 %v300
        %1290 = vmatprep.subr.mxu0 0.0
        %1291 = vmatpush2.msra.mxu0 0.0
        %1292 = vmatprep.subr.mxu0 0.0
        %1293 = vmatpush2.msra.mxu0 0.0
        %1294 = vmatprep.subr.mxu0 0.0
        %1295 = vmatpush2.msra.mxu0 0.0
        %1296 = vmatprep.subr.mxu0 0.0
        %1297 = vmatpush2.msra.mxu0 0.0
        %1298 = vmatprep.subr.mxu0 0.0
        %1299 = vmatpush2.msra.mxu0 0.0
        %1300 = vmatprep.subr.mxu0 0.0
        %1301 = vmatpush2.msra.mxu0 0.0
        %1302 = vmatprep.subr.mxu0 0.0
        %1303 = vmatpush2.msra.mxu0 0.0
        %1304 = vmatprep.subr.mxu0 0.0
        %1305 = vmatpush2.msra.mxu0 0.0
        %1306 = vmatprep.subr.mxu0 0.0
        %1307 = vmatpush2.msra.mxu0 0.0
        %1308 = vmatprep.subr.mxu0 0.0
        %1309 = vmatpush2.msra.mxu0 0.0
        %1310 = vmatprep.subr.mxu0 0.0
        %1311 = vmatpush2.msra.mxu0 0.0
        %1312 = vmatprep.subr.mxu0 0.0
        %1313 = vmatpush2.msra.mxu0 0.0
        %1314 = vmatprep.subr.mxu0 0.0
        %1315 = vmatpush2.msra.mxu0 0.0
        %1316 = vmatprep.subr.mxu0 0.0
        %1317 = vmatpush2.msra.mxu0 0.0
        %1318 = vmatprep.subr.mxu0 0.0
        %1319 = vmatpush2.msra.mxu0 0.0
        %1320 = vmatprep.subr.mxu0 0.0
        %1321 = vmatpush2.msra.mxu0 0.0
        %1322 = vmatprep.mubr.f32.mxu0 0.0
        %1323 = vmatmul.mubr.f32.gmra.mxu0 %v1253
        %v1324 = vpop.f32.mrf.mxu0
        %v1325 = vadd.f32 %v1257, %v1324
        %v1326 = vpop.f32.mrf.mxu0
        %1327 = vdwg.mxu0
        %v1328 = vadd.f32 %v1175, %v1325
        %v1329 = vsel %vm186, %v1328, 0.0
        %1330 = vadd.xlane.f32.xlu0 %v1329
        %v1331 = vpop.xlane.xlu0 %1330
        %v1332 = vmul.f32 %v1331, %v263
        %v1333 = vsub.f32 %v1328, %v1332
        %v1334 = vmul.f32 %v1333, %v1333
        %v1335 = vsel %vm186, %v1334, 0.0
        %1336 = vadd.xlane.f32.xlu0 %v1335
        %v1337 = vpop.xlane.xlu0 %1336
        %v1338 = vmul.f32 %v1337, %v263
        %v1339 = vadd.f32 %v1338, 1e-05
        %v1340 = vrsqrt.pop %v1339
        %v1341 = vmul.f32 %v1333, %v1340
        %v1342 = vlaneseq
        %v1343 = vshrl.u32 %v1342, 7
        %v1344 = vsub.s32 0, %v1343
        %v1345 = vrot.slane %v319, %v1344
        %v1346 = vmul.f32 %v1341, %v1345
        %v1347 = vlaneseq
        %v1348 = vshrl.u32 %v1347, 7
        %v1349 = vsub.s32 0, %v1348
        %v1350 = vrot.slane %v320, %v1349
        %v1351 = vadd.f32 %v1346, %v1350
        %v1352 = vld [vmem:[#allocation5 + $0x100] sm:$0xff]
        %v1353 = vld [vmem:[#allocation5 + $0x108] sm:$0xff]
        %v1354 = vld [vmem:[#allocation5 + $0x110] sm:$0xff]
        %v1355 = vld [vmem:[#allocation5 + $0x118] sm:$0xff]
        %v1356 = vld [vmem:[#allocation5 + $0x30b] sm:$0x1]
        %v1357 = vld [vmem:[#allocation5 + $0x120] sm:$0xff]
        %v1358 = vld [vmem:[#allocation5 + $0x128] sm:$0xff]
        %v1359 = vld [vmem:[#allocation5 + $0x130] sm:$0xff]
        %v1360 = vld [vmem:[#allocation5 + $0x138] sm:$0xff]
        %v1361 = vld [vmem:[#allocation5 + $0x30c] sm:$0x1]
        %v1362 = vld [vmem:[#allocation5 + $0x140] sm:$0xff]
        %v1363 = vld [vmem:[#allocation5 + $0x148] sm:$0xff]
        %v1364 = vld [vmem:[#allocation5 + $0x150] sm:$0xff]
        %v1365 = vld [vmem:[#allocation5 + $0x158] sm:$0xff]
        %v1366 = vld [vmem:[#allocation5 + $0x30d] sm:$0x1]
        %v1367 = vld [vmem:[#allocation5 + $0x160] sm:$0xff]
        %v1368 = vld [vmem:[#allocation5 + $0x168] sm:$0xff]
        %v1369 = vld [vmem:[#allocation5 + $0x170] sm:$0xff]
        %v1370 = vld [vmem:[#allocation5 + $0x178] sm:$0xff]
        %v1371 = vld [vmem:[#allocation5 + $0x180] sm:$0xff]
        %v1372 = vld [vmem:[#allocation5 + $0x188] sm:$0xff]
        %v1373 = vld [vmem:[#allocation5 + $0x190] sm:$0xff]
        %v1374 = vld [vmem:[#allocation5 + $0x198] sm:$0xff]
        %v1375 = vld [vmem:[#allocation5 + $0x1a0] sm:$0xff]
        %v1376 = vld [vmem:[#allocation5 + $0x1a8] sm:$0xff]
        %v1377 = vld [vmem:[#allocation5 + $0x1b0] sm:$0xff]
        %v1378 = vld [vmem:[#allocation5 + $0x1b8] sm:$0xff]
        %v1379 = vld [vmem:[#allocation5 + $0x1c0] sm:$0xff]
        %v1380 = vld [vmem:[#allocation5 + $0x1c8] sm:$0xff]
        %v1381 = vld [vmem:[#allocation5 + $0x1d0] sm:$0xff]
        %v1382 = vld [vmem:[#allocation5 + $0x1d8] sm:$0xff]
        %v1383 = vld [vmem:[#allocation5 + $0x30e] sm:$0x1]
        %v1384 = vld [vmem:[#allocation5 + $0x30f] sm:$0x1]
        %v1385 = vld [vmem:[#allocation5 + $0x310] sm:$0x1]
        %v1386 = vld [vmem:[#allocation5 + $0x311] sm:$0x1]
        %v1387 = vld [vmem:[#allocation5 + $0x312] sm:$0x1]
        %v1388 = vlaneseq
        %v1389 = vshrl.u32 %v1388, 7
        %v1390 = vsub.s32 0, %v1389
        %v1391 = vrot.slane %v1356, %v1390
        %v1393 = vsel %vm186, %v1351, 0
        %1395 = vmatprep.subr.mxu0 0.0
        %1396 = vmatpush1.msra.mxu0 0.0
        %1397 = vmatprep.subr.mxu0 0.0
        %1398 = vmatpush1.msra.mxu0 0.0
        %1399 = vmatprep.subr.mxu0 0.0
        %1400 = vmatpush1.msra.mxu0 0.0
        %1401 = vmatprep.subr.mxu0 0.0
        %1402 = vmatpush1.msra.mxu0 0.0
        %1403 = vmatprep.subr.mxu0 0.0
        %1404 = vmatpush1.msra.mxu0 0.0
        %1405 = vmatprep.subr.mxu0 0.0
        %1406 = vmatpush1.msra.mxu0 0.0
        %1407 = vmatprep.subr.mxu0 0.0
        %1408 = vmatpush1.msra.mxu0 0.0
        %1409 = vmatprep.subr.mxu0 0.0
        %1410 = vmatpush1.msra.mxu0 0.0
        %1411 = vmatprep.subr.mxu0 0.0
        %1412 = vmatpush1.msra.mxu0 0.0
        %1413 = vmatprep.subr.mxu0 0.0
        %1414 = vmatpush1.msra.mxu0 0.0
        %1415 = vmatprep.subr.mxu0 0.0
        %1416 = vmatpush1.msra.mxu0 0.0
        %1417 = vmatprep.subr.mxu0 0.0
        %1418 = vmatpush1.msra.mxu0 0.0
        %1419 = vmatprep.subr.mxu0 0.0
        %1420 = vmatpush1.msra.mxu0 %v1355
        %1421 = vmatprep.subr.mxu0 0.0
        %1422 = vmatpush1.msra.mxu0 %v1354
        %1423 = vmatprep.subr.mxu0 0.0
        %1424 = vmatpush1.msra.mxu0 %v1353
        %1425 = vmatprep.subr.mxu0 0.0
        %1426 = vmatpush1.msra.mxu0 %v1352
        %1427 = vmatprep.subr.mxu0 0.0
        %1428 = vmatpush2.msra.mxu0 0.0
        %1429 = vmatprep.subr.mxu0 0.0
        %1430 = vmatpush2.msra.mxu0 0.0
        %1431 = vmatprep.subr.mxu0 0.0
        %1432 = vmatpush2.msra.mxu0 0.0
        %1433 = vmatprep.subr.mxu0 0.0
        %1434 = vmatpush2.msra.mxu0 0.0
        %1435 = vmatprep.subr.mxu0 0.0
        %1436 = vmatpush2.msra.mxu0 0.0
        %1437 = vmatprep.subr.mxu0 0.0
        %1438 = vmatpush2.msra.mxu0 0.0
        %1439 = vmatprep.subr.mxu0 0.0
        %1440 = vmatpush2.msra.mxu0 0.0
        %1441 = vmatprep.subr.mxu0 0.0
        %1442 = vmatpush2.msra.mxu0 0.0
        %1443 = vmatprep.subr.mxu0 0.0
        %1444 = vmatpush2.msra.mxu0 0.0
        %1445 = vmatprep.subr.mxu0 0.0
        %1446 = vmatpush2.msra.mxu0 0.0
        %1447 = vmatprep.subr.mxu0 0.0
        %1448 = vmatpush2.msra.mxu0 0.0
        %1449 = vmatprep.subr.mxu0 0.0
        %1450 = vmatpush2.msra.mxu0 0.0
        %1451 = vmatprep.subr.mxu0 0.0
        %1452 = vmatpush2.msra.mxu0 0.0
        %1453 = vmatprep.subr.mxu0 0.0
        %1454 = vmatpush2.msra.mxu0 0.0
        %1455 = vmatprep.subr.mxu0 0.0
        %1456 = vmatpush2.msra.mxu0 0.0
        %1457 = vmatprep.subr.mxu0 0.0
        %1458 = vmatpush2.msra.mxu0 0.0
        %1459 = vmatprep.mubr.f32.mxu0 0.0
        %1460 = vmatmul.mubr.f32.gmra.mxu0 %v1393
        %v1461 = vpop.f32.mrf.mxu0
        %v1462 = vadd.f32 %v1391, %v1461
        %v1463 = vpop.f32.mrf.mxu0
        %1464 = vdwg.mxu0
        %1466 = vrot.lane.b32.xlu0 %v1462, 96
        %v1467 = vpop.permute.xlu0 %1466
        %v1468 = vsel %vm401, %v1462, 0
        %v1470 = vsel %vm401, %v1467, 0
        %1472 = vmatprep.subr.mxu0 0.0
        %1473 = vmatpush1.xpose.msra.mxu0 0.0
        %1474 = vmatprep.subr.mxu0 0.0
        %1475 = vmatpush1.xpose.msra.mxu0 0.0
        %1476 = vmatprep.subr.mxu0 0.0
        %1477 = vmatpush1.xpose.msra.mxu0 0.0
        %1478 = vmatprep.subr.mxu0 0.0
        %1479 = vmatpush1.xpose.msra.mxu0 0.0
        %1480 = vmatprep.subr.mxu0 0.0
        %1481 = vmatpush1.xpose.msra.mxu0 0.0
        %1482 = vmatprep.subr.mxu0 0.0
        %1483 = vmatpush1.xpose.msra.mxu0 0.0
        %1484 = vmatprep.subr.mxu0 0.0
        %1485 = vmatpush1.xpose.msra.mxu0 0.0
        %1486 = vmatprep.subr.mxu0 0.0
        %1487 = vmatpush1.xpose.msra.mxu0 0.0
        %1488 = vmatprep.subr.mxu0 0.0
        %1489 = vmatpush1.xpose.msra.mxu0 0.0
        %1490 = vmatprep.subr.mxu0 0.0
        %1491 = vmatpush1.xpose.msra.mxu0 0.0
        %1492 = vmatprep.subr.mxu0 0.0
        %1493 = vmatpush1.xpose.msra.mxu0 0.0
        %1494 = vmatprep.subr.mxu0 0.0
        %1495 = vmatpush1.xpose.msra.mxu0 0.0
        %1496 = vmatprep.subr.mxu0 0.0
        %1497 = vmatpush1.xpose.msra.mxu0 0.0
        %1498 = vmatprep.subr.mxu0 0.0
        %1499 = vmatpush1.xpose.msra.mxu0 0.0
        %1500 = vmatprep.subr.mxu0 0.0
        %1501 = vmatpush1.xpose.msra.mxu0 0.0
        %1502 = vmatprep.subr.mxu0 0.0
        %1503 = vmatpush1.xpose.msra.mxu0 %v1470
        %1504 = vmatprep.subr.mxu0 0.0
        %1505 = vmatpush2.xpose.msra.mxu0 0.0
        %1506 = vmatprep.subr.mxu0 0.0
        %1507 = vmatpush2.xpose.msra.mxu0 0.0
        %1508 = vmatprep.subr.mxu0 0.0
        %1509 = vmatpush2.xpose.msra.mxu0 0.0
        %1510 = vmatprep.subr.mxu0 0.0
        %1511 = vmatpush2.xpose.msra.mxu0 0.0
        %1512 = vmatprep.subr.mxu0 0.0
        %1513 = vmatpush2.xpose.msra.mxu0 0.0
        %1514 = vmatprep.subr.mxu0 0.0
        %1515 = vmatpush2.xpose.msra.mxu0 0.0
        %1516 = vmatprep.subr.mxu0 0.0
        %1517 = vmatpush2.xpose.msra.mxu0 0.0
        %1518 = vmatprep.subr.mxu0 0.0
        %1519 = vmatpush2.xpose.msra.mxu0 0.0
        %1520 = vmatprep.subr.mxu0 0.0
        %1521 = vmatpush2.xpose.msra.mxu0 0.0
        %1522 = vmatprep.subr.mxu0 0.0
        %1523 = vmatpush2.xpose.msra.mxu0 0.0
        %1524 = vmatprep.subr.mxu0 0.0
        %1525 = vmatpush2.xpose.msra.mxu0 0.0
        %1526 = vmatprep.subr.mxu0 0.0
        %1527 = vmatpush2.xpose.msra.mxu0 0.0
        %1528 = vmatprep.subr.mxu0 0.0
        %1529 = vmatpush2.xpose.msra.mxu0 0.0
        %1530 = vmatprep.subr.mxu0 0.0
        %1531 = vmatpush2.xpose.msra.mxu0 0.0
        %1532 = vmatprep.subr.mxu0 0.0
        %1533 = vmatpush2.xpose.msra.mxu0 0.0
        %1534 = vmatprep.subr.mxu0 0.0
        %1535 = vmatpush2.xpose.msra.mxu0 0.0
        %1536 = vmatprep.mubr.f32.mxu0 0.0
        %1537 = vmatmul.mubr.f32.gmra.mxu0 %v1468
        %v1538 = vpop.f32.mrf.mxu0
        %v1539 = vadd.f32 0.0, %v1538
        %v1540 = vpop.f32.mrf.mxu0
        %1541 = vdwg.mxu0
        %v1542 = vsel %vm401, %v1539, -inf
        %1543 = vmax.xlane.f32.xlu0 %v1542
        %v1544 = vpop.xlane.xlu0 %1543
        %v1545 = vsub.f32 %v1539, %v1544
        %v1546 = vmul.f32 %v1545, 1.442695
        %v1547 = vpow.pop %v1546
        %v1548 = vsel %vm401, %v1547, 0.0
        %1549 = vadd.xlane.f32.xlu0 %v1548
        %v1550 = vpop.xlane.xlu0 %1549
        %v1551 = vrcp.pop %v1550
        %v1552 = vmul.f32 %v1547, %v1551
        %1553 = vrot.lane.b32.xlu0 %v1462, 64
        %v1554 = vpop.permute.xlu0 %1553
        %v1557 = vsel %vm401, %v1552, 0
        %1559 = vmatprep.subr.mxu0 0.0
        %1560 = vmatpush1.msra.mxu0 0.0
        %1561 = vmatprep.subr.mxu0 0.0
        %1562 = vmatpush1.msra.mxu0 0.0
        %1563 = vmatprep.subr.mxu0 0.0
        %1564 = vmatpush1.msra.mxu0 0.0
        %1565 = vmatprep.subr.mxu0 0.0
        %1566 = vmatpush1.msra.mxu0 0.0
        %1567 = vmatprep.subr.mxu0 0.0
        %1568 = vmatpush1.msra.mxu0 0.0
        %1569 = vmatprep.subr.mxu0 0.0
        %1570 = vmatpush1.msra.mxu0 0.0
        %1571 = vmatprep.subr.mxu0 0.0
        %1572 = vmatpush1.msra.mxu0 0.0
        %1573 = vmatprep.subr.mxu0 0.0
        %1574 = vmatpush1.msra.mxu0 0.0
        %1575 = vmatprep.subr.mxu0 0.0
        %1576 = vmatpush1.msra.mxu0 0.0
        %1577 = vmatprep.subr.mxu0 0.0
        %1578 = vmatpush1.msra.mxu0 0.0
        %1579 = vmatprep.subr.mxu0 0.0
        %1580 = vmatpush1.msra.mxu0 0.0
        %1581 = vmatprep.subr.mxu0 0.0
        %1582 = vmatpush1.msra.mxu0 0.0
        %1583 = vmatprep.subr.mxu0 0.0
        %1584 = vmatpush1.msra.mxu0 0.0
        %1585 = vmatprep.subr.mxu0 0.0
        %1586 = vmatpush1.msra.mxu0 0.0
        %1587 = vmatprep.subr.mxu0 0.0
        %1588 = vmatpush1.msra.mxu0 0.0
        %1589 = vmatprep.subr.mxu0 0.0
        %1590 = vmatpush1.msra.mxu0 %v1554
        %1591 = vmatprep.subr.mxu0 0.0
        %1592 = vmatpush2.msra.mxu0 0.0
        %1593 = vmatprep.subr.mxu0 0.0
        %1594 = vmatpush2.msra.mxu0 0.0
        %1595 = vmatprep.subr.mxu0 0.0
        %1596 = vmatpush2.msra.mxu0 0.0
        %1597 = vmatprep.subr.mxu0 0.0
        %1598 = vmatpush2.msra.mxu0 0.0
        %1599 = vmatprep.subr.mxu0 0.0
        %1600 = vmatpush2.msra.mxu0 0.0
        %1601 = vmatprep.subr.mxu0 0.0
        %1602 = vmatpush2.msra.mxu0 0.0
        %1603 = vmatprep.subr.mxu0 0.0
        %1604 = vmatpush2.msra.mxu0 0.0
        %1605 = vmatprep.subr.mxu0 0.0
        %1606 = vmatpush2.msra.mxu0 0.0
        %1607 = vmatprep.subr.mxu0 0.0
        %1608 = vmatpush2.msra.mxu0 0.0
        %1609 = vmatprep.subr.mxu0 0.0
        %1610 = vmatpush2.msra.mxu0 0.0
        %1611 = vmatprep.subr.mxu0 0.0
        %1612 = vmatpush2.msra.mxu0 0.0
        %1613 = vmatprep.subr.mxu0 0.0
        %1614 = vmatpush2.msra.mxu0 0.0
        %1615 = vmatprep.subr.mxu0 0.0
        %1616 = vmatpush2.msra.mxu0 0.0
        %1617 = vmatprep.subr.mxu0 0.0
        %1618 = vmatpush2.msra.mxu0 0.0
        %1619 = vmatprep.subr.mxu0 0.0
        %1620 = vmatpush2.msra.mxu0 0.0
        %1621 = vmatprep.subr.mxu0 0.0
        %1622 = vmatpush2.msra.mxu0 0.0
        %1623 = vmatprep.mubr.f32.mxu0 0.0
        %1624 = vmatmul.mubr.f32.gmra.mxu0 %v1557
        %v1625 = vpop.f32.mrf.mxu0
        %v1626 = vadd.f32 0.0, %v1625
        %v1627 = vpop.f32.mrf.mxu0
        %1628 = vdwg.mxu0
        %1629 = vrot.lane.b32.xlu0 %v1462, 120
        %v1630 = vpop.permute.xlu0 %1629
        %1631 = vrot.lane.b32.xlu0 %v1462, 88
        %v1632 = vpop.permute.xlu0 %1631
        %v1633 = vsel %vm401, %v1630, 0
        %v1635 = vsel %vm401, %v1632, 0
        %1637 = vmatprep.subr.mxu0 0.0
        %1638 = vmatpush1.xpose.msra.mxu0 0.0
        %1639 = vmatprep.subr.mxu0 0.0
        %1640 = vmatpush1.xpose.msra.mxu0 0.0
        %1641 = vmatprep.subr.mxu0 0.0
        %1642 = vmatpush1.xpose.msra.mxu0 0.0
        %1643 = vmatprep.subr.mxu0 0.0
        %1644 = vmatpush1.xpose.msra.mxu0 0.0
        %1645 = vmatprep.subr.mxu0 0.0
        %1646 = vmatpush1.xpose.msra.mxu0 0.0
        %1647 = vmatprep.subr.mxu0 0.0
        %1648 = vmatpush1.xpose.msra.mxu0 0.0
        %1649 = vmatprep.subr.mxu0 0.0
        %1650 = vmatpush1.xpose.msra.mxu0 0.0
        %1651 = vmatprep.subr.mxu0 0.0
        %1652 = vmatpush1.xpose.msra.mxu0 0.0
        %1653 = vmatprep.subr.mxu0 0.0
        %1654 = vmatpush1.xpose.msra.mxu0 0.0
        %1655 = vmatprep.subr.mxu0 0.0
        %1656 = vmatpush1.xpose.msra.mxu0 0.0
        %1657 = vmatprep.subr.mxu0 0.0
        %1658 = vmatpush1.xpose.msra.mxu0 0.0
        %1659 = vmatprep.subr.mxu0 0.0
        %1660 = vmatpush1.xpose.msra.mxu0 0.0
        %1661 = vmatprep.subr.mxu0 0.0
        %1662 = vmatpush1.xpose.msra.mxu0 0.0
        %1663 = vmatprep.subr.mxu0 0.0
        %1664 = vmatpush1.xpose.msra.mxu0 0.0
        %1665 = vmatprep.subr.mxu0 0.0
        %1666 = vmatpush1.xpose.msra.mxu0 0.0
        %1667 = vmatprep.subr.mxu0 0.0
        %1668 = vmatpush1.xpose.msra.mxu0 %v1635
        %1669 = vmatprep.subr.mxu0 0.0
        %1670 = vmatpush2.xpose.msra.mxu0 0.0
        %1671 = vmatprep.subr.mxu0 0.0
        %1672 = vmatpush2.xpose.msra.mxu0 0.0
        %1673 = vmatprep.subr.mxu0 0.0
        %1674 = vmatpush2.xpose.msra.mxu0 0.0
        %1675 = vmatprep.subr.mxu0 0.0
        %1676 = vmatpush2.xpose.msra.mxu0 0.0
        %1677 = vmatprep.subr.mxu0 0.0
        %1678 = vmatpush2.xpose.msra.mxu0 0.0
        %1679 = vmatprep.subr.mxu0 0.0
        %1680 = vmatpush2.xpose.msra.mxu0 0.0
        %1681 = vmatprep.subr.mxu0 0.0
        %1682 = vmatpush2.xpose.msra.mxu0 0.0
        %1683 = vmatprep.subr.mxu0 0.0
        %1684 = vmatpush2.xpose.msra.mxu0 0.0
        %1685 = vmatprep.subr.mxu0 0.0
        %1686 = vmatpush2.xpose.msra.mxu0 0.0
        %1687 = vmatprep.subr.mxu0 0.0
        %1688 = vmatpush2.xpose.msra.mxu0 0.0
        %1689 = vmatprep.subr.mxu0 0.0
        %1690 = vmatpush2.xpose.msra.mxu0 0.0
        %1691 = vmatprep.subr.mxu0 0.0
        %1692 = vmatpush2.xpose.msra.mxu0 0.0
        %1693 = vmatprep.subr.mxu0 0.0
        %1694 = vmatpush2.xpose.msra.mxu0 0.0
        %1695 = vmatprep.subr.mxu0 0.0
        %1696 = vmatpush2.xpose.msra.mxu0 0.0
        %1697 = vmatprep.subr.mxu0 0.0
        %1698 = vmatpush2.xpose.msra.mxu0 0.0
        %1699 = vmatprep.subr.mxu0 0.0
        %1700 = vmatpush2.xpose.msra.mxu0 0.0
        %1701 = vmatprep.mubr.f32.mxu0 0.0
        %1702 = vmatmul.mubr.f32.gmra.mxu0 %v1633
        %v1703 = vpop.f32.mrf.mxu0
        %v1704 = vadd.f32 0.0, %v1703
        %v1705 = vpop.f32.mrf.mxu0
        %1706 = vdwg.mxu0
        %v1707 = vsel %vm401, %v1704, -inf
        %1708 = vmax.xlane.f32.xlu0 %v1707
        %v1709 = vpop.xlane.xlu0 %1708
        %v1710 = vsub.f32 %v1704, %v1709
        %v1711 = vmul.f32 %v1710, 1.442695
        %v1712 = vpow.pop %v1711
        %v1713 = vsel %vm401, %v1712, 0.0
        %1714 = vadd.xlane.f32.xlu0 %v1713
        %v1715 = vpop.xlane.xlu0 %1714
        %v1716 = vrcp.pop %v1715
        %v1717 = vmul.f32 %v1712, %v1716
        %1718 = vrot.lane.b32.xlu0 %v1462, 56
        %v1719 = vpop.permute.xlu0 %1718
        %v1722 = vsel %vm401, %v1717, 0
        %1724 = vmatprep.subr.mxu0 0.0
        %1725 = vmatpush1.msra.mxu0 0.0
        %1726 = vmatprep.subr.mxu0 0.0
        %1727 = vmatpush1.msra.mxu0 0.0
        %1728 = vmatprep.subr.mxu0 0.0
        %1729 = vmatpush1.msra.mxu0 0.0
        %1730 = vmatprep.subr.mxu0 0.0
        %1731 = vmatpush1.msra.mxu0 0.0
        %1732 = vmatprep.subr.mxu0 0.0
        %1733 = vmatpush1.msra.mxu0 0.0
        %1734 = vmatprep.subr.mxu0 0.0
        %1735 = vmatpush1.msra.mxu0 0.0
        %1736 = vmatprep.subr.mxu0 0.0
        %1737 = vmatpush1.msra.mxu0 0.0
        %1738 = vmatprep.subr.mxu0 0.0
        %1739 = vmatpush1.msra.mxu0 0.0
        %1740 = vmatprep.subr.mxu0 0.0
        %1741 = vmatpush1.msra.mxu0 0.0
        %1742 = vmatprep.subr.mxu0 0.0
        %1743 = vmatpush1.msra.mxu0 0.0
        %1744 = vmatprep.subr.mxu0 0.0
        %1745 = vmatpush1.msra.mxu0 0.0
        %1746 = vmatprep.subr.mxu0 0.0
        %1747 = vmatpush1.msra.mxu0 0.0
        %1748 = vmatprep.subr.mxu0 0.0
        %1749 = vmatpush1.msra.mxu0 0.0
        %1750 = vmatprep.subr.mxu0 0.0
        %1751 = vmatpush1.msra.mxu0 0.0
        %1752 = vmatprep.subr.mxu0 0.0
        %1753 = vmatpush1.msra.mxu0 0.0
        %1754 = vmatprep.subr.mxu0 0.0
        %1755 = vmatpush1.msra.mxu0 %v1719
        %1756 = vmatprep.subr.mxu0 0.0
        %1757 = vmatpush2.msra.mxu0 0.0
        %1758 = vmatprep.subr.mxu0 0.0
        %1759 = vmatpush2.msra.mxu0 0.0
        %1760 = vmatprep.subr.mxu0 0.0
        %1761 = vmatpush2.msra.mxu0 0.0
        %1762 = vmatprep.subr.mxu0 0.0
        %1763 = vmatpush2.msra.mxu0 0.0
        %1764 = vmatprep.subr.mxu0 0.0
        %1765 = vmatpush2.msra.mxu0 0.0
        %1766 = vmatprep.subr.mxu0 0.0
        %1767 = vmatpush2.msra.mxu0 0.0
        %1768 = vmatprep.subr.mxu0 0.0
        %1769 = vmatpush2.msra.mxu0 0.0
        %1770 = vmatprep.subr.mxu0 0.0
        %1771 = vmatpush2.msra.mxu0 0.0
        %1772 = vmatprep.subr.mxu0 0.0
        %1773 = vmatpush2.msra.mxu0 0.0
        %1774 = vmatprep.subr.mxu0 0.0
        %1775 = vmatpush2.msra.mxu0 0.0
        %1776 = vmatprep.subr.mxu0 0.0
        %1777 = vmatpush2.msra.mxu0 0.0
        %1778 = vmatprep.subr.mxu0 0.0
        %1779 = vmatpush2.msra.mxu0 0.0
        %1780 = vmatprep.subr.mxu0 0.0
        %1781 = vmatpush2.msra.mxu0 0.0
        %1782 = vmatprep.subr.mxu0 0.0
        %1783 = vmatpush2.msra.mxu0 0.0
        %1784 = vmatprep.subr.mxu0 0.0
        %1785 = vmatpush2.msra.mxu0 0.0
        %1786 = vmatprep.subr.mxu0 0.0
        %1787 = vmatpush2.msra.mxu0 0.0
        %1788 = vmatprep.mubr.f32.mxu0 0.0
        %1789 = vmatmul.mubr.f32.gmra.mxu0 %v1722
        %v1790 = vpop.f32.mrf.mxu0
        %v1791 = vadd.f32 0.0, %v1790
        %v1792 = vpop.f32.mrf.mxu0
        %1793 = vdwg.mxu0
        %1794 = vrot.lane.b32.xlu0 %v1462, 112
        %v1795 = vpop.permute.xlu0 %1794
        %1796 = vrot.lane.b32.xlu0 %v1462, 80
        %v1797 = vpop.permute.xlu0 %1796
        %v1798 = vsel %vm401, %v1795, 0
        %v1800 = vsel %vm401, %v1797, 0
        %1802 = vmatprep.subr.mxu0 0.0
        %1803 = vmatpush1.xpose.msra.mxu0 0.0
        %1804 = vmatprep.subr.mxu0 0.0
        %1805 = vmatpush1.xpose.msra.mxu0 0.0
        %1806 = vmatprep.subr.mxu0 0.0
        %1807 = vmatpush1.xpose.msra.mxu0 0.0
        %1808 = vmatprep.subr.mxu0 0.0
        %1809 = vmatpush1.xpose.msra.mxu0 0.0
        %1810 = vmatprep.subr.mxu0 0.0
        %1811 = vmatpush1.xpose.msra.mxu0 0.0
        %1812 = vmatprep.subr.mxu0 0.0
        %1813 = vmatpush1.xpose.msra.mxu0 0.0
        %1814 = vmatprep.subr.mxu0 0.0
        %1815 = vmatpush1.xpose.msra.mxu0 0.0
        %1816 = vmatprep.subr.mxu0 0.0
        %1817 = vmatpush1.xpose.msra.mxu0 0.0
        %1818 = vmatprep.subr.mxu0 0.0
        %1819 = vmatpush1.xpose.msra.mxu0 0.0
        %1820 = vmatprep.subr.mxu0 0.0
        %1821 = vmatpush1.xpose.msra.mxu0 0.0
        %1822 = vmatprep.subr.mxu0 0.0
        %1823 = vmatpush1.xpose.msra.mxu0 0.0
        %1824 = vmatprep.subr.mxu0 0.0
        %1825 = vmatpush1.xpose.msra.mxu0 0.0
        %1826 = vmatprep.subr.mxu0 0.0
        %1827 = vmatpush1.xpose.msra.mxu0 0.0
        %1828 = vmatprep.subr.mxu0 0.0
        %1829 = vmatpush1.xpose.msra.mxu0 0.0
        %1830 = vmatprep.subr.mxu0 0.0
        %1831 = vmatpush1.xpose.msra.mxu0 0.0
        %1832 = vmatprep.subr.mxu0 0.0
        %1833 = vmatpush1.xpose.msra.mxu0 %v1800
        %1834 = vmatprep.subr.mxu0 0.0
        %1835 = vmatpush2.xpose.msra.mxu0 0.0
        %1836 = vmatprep.subr.mxu0 0.0
        %1837 = vmatpush2.xpose.msra.mxu0 0.0
        %1838 = vmatprep.subr.mxu0 0.0
        %1839 = vmatpush2.xpose.msra.mxu0 0.0
        %1840 = vmatprep.subr.mxu0 0.0
        %1841 = vmatpush2.xpose.msra.mxu0 0.0
        %1842 = vmatprep.subr.mxu0 0.0
        %1843 = vmatpush2.xpose.msra.mxu0 0.0
        %1844 = vmatprep.subr.mxu0 0.0
        %1845 = vmatpush2.xpose.msra.mxu0 0.0
        %1846 = vmatprep.subr.mxu0 0.0
        %1847 = vmatpush2.xpose.msra.mxu0 0.0
        %1848 = vmatprep.subr.mxu0 0.0
        %1849 = vmatpush2.xpose.msra.mxu0 0.0
        %1850 = vmatprep.subr.mxu0 0.0
        %1851 = vmatpush2.xpose.msra.mxu0 0.0
        %1852 = vmatprep.subr.mxu0 0.0
        %1853 = vmatpush2.xpose.msra.mxu0 0.0
        %1854 = vmatprep.subr.mxu0 0.0
        %1855 = vmatpush2.xpose.msra.mxu0 0.0
        %1856 = vmatprep.subr.mxu0 0.0
        %1857 = vmatpush2.xpose.msra.mxu0 0.0
        %1858 = vmatprep.subr.mxu0 0.0
        %1859 = vmatpush2.xpose.msra.mxu0 0.0
        %1860 = vmatprep.subr.mxu0 0.0
        %1861 = vmatpush2.xpose.msra.mxu0 0.0
        %1862 = vmatprep.subr.mxu0 0.0
        %1863 = vmatpush2.xpose.msra.mxu0 0.0
        %1864 = vmatprep.subr.mxu0 0.0
        %1865 = vmatpush2.xpose.msra.mxu0 0.0
        %1866 = vmatprep.mubr.f32.mxu0 0.0
        %1867 = vmatmul.mubr.f32.gmra.mxu0 %v1798
        %v1868 = vpop.f32.mrf.mxu0
        %v1869 = vadd.f32 0.0, %v1868
        %v1870 = vpop.f32.mrf.mxu0
        %1871 = vdwg.mxu0
        %v1872 = vsel %vm401, %v1869, -inf
        %1873 = vmax.xlane.f32.xlu0 %v1872
        %v1874 = vpop.xlane.xlu0 %1873
        %v1875 = vsub.f32 %v1869, %v1874
        %v1876 = vmul.f32 %v1875, 1.442695
        %v1877 = vpow.pop %v1876
        %v1878 = vsel %vm401, %v1877, 0.0
        %1879 = vadd.xlane.f32.xlu0 %v1878
        %v1880 = vpop.xlane.xlu0 %1879
        %v1881 = vrcp.pop %v1880
        %v1882 = vmul.f32 %v1877, %v1881
        %1883 = vrot.lane.b32.xlu0 %v1462, 48
        %v1884 = vpop.permute.xlu0 %1883
        %v1887 = vsel %vm401, %v1882, 0
        %1889 = vmatprep.subr.mxu0 0.0
        %1890 = vmatpush1.msra.mxu0 0.0
        %1891 = vmatprep.subr.mxu0 0.0
        %1892 = vmatpush1.msra.mxu0 0.0
        %1893 = vmatprep.subr.mxu0 0.0
        %1894 = vmatpush1.msra.mxu0 0.0
        %1895 = vmatprep.subr.mxu0 0.0
        %1896 = vmatpush1.msra.mxu0 0.0
        %1897 = vmatprep.subr.mxu0 0.0
        %1898 = vmatpush1.msra.mxu0 0.0
        %1899 = vmatprep.subr.mxu0 0.0
        %1900 = vmatpush1.msra.mxu0 0.0
        %1901 = vmatprep.subr.mxu0 0.0
        %1902 = vmatpush1.msra.mxu0 0.0
        %1903 = vmatprep.subr.mxu0 0.0
        %1904 = vmatpush1.msra.mxu0 0.0
        %1905 = vmatprep.subr.mxu0 0.0
        %1906 = vmatpush1.msra.mxu0 0.0
        %1907 = vmatprep.subr.mxu0 0.0
        %1908 = vmatpush1.msra.mxu0 0.0
        %1909 = vmatprep.subr.mxu0 0.0
        %1910 = vmatpush1.msra.mxu0 0.0
        %1911 = vmatprep.subr.mxu0 0.0
        %1912 = vmatpush1.msra.mxu0 0.0
        %1913 = vmatprep.subr.mxu0 0.0
        %1914 = vmatpush1.msra.mxu0 0.0
        %1915 = vmatprep.subr.mxu0 0.0
        %1916 = vmatpush1.msra.mxu0 0.0
        %1917 = vmatprep.subr.mxu0 0.0
        %1918 = vmatpush1.msra.mxu0 0.0
        %1919 = vmatprep.subr.mxu0 0.0
        %1920 = vmatpush1.msra.mxu0 %v1884
        %1921 = vmatprep.subr.mxu0 0.0
        %1922 = vmatpush2.msra.mxu0 0.0
        %1923 = vmatprep.subr.mxu0 0.0
        %1924 = vmatpush2.msra.mxu0 0.0
        %1925 = vmatprep.subr.mxu0 0.0
        %1926 = vmatpush2.msra.mxu0 0.0
        %1927 = vmatprep.subr.mxu0 0.0
        %1928 = vmatpush2.msra.mxu0 0.0
        %1929 = vmatprep.subr.mxu0 0.0
        %1930 = vmatpush2.msra.mxu0 0.0
        %1931 = vmatprep.subr.mxu0 0.0
        %1932 = vmatpush2.msra.mxu0 0.0
        %1933 = vmatprep.subr.mxu0 0.0
        %1934 = vmatpush2.msra.mxu0 0.0
        %1935 = vmatprep.subr.mxu0 0.0
        %1936 = vmatpush2.msra.mxu0 0.0
        %1937 = vmatprep.subr.mxu0 0.0
        %1938 = vmatpush2.msra.mxu0 0.0
        %1939 = vmatprep.subr.mxu0 0.0
        %1940 = vmatpush2.msra.mxu0 0.0
        %1941 = vmatprep.subr.mxu0 0.0
        %1942 = vmatpush2.msra.mxu0 0.0
        %1943 = vmatprep.subr.mxu0 0.0
        %1944 = vmatpush2.msra.mxu0 0.0
        %1945 = vmatprep.subr.mxu0 0.0
        %1946 = vmatpush2.msra.mxu0 0.0
        %1947 = vmatprep.subr.mxu0 0.0
        %1948 = vmatpush2.msra.mxu0 0.0
        %1949 = vmatprep.subr.mxu0 0.0
        %1950 = vmatpush2.msra.mxu0 0.0
        %1951 = vmatprep.subr.mxu0 0.0
        %1952 = vmatpush2.msra.mxu0 0.0
        %1953 = vmatprep.mubr.f32.mxu0 0.0
        %1954 = vmatmul.mubr.f32.gmra.mxu0 %v1887
        %v1955 = vpop.f32.mrf.mxu0
        %v1956 = vadd.f32 0.0, %v1955
        %v1957 = vpop.f32.mrf.mxu0
        %1958 = vdwg.mxu0
        %1959 = vrot.lane.b32.xlu0 %v1462, 104
        %v1960 = vpop.permute.xlu0 %1959
        %1961 = vrot.lane.b32.xlu0 %v1462, 72
        %v1962 = vpop.permute.xlu0 %1961
        %v1963 = vsel %vm401, %v1960, 0
        %v1965 = vsel %vm401, %v1962, 0
        %1967 = vmatprep.subr.mxu0 0.0
        %1968 = vmatpush1.xpose.msra.mxu0 0.0
        %1969 = vmatprep.subr.mxu0 0.0
        %1970 = vmatpush1.xpose.msra.mxu0 0.0
        %1971 = vmatprep.subr.mxu0 0.0
        %1972 = vmatpush1.xpose.msra.mxu0 0.0
        %1973 = vmatprep.subr.mxu0 0.0
        %1974 = vmatpush1.xpose.msra.mxu0 0.0
        %1975 = vmatprep.subr.mxu0 0.0
        %1976 = vmatpush1.xpose.msra.mxu0 0.0
        %1977 = vmatprep.subr.mxu0 0.0
        %1978 = vmatpush1.xpose.msra.mxu0 0.0
        %1979 = vmatprep.subr.mxu0 0.0
        %1980 = vmatpush1.xpose.msra.mxu0 0.0
        %1981 = vmatprep.subr.mxu0 0.0
        %1982 = vmatpush1.xpose.msra.mxu0 0.0
        %1983 = vmatprep.subr.mxu0 0.0
        %1984 = vmatpush1.xpose.msra.mxu0 0.0
        %1985 = vmatprep.subr.mxu0 0.0
        %1986 = vmatpush1.xpose.msra.mxu0 0.0
        %1987 = vmatprep.subr.mxu0 0.0
        %1988 = vmatpush1.xpose.msra.mxu0 0.0
        %1989 = vmatprep.subr.mxu0 0.0
        %1990 = vmatpush1.xpose.msra.mxu0 0.0
        %1991 = vmatprep.subr.mxu0 0.0
        %1992 = vmatpush1.xpose.msra.mxu0 0.0
        %1993 = vmatprep.subr.mxu0 0.0
        %1994 = vmatpush1.xpose.msra.mxu0 0.0
        %1995 = vmatprep.subr.mxu0 0.0
        %1996 = vmatpush1.xpose.msra.mxu0 0.0
        %1997 = vmatprep.subr.mxu0 0.0
        %1998 = vmatpush1.xpose.msra.mxu0 %v1965
        %1999 = vmatprep.subr.mxu0 0.0
        %2000 = vmatpush2.xpose.msra.mxu0 0.0
        %2001 = vmatprep.subr.mxu0 0.0
        %2002 = vmatpush2.xpose.msra.mxu0 0.0
        %2003 = vmatprep.subr.mxu0 0.0
        %2004 = vmatpush2.xpose.msra.mxu0 0.0
        %2005 = vmatprep.subr.mxu0 0.0
        %2006 = vmatpush2.xpose.msra.mxu0 0.0
        %2007 = vmatprep.subr.mxu0 0.0
        %2008 = vmatpush2.xpose.msra.mxu0 0.0
        %2009 = vmatprep.subr.mxu0 0.0
        %2010 = vmatpush2.xpose.msra.mxu0 0.0
        %2011 = vmatprep.subr.mxu0 0.0
        %2012 = vmatpush2.xpose.msra.mxu0 0.0
        %2013 = vmatprep.subr.mxu0 0.0
        %2014 = vmatpush2.xpose.msra.mxu0 0.0
        %2015 = vmatprep.subr.mxu0 0.0
        %2016 = vmatpush2.xpose.msra.mxu0 0.0
        %2017 = vmatprep.subr.mxu0 0.0
        %2018 = vmatpush2.xpose.msra.mxu0 0.0
        %2019 = vmatprep.subr.mxu0 0.0
        %2020 = vmatpush2.xpose.msra.mxu0 0.0
        %2021 = vmatprep.subr.mxu0 0.0
        %2022 = vmatpush2.xpose.msra.mxu0 0.0
        %2023 = vmatprep.subr.mxu0 0.0
        %2024 = vmatpush2.xpose.msra.mxu0 0.0
        %2025 = vmatprep.subr.mxu0 0.0
        %2026 = vmatpush2.xpose.msra.mxu0 0.0
        %2027 = vmatprep.subr.mxu0 0.0
        %2028 = vmatpush2.xpose.msra.mxu0 0.0
        %2029 = vmatprep.subr.mxu0 0.0
        %2030 = vmatpush2.xpose.msra.mxu0 0.0
        %2031 = vmatprep.mubr.f32.mxu0 0.0
        %2032 = vmatmul.mubr.f32.gmra.mxu0 %v1963
        %v2033 = vpop.f32.mrf.mxu0
        %v2034 = vadd.f32 0.0, %v2033
        %v2035 = vpop.f32.mrf.mxu0
        %2036 = vdwg.mxu0
        %v2037 = vsel %vm401, %v2034, -inf
        %2038 = vmax.xlane.f32.xlu0 %v2037
        %v2039 = vpop.xlane.xlu0 %2038
        %v2040 = vsub.f32 %v2034, %v2039
        %v2041 = vmul.f32 %v2040, 1.442695
        %v2042 = vpow.pop %v2041
        %v2043 = vsel %vm401, %v2042, 0.0
        %2044 = vadd.xlane.f32.xlu0 %v2043
        %v2045 = vpop.xlane.xlu0 %2044
        %v2046 = vrcp.pop %v2045
        %v2047 = vmul.f32 %v2042, %v2046
        %2048 = vrot.lane.b32.xlu0 %v1462, 40
        %v2049 = vpop.permute.xlu0 %2048
        %v2052 = vsel %vm401, %v2047, 0
        %2054 = vmatprep.subr.mxu0 0.0
        %2055 = vmatpush1.msra.mxu0 0.0
        %2056 = vmatprep.subr.mxu0 0.0
        %2057 = vmatpush1.msra.mxu0 0.0
        %2058 = vmatprep.subr.mxu0 0.0
        %2059 = vmatpush1.msra.mxu0 0.0
        %2060 = vmatprep.subr.mxu0 0.0
        %2061 = vmatpush1.msra.mxu0 0.0
        %2062 = vmatprep.subr.mxu0 0.0
        %2063 = vmatpush1.msra.mxu0 0.0
        %2064 = vmatprep.subr.mxu0 0.0
        %2065 = vmatpush1.msra.mxu0 0.0
        %2066 = vmatprep.subr.mxu0 0.0
        %2067 = vmatpush1.msra.mxu0 0.0
        %2068 = vmatprep.subr.mxu0 0.0
        %2069 = vmatpush1.msra.mxu0 0.0
        %2070 = vmatprep.subr.mxu0 0.0
        %2071 = vmatpush1.msra.mxu0 0.0
        %2072 = vmatprep.subr.mxu0 0.0
        %2073 = vmatpush1.msra.mxu0 0.0
        %2074 = vmatprep.subr.mxu0 0.0
        %2075 = vmatpush1.msra.mxu0 0.0
        %2076 = vmatprep.subr.mxu0 0.0
        %2077 = vmatpush1.msra.mxu0 0.0
        %2078 = vmatprep.subr.mxu0 0.0
        %2079 = vmatpush1.msra.mxu0 0.0
        %2080 = vmatprep.subr.mxu0 0.0
        %2081 = vmatpush1.msra.mxu0 0.0
        %2082 = vmatprep.subr.mxu0 0.0
        %2083 = vmatpush1.msra.mxu0 0.0
        %2084 = vmatprep.subr.mxu0 0.0
        %2085 = vmatpush1.msra.mxu0 %v2049
        %2086 = vmatprep.subr.mxu0 0.0
        %2087 = vmatpush2.msra.mxu0 0.0
        %2088 = vmatprep.subr.mxu0 0.0
        %2089 = vmatpush2.msra.mxu0 0.0
        %2090 = vmatprep.subr.mxu0 0.0
        %2091 = vmatpush2.msra.mxu0 0.0
        %2092 = vmatprep.subr.mxu0 0.0
        %2093 = vmatpush2.msra.mxu0 0.0
        %2094 = vmatprep.subr.mxu0 0.0
        %2095 = vmatpush2.msra.mxu0 0.0
        %2096 = vmatprep.subr.mxu0 0.0
        %2097 = vmatpush2.msra.mxu0 0.0
        %2098 = vmatprep.subr.mxu0 0.0
        %2099 = vmatpush2.msra.mxu0 0.0
        %2100 = vmatprep.subr.mxu0 0.0
        %2101 = vmatpush2.msra.mxu0 0.0
        %2102 = vmatprep.subr.mxu0 0.0
        %2103 = vmatpush2.msra.mxu0 0.0
        %2104 = vmatprep.subr.mxu0 0.0
        %2105 = vmatpush2.msra.mxu0 0.0
        %2106 = vmatprep.subr.mxu0 0.0
        %2107 = vmatpush2.msra.mxu0 0.0
        %2108 = vmatprep.subr.mxu0 0.0
        %2109 = vmatpush2.msra.mxu0 0.0
        %2110 = vmatprep.subr.mxu0 0.0
        %2111 = vmatpush2.msra.mxu0 0.0
        %2112 = vmatprep.subr.mxu0 0.0
        %2113 = vmatpush2.msra.mxu0 0.0
        %2114 = vmatprep.subr.mxu0 0.0
        %2115 = vmatpush2.msra.mxu0 0.0
        %2116 = vmatprep.subr.mxu0 0.0
        %2117 = vmatpush2.msra.mxu0 0.0
        %2118 = vmatprep.mubr.f32.mxu0 0.0
        %2119 = vmatmul.mubr.f32.gmra.mxu0 %v2052
        %v2120 = vpop.f32.mrf.mxu0
        %v2121 = vadd.f32 0.0, %v2120
        %v2122 = vpop.f32.mrf.mxu0
        %2123 = vdwg.mxu0
        %2125 = vrot.lane.b32.xlu0 %v1791, 8
        %v2126 = vpop.permute.xlu0 %2125
        %2129 = vrot.lane.b32.xlu0 %v1956, 16
        %v2130 = vpop.permute.xlu0 %2129
        %2133 = vrot.lane.b32.xlu0 %v2121, 24
        %v2134 = vpop.permute.xlu0 %2133
        %v2136 = vsel %vm401, %v1626, %v2126
        %v2137 = vsel %vm1071, %v2136, %v2130
        %v2138 = vsel %vm1073, %v2137, %v2134
        %v2139 = vlaneseq
        %v2140 = vshrl.u32 %v2139, 7
        %v2141 = vsub.s32 0, %v2140
        %v2142 = vrot.slane %v1361, %v2141
        %v2144 = vsel %vm186, %v2138, 0
        %2146 = vmatprep.subr.mxu0 0.0
        %2147 = vmatpush1.msra.mxu0 0.0
        %2148 = vmatprep.subr.mxu0 0.0
        %2149 = vmatpush1.msra.mxu0 0.0
        %2150 = vmatprep.subr.mxu0 0.0
        %2151 = vmatpush1.msra.mxu0 0.0
        %2152 = vmatprep.subr.mxu0 0.0
        %2153 = vmatpush1.msra.mxu0 0.0
        %2154 = vmatprep.subr.mxu0 0.0
        %2155 = vmatpush1.msra.mxu0 0.0
        %2156 = vmatprep.subr.mxu0 0.0
        %2157 = vmatpush1.msra.mxu0 0.0
        %2158 = vmatprep.subr.mxu0 0.0
        %2159 = vmatpush1.msra.mxu0 0.0
        %2160 = vmatprep.subr.mxu0 0.0
        %2161 = vmatpush1.msra.mxu0 0.0
        %2162 = vmatprep.subr.mxu0 0.0
        %2163 = vmatpush1.msra.mxu0 0.0
        %2164 = vmatprep.subr.mxu0 0.0
        %2165 = vmatpush1.msra.mxu0 0.0
        %2166 = vmatprep.subr.mxu0 0.0
        %2167 = vmatpush1.msra.mxu0 0.0
        %2168 = vmatprep.subr.mxu0 0.0
        %2169 = vmatpush1.msra.mxu0 0.0
        %2170 = vmatprep.subr.mxu0 0.0
        %2171 = vmatpush1.msra.mxu0 %v1360
        %2172 = vmatprep.subr.mxu0 0.0
        %2173 = vmatpush1.msra.mxu0 %v1359
        %2174 = vmatprep.subr.mxu0 0.0
        %2175 = vmatpush1.msra.mxu0 %v1358
        %2176 = vmatprep.subr.mxu0 0.0
        %2177 = vmatpush1.msra.mxu0 %v1357
        %2178 = vmatprep.subr.mxu0 0.0
        %2179 = vmatpush2.msra.mxu0 0.0
        %2180 = vmatprep.subr.mxu0 0.0
        %2181 = vmatpush2.msra.mxu0 0.0
        %2182 = vmatprep.subr.mxu0 0.0
        %2183 = vmatpush2.msra.mxu0 0.0
        %2184 = vmatprep.subr.mxu0 0.0
        %2185 = vmatpush2.msra.mxu0 0.0
        %2186 = vmatprep.subr.mxu0 0.0
        %2187 = vmatpush2.msra.mxu0 0.0
        %2188 = vmatprep.subr.mxu0 0.0
        %2189 = vmatpush2.msra.mxu0 0.0
        %2190 = vmatprep.subr.mxu0 0.0
        %2191 = vmatpush2.msra.mxu0 0.0
        %2192 = vmatprep.subr.mxu0 0.0
        %2193 = vmatpush2.msra.mxu0 0.0
        %2194 = vmatprep.subr.mxu0 0.0
        %2195 = vmatpush2.msra.mxu0 0.0
        %2196 = vmatprep.subr.mxu0 0.0
        %2197 = vmatpush2.msra.mxu0 0.0
        %2198 = vmatprep.subr.mxu0 0.0
        %2199 = vmatpush2.msra.mxu0 0.0
        %2200 = vmatprep.subr.mxu0 0.0
        %2201 = vmatpush2.msra.mxu0 0.0
        %2202 = vmatprep.subr.mxu0 0.0
        %2203 = vmatpush2.msra.mxu0 0.0
        %2204 = vmatprep.subr.mxu0 0.0
        %2205 = vmatpush2.msra.mxu0 0.0
        %2206 = vmatprep.subr.mxu0 0.0
        %2207 = vmatpush2.msra.mxu0 0.0
        %2208 = vmatprep.subr.mxu0 0.0
        %2209 = vmatpush2.msra.mxu0 0.0
        %2210 = vmatprep.mubr.f32.mxu0 0.0
        %2211 = vmatmul.mubr.f32.gmra.mxu0 %v2144
        %v2212 = vpop.f32.mrf.mxu0
        %v2213 = vadd.f32 %v2142, %v2212
        %v2214 = vpop.f32.mrf.mxu0
        %2215 = vdwg.mxu0
        %v2216 = vadd.f32 %v1351, %v2213
        %v2217 = vsel %vm186, %v2216, 0.0
        %2218 = vadd.xlane.f32.xlu0 %v2217
        %v2219 = vpop.xlane.xlu0 %2218
        %v2220 = vmul.f32 %v2219, %v263
        %v2221 = vsub.f32 %v2216, %v2220
        %v2222 = vmul.f32 %v2221, %v2221
        %v2223 = vsel %vm186, %v2222, 0.0
        %2224 = vadd.xlane.f32.xlu0 %v2223
        %v2225 = vpop.xlane.xlu0 %2224
        %v2226 = vmul.f32 %v2225, %v263
        %v2227 = vadd.f32 %v2226, 1e-05
        %v2228 = vrsqrt.pop %v2227
        %v2229 = vmul.f32 %v2221, %v2228
        %v2230 = vlaneseq
        %v2231 = vshrl.u32 %v2230, 7
        %v2232 = vsub.s32 0, %v2231
        %v2233 = vrot.slane %v1384, %v2232
        %v2234 = vmul.f32 %v2229, %v2233
        %v2235 = vlaneseq
        %v2236 = vshrl.u32 %v2235, 7
        %v2237 = vsub.s32 0, %v2236
        %v2238 = vrot.slane %v1385, %v2237
        %v2239 = vadd.f32 %v2234, %v2238
        %v2240 = vlaneseq
        %v2241 = vshrl.u32 %v2240, 7
        %v2242 = vsub.s32 0, %v2241
        %v2243 = vrot.slane %v1366, %v2242
        %v2245 = vsel %vm186, %v2239, 0
        %2247 = vmatprep.subr.mxu0 0.0
        %2248 = vmatpush1.msra.mxu0 0.0
        %2249 = vmatprep.subr.mxu0 0.0
        %2250 = vmatpush1.msra.mxu0 0.0
        %2251 = vmatprep.subr.mxu0 0.0
        %2252 = vmatpush1.msra.mxu0 0.0
        %2253 = vmatprep.subr.mxu0 0.0
        %2254 = vmatpush1.msra.mxu0 0.0
        %2255 = vmatprep.subr.mxu0 0.0
        %2256 = vmatpush1.msra.mxu0 0.0
        %2257 = vmatprep.subr.mxu0 0.0
        %2258 = vmatpush1.msra.mxu0 0.0
        %2259 = vmatprep.subr.mxu0 0.0
        %2260 = vmatpush1.msra.mxu0 0.0
        %2261 = vmatprep.subr.mxu0 0.0
        %2262 = vmatpush1.msra.mxu0 0.0
        %2263 = vmatprep.subr.mxu0 0.0
        %2264 = vmatpush1.msra.mxu0 0.0
        %2265 = vmatprep.subr.mxu0 0.0
        %2266 = vmatpush1.msra.mxu0 0.0
        %2267 = vmatprep.subr.mxu0 0.0
        %2268 = vmatpush1.msra.mxu0 0.0
        %2269 = vmatprep.subr.mxu0 0.0
        %2270 = vmatpush1.msra.mxu0 0.0
        %2271 = vmatprep.subr.mxu0 0.0
        %2272 = vmatpush1.msra.mxu0 %v1365
        %2273 = vmatprep.subr.mxu0 0.0
        %2274 = vmatpush1.msra.mxu0 %v1364
        %2275 = vmatprep.subr.mxu0 0.0
        %2276 = vmatpush1.msra.mxu0 %v1363
        %2277 = vmatprep.subr.mxu0 0.0
        %2278 = vmatpush1.msra.mxu0 %v1362
        %2279 = vmatprep.subr.mxu0 0.0
        %2280 = vmatpush2.msra.mxu0 0.0
        %2281 = vmatprep.subr.mxu0 0.0
        %2282 = vmatpush2.msra.mxu0 0.0
        %2283 = vmatprep.subr.mxu0 0.0
        %2284 = vmatpush2.msra.mxu0 0.0
        %2285 = vmatprep.subr.mxu0 0.0
        %2286 = vmatpush2.msra.mxu0 0.0
        %2287 = vmatprep.subr.mxu0 0.0
        %2288 = vmatpush2.msra.mxu0 0.0
        %2289 = vmatprep.subr.mxu0 0.0
        %2290 = vmatpush2.msra.mxu0 0.0
        %2291 = vmatprep.subr.mxu0 0.0
        %2292 = vmatpush2.msra.mxu0 0.0
        %2293 = vmatprep.subr.mxu0 0.0
        %2294 = vmatpush2.msra.mxu0 0.0
        %2295 = vmatprep.subr.mxu0 0.0
        %2296 = vmatpush2.msra.mxu0 0.0
        %2297 = vmatprep.subr.mxu0 0.0
        %2298 = vmatpush2.msra.mxu0 0.0
        %2299 = vmatprep.subr.mxu0 0.0
        %2300 = vmatpush2.msra.mxu0 0.0
        %2301 = vmatprep.subr.mxu0 0.0
        %2302 = vmatpush2.msra.mxu0 0.0
        %2303 = vmatprep.subr.mxu0 0.0
        %2304 = vmatpush2.msra.mxu0 0.0
        %2305 = vmatprep.subr.mxu0 0.0
        %2306 = vmatpush2.msra.mxu0 0.0
        %2307 = vmatprep.subr.mxu0 0.0
        %2308 = vmatpush2.msra.mxu0 0.0
        %2309 = vmatprep.subr.mxu0 0.0
        %2310 = vmatpush2.msra.mxu0 0.0
        %2311 = vmatprep.mubr.f32.mxu0 0.0
        %2312 = vmatmul.mubr.f32.gmra.mxu0 %v2245
        %v2313 = vpop.f32.mrf.mxu0
        %v2314 = vadd.f32 %v2243, %v2313
        %v2315 = vpop.f32.mrf.mxu0
        %2316 = vdwg.mxu0
        %v2317 = vmax.f32 %v2314, 0.0
        %v2318 = vlaneseq
        %v2319 = vshrl.u32 %v2318, 7
        %v2320 = vsub.s32 0, %v2319
        %v2321 = vrot.slane %v1383, %v2320
        %2322 = vmatprep.subr.mxu0 0.0
        %2323 = vmatpush1.msra.mxu0 %v1382
        %2324 = vmatprep.subr.mxu0 0.0
        %2325 = vmatpush1.msra.mxu0 %v1381
        %2326 = vmatprep.subr.mxu0 0.0
        %2327 = vmatpush1.msra.mxu0 %v1380
        %2328 = vmatprep.subr.mxu0 0.0
        %2329 = vmatpush1.msra.mxu0 %v1379
        %2330 = vmatprep.subr.mxu0 0.0
        %2331 = vmatpush1.msra.mxu0 %v1378
        %2332 = vmatprep.subr.mxu0 0.0
        %2333 = vmatpush1.msra.mxu0 %v1377
        %2334 = vmatprep.subr.mxu0 0.0
        %2335 = vmatpush1.msra.mxu0 %v1376
        %2336 = vmatprep.subr.mxu0 0.0
        %2337 = vmatpush1.msra.mxu0 %v1375
        %2338 = vmatprep.subr.mxu0 0.0
        %2339 = vmatpush1.msra.mxu0 %v1374
        %2340 = vmatprep.subr.mxu0 0.0
        %2341 = vmatpush1.msra.mxu0 %v1373
        %2342 = vmatprep.subr.mxu0 0.0
        %2343 = vmatpush1.msra.mxu0 %v1372
        %2344 = vmatprep.subr.mxu0 0.0
        %2345 = vmatpush1.msra.mxu0 %v1371
        %2346 = vmatprep.subr.mxu0 0.0
        %2347 = vmatpush1.msra.mxu0 %v1370
        %2348 = vmatprep.subr.mxu0 0.0
        %2349 = vmatpush1.msra.mxu0 %v1369
        %2350 = vmatprep.subr.mxu0 0.0
        %2351 = vmatpush1.msra.mxu0 %v1368
        %2352 = vmatprep.subr.mxu0 0.0
        %2353 = vmatpush1.msra.mxu0 %v1367
        %2354 = vmatprep.subr.mxu0 0.0
        %2355 = vmatpush2.msra.mxu0 0.0
        %2356 = vmatprep.subr.mxu0 0.0
        %2357 = vmatpush2.msra.mxu0 0.0
        %2358 = vmatprep.subr.mxu0 0.0
        %2359 = vmatpush2.msra.mxu0 0.0
        %2360 = vmatprep.subr.mxu0 0.0
        %2361 = vmatpush2.msra.mxu0 0.0
        %2362 = vmatprep.subr.mxu0 0.0
        %2363 = vmatpush2.msra.mxu0 0.0
        %2364 = vmatprep.subr.mxu0 0.0
        %2365 = vmatpush2.msra.mxu0 0.0
        %2366 = vmatprep.subr.mxu0 0.0
        %2367 = vmatpush2.msra.mxu0 0.0
        %2368 = vmatprep.subr.mxu0 0.0
        %2369 = vmatpush2.msra.mxu0 0.0
        %2370 = vmatprep.subr.mxu0 0.0
        %2371 = vmatpush2.msra.mxu0 0.0
        %2372 = vmatprep.subr.mxu0 0.0
        %2373 = vmatpush2.msra.mxu0 0.0
        %2374 = vmatprep.subr.mxu0 0.0
        %2375 = vmatpush2.msra.mxu0 0.0
        %2376 = vmatprep.subr.mxu0 0.0
        %2377 = vmatpush2.msra.mxu0 0.0
        %2378 = vmatprep.subr.mxu0 0.0
        %2379 = vmatpush2.msra.mxu0 0.0
        %2380 = vmatprep.subr.mxu0 0.0
        %2381 = vmatpush2.msra.mxu0 0.0
        %2382 = vmatprep.subr.mxu0 0.0
        %2383 = vmatpush2.msra.mxu0 0.0
        %2384 = vmatprep.subr.mxu0 0.0
        %2385 = vmatpush2.msra.mxu0 0.0
        %2386 = vmatprep.mubr.f32.mxu0 0.0
        %2387 = vmatmul.mubr.f32.gmra.mxu0 %v2317
        %v2388 = vpop.f32.mrf.mxu0
        %v2389 = vadd.f32 %v2321, %v2388
        %v2390 = vpop.f32.mrf.mxu0
        %2391 = vdwg.mxu0
        %v2392 = vadd.f32 %v2239, %v2389
        %v2393 = vsel %vm186, %v2392, 0.0
        %2394 = vadd.xlane.f32.xlu0 %v2393
        %v2395 = vpop.xlane.xlu0 %2394
        %v2396 = vmul.f32 %v2395, %v263
        %v2397 = vsub.f32 %v2392, %v2396
        %v2398 = vmul.f32 %v2397, %v2397
        %v2399 = vsel %vm186, %v2398, 0.0
        %2400 = vadd.xlane.f32.xlu0 %v2399
        %v2401 = vpop.xlane.xlu0 %2400
        %v2402 = vmul.f32 %v2401, %v263
        %v2403 = vadd.f32 %v2402, 1e-05
        %v2404 = vrsqrt.pop %v2403
        %v2405 = vmul.f32 %v2397, %v2404
        %v2406 = vlaneseq
        %v2407 = vshrl.u32 %v2406, 7
        %v2408 = vsub.s32 0, %v2407
        %v2409 = vrot.slane %v1386, %v2408
        %v2410 = vmul.f32 %v2405, %v2409
        %v2411 = vlaneseq
        %v2412 = vshrl.u32 %v2411, 7
        %v2413 = vsub.s32 0, %v2412
        %v2414 = vrot.slane %v1387, %v2413
        %v2415 = vadd.f32 %v2410, %v2414
        %v2416 = vld [vmem:[#allocation5 + $0x1e0] sm:$0xff]
        %v2417 = vld [vmem:[#allocation5 + $0x1e8] sm:$0xff]
        %v2418 = vld [vmem:[#allocation5 + $0x1f0] sm:$0xff]
        %v2419 = vld [vmem:[#allocation5 + $0x1f8] sm:$0xff]
        %v2420 = vld [vmem:[#allocation5 + $0x313] sm:$0x1]
        %v2421 = vld [vmem:[#allocation5 + $0x314] sm:$0x1]
        %v2422 = vld [vmem:[#allocation5 + $0x315] sm:$0x1]
        %v2423 = vld [vmem:[#allocation5 + $0x316] sm:$0x1]
        %v2424 = vld [vmem:[#allocation5 + $0x317] sm:$0x1]
        %v2425 = vld [vmem:[#allocation5 + $0x200] sm:$0xff]
        %v2426 = vld [vmem:[#allocation5 + $0x208] sm:$0xff]
        %v2427 = vld [vmem:[#allocation5 + $0x210] sm:$0xff]
        %v2428 = vld [vmem:[#allocation5 + $0x218] sm:$0xff]
        %v2429 = vld [vmem:[#allocation5 + $0x318] sm:$0x1]
        %v2430 = vld [vmem:[#allocation5 + $0x319] sm:$0x1]
        %v2431 = vld [vmem:[#allocation5 + $0x31a] sm:$0x1]
        %v2432 = vld [vmem:[#allocation5 + $0x220] sm:$0xff]
        %v2433 = vld [vmem:[#allocation5 + $0x228] sm:$0xff]
        %v2434 = vld [vmem:[#allocation5 + $0x230] sm:$0xff]
        %v2435 = vld [vmem:[#allocation5 + $0x238] sm:$0xff]
        %v2436 = vld [vmem:[#allocation5 + $0x240] sm:$0xff]
        %v2437 = vld [vmem:[#allocation5 + $0x248] sm:$0xff]
        %v2438 = vld [vmem:[#allocation5 + $0x250] sm:$0xff]
        %v2439 = vld [vmem:[#allocation5 + $0x258] sm:$0xff]
        %v2440 = vld [vmem:[#allocation5 + $0x260] sm:$0xff]
        %v2441 = vld [vmem:[#allocation5 + $0x268] sm:$0xff]
        %v2442 = vld [vmem:[#allocation5 + $0x270] sm:$0xff]
        %v2443 = vld [vmem:[#allocation5 + $0x278] sm:$0xff]
        %v2444 = vld [vmem:[#allocation5 + $0x280] sm:$0xff]
        %v2445 = vld [vmem:[#allocation5 + $0x288] sm:$0xff]
        %v2446 = vld [vmem:[#allocation5 + $0x290] sm:$0xff]
        %v2447 = vld [vmem:[#allocation5 + $0x298] sm:$0xff]
        %v2448 = vld [vmem:[#allocation5 + $0x31b] sm:$0x1]
        %v2449 = vld [vmem:[#allocation5 + $0x31c] sm:$0x1]
        %v2450 = vld [vmem:[#allocation5 + $0x31d] sm:$0x1]
        %v2451 = vld [vmem:[#allocation5 + $0x31e] sm:$0x1]
        %v2452 = vld [vmem:[#allocation5 + $0x31f] sm:$0x1]
        %v2453 = vld [vmem:[#allocation5 + $0x2a0] sm:$0xff]
        %v2454 = vld [vmem:[#allocation5 + $0x2a8] sm:$0xff]
        %v2455 = vld [vmem:[#allocation5 + $0x2b0] sm:$0xff]
        %v2456 = vld [vmem:[#allocation5 + $0x2b8] sm:$0xff]
        %v2457 = vld [vmem:[#allocation5 + $0x2c0] sm:$0xff]
        %v2458 = vld [vmem:[#allocation5 + $0x2c8] sm:$0xff]
        %v2459 = vld [vmem:[#allocation5 + $0x2d0] sm:$0xff]
        %v2460 = vld [vmem:[#allocation5 + $0x2d8] sm:$0xff]
        %v2461 = vld [vmem:[#allocation5 + $0x2e0] sm:$0xff]
        %v2462 = vld [vmem:[#allocation5 + $0x2e8] sm:$0xff]
        %v2463 = vld [vmem:[#allocation5 + $0x2f0] sm:$0xff]
        %v2464 = vld [vmem:[#allocation5 + $0x2f8] sm:$0xff]
        %v2465 = vld [vmem:[#allocation5 + $0x320] sm:$0x1]
        %v2466 = vlaneseq
        %v2467 = vshrl.u32 %v2466, 7
        %v2468 = vsub.s32 0, %v2467
        %v2469 = vrot.slane %v2420, %v2468
        %v2471 = vsel %vm186, %v2415, 0
        %2473 = vmatprep.subr.mxu0 0.0
        %2474 = vmatpush1.msra.mxu0 0.0
        %2475 = vmatprep.subr.mxu0 0.0
        %2476 = vmatpush1.msra.mxu0 0.0
        %2477 = vmatprep.subr.mxu0 0.0
        %2478 = vmatpush1.msra.mxu0 0.0
        %2479 = vmatprep.subr.mxu0 0.0
        %2480 = vmatpush1.msra.mxu0 0.0
        %2481 = vmatprep.subr.mxu0 0.0
        %2482 = vmatpush1.msra.mxu0 0.0
        %2483 = vmatprep.subr.mxu0 0.0
        %2484 = vmatpush1.msra.mxu0 0.0
        %2485 = vmatprep.subr.mxu0 0.0
        %2486 = vmatpush1.msra.mxu0 0.0
        %2487 = vmatprep.subr.mxu0 0.0
        %2488 = vmatpush1.msra.mxu0 0.0
        %2489 = vmatprep.subr.mxu0 0.0
        %2490 = vmatpush1.msra.mxu0 0.0
        %2491 = vmatprep.subr.mxu0 0.0
        %2492 = vmatpush1.msra.mxu0 0.0
        %2493 = vmatprep.subr.mxu0 0.0
        %2494 = vmatpush1.msra.mxu0 0.0
        %2495 = vmatprep.subr.mxu0 0.0
        %2496 = vmatpush1.msra.mxu0 0.0
        %2497 = vmatprep.subr.mxu0 0.0
        %2498 = vmatpush1.msra.mxu0 %v2419
        %2499 = vmatprep.subr.mxu0 0.0
        %2500 = vmatpush1.msra.mxu0 %v2418
        %2501 = vmatprep.subr.mxu0 0.0
        %2502 = vmatpush1.msra.mxu0 %v2417
        %2503 = vmatprep.subr.mxu0 0.0
        %2504 = vmatpush1.msra.mxu0 %v2416
        %2505 = vmatprep.subr.mxu0 0.0
        %2506 = vmatpush2.msra.mxu0 0.0
        %2507 = vmatprep.subr.mxu0 0.0
        %2508 = vmatpush2.msra.mxu0 0.0
        %2509 = vmatprep.subr.mxu0 0.0
        %2510 = vmatpush2.msra.mxu0 0.0
        %2511 = vmatprep.subr.mxu0 0.0
        %2512 = vmatpush2.msra.mxu0 0.0
        %2513 = vmatprep.subr.mxu0 0.0
        %2514 = vmatpush2.msra.mxu0 0.0
        %2515 = vmatprep.subr.mxu0 0.0
        %2516 = vmatpush2.msra.mxu0 0.0
        %2517 = vmatprep.subr.mxu0 0.0
        %2518 = vmatpush2.msra.mxu0 0.0
        %2519 = vmatprep.subr.mxu0 0.0
        %2520 = vmatpush2.msra.mxu0 0.0
        %2521 = vmatprep.subr.mxu0 0.0
        %2522 = vmatpush2.msra.mxu0 0.0
        %2523 = vmatprep.subr.mxu0 0.0
        %2524 = vmatpush2.msra.mxu0 0.0
        %2525 = vmatprep.subr.mxu0 0.0
        %2526 = vmatpush2.msra.mxu0 0.0
        %2527 = vmatprep.subr.mxu0 0.0
        %2528 = vmatpush2.msra.mxu0 0.0
        %2529 = vmatprep.subr.mxu0 0.0
        %2530 = vmatpush2.msra.mxu0 0.0
        %2531 = vmatprep.subr.mxu0 0.0
        %2532 = vmatpush2.msra.mxu0 0.0
        %2533 = vmatprep.subr.mxu0 0.0
        %2534 = vmatpush2.msra.mxu0 0.0
        %2535 = vmatprep.subr.mxu0 0.0
        %2536 = vmatpush2.msra.mxu0 0.0
        %2537 = vmatprep.mubr.f32.mxu0 0.0
        %2538 = vmatmul.mubr.f32.gmra.mxu0 %v2471
        %v2539 = vpop.f32.mrf.mxu0
        %v2540 = vadd.f32 %v2469, %v2539
        %v2541 = vpop.f32.mrf.mxu0
        %2542 = vdwg.mxu0
        %vm2543 = vcmask 523264
        %v2544 = vsel %vm2543, %v2540, 0.0
        %2545 = vadd.xlane.f32.xlu0 %v2544
        %v2546 = vpop.xlane.xlu0 %2545
        %v2547 = vrcp.pop 64.0
        %v2548 = vmul.f32 %v2546, %v2547
        %v2549 = vsub.f32 %v2540, %v2548
        %v2550 = vmul.f32 %v2549, %v2549
        %v2551 = vsel %vm2543, %v2550, 0.0
        %2552 = vadd.xlane.f32.xlu0 %v2551
        %v2553 = vpop.xlane.xlu0 %2552
        %v2554 = vmul.f32 %v2553, %v2547
        %v2555 = vadd.f32 %v2554, 1e-05
        %v2556 = vrsqrt.pop %v2555
        %v2557 = vmul.f32 %v2549, %v2556
        %v2558 = vlaneseq
        %v2559 = vshrl.u32 %v2558, 7
        %v2560 = vsub.s32 0, %v2559
        %v2561 = vrot.slane %v2421, %v2560
        %v2562 = vmul.f32 %v2557, %v2561
        %v2563 = vlaneseq
        %v2564 = vshrl.u32 %v2563, 7
        %v2565 = vsub.s32 0, %v2564
        %v2566 = vrot.slane %v2422, %v2565
        %v2567 = vadd.f32 %v2562, %v2566
        %v2568 = vmax.f32 %v2567, 0.0
        %2570 = vrot.lane.b32.xlu0 %v2540, 64
        %v2571 = vpop.permute.xlu0 %2570
        %v2573 = vsel %vm2543, %v2571, 0.0
        %2574 = vadd.xlane.f32.xlu0 %v2573
        %v2575 = vpop.xlane.xlu0 %2574
        %v2576 = vmul.f32 %v2575, %v2547
        %v2577 = vsub.f32 %v2540, %v2576
        %v2578 = vmul.f32 %v2577, %v2577
        %2580 = vrot.lane.b32.xlu0 %v2578, 64
        %v2581 = vpop.permute.xlu0 %2580
        %v2583 = vsel %vm2543, %v2581, 0.0
        %2584 = vadd.xlane.f32.xlu0 %v2583
        %v2585 = vpop.xlane.xlu0 %2584
        %v2586 = vmul.f32 %v2585, %v2547
        %v2587 = vadd.f32 %v2586, 1e-05
        %v2588 = vrsqrt.pop %v2587
        %v2589 = vmul.f32 %v2577, %v2588
        %v2590 = vlaneseq
        %v2591 = vshrl.u32 %v2590, 7
        %v2592 = vsub.s32 0, %v2591
        %v2593 = vrot.slane %v2423, %v2592
        %2595 = vrot.lane.b32.xlu0 %v2593, 64
        %v2596 = vpop.permute.xlu0 %2595
        %v2598 = vmul.f32 %v2589, %v2596
        %v2599 = vlaneseq
        %v2600 = vshrl.u32 %v2599, 7
        %v2601 = vsub.s32 0, %v2600
        %v2602 = vrot.slane %v2424, %v2601
        %2604 = vrot.lane.b32.xlu0 %v2602, 64
        %v2605 = vpop.permute.xlu0 %2604
        %v2607 = vadd.f32 %v2598, %v2605
        %v2608 = vmax.f32 %v2607, 0.0
        %v2609 = vlaneseq
        %v2610 = vshrl.u32 %v2609, 7
        %v2611 = vsub.s32 0, %v2610
        %v2612 = vrot.slane %v2429, %v2611
        %2613 = vmatprep.subr.mxu0 0.0
        %2614 = vmatpush1.msra.mxu0 0.0
        %2615 = vmatprep.subr.mxu0 0.0
        %2616 = vmatpush1.msra.mxu0 0.0
        %2617 = vmatprep.subr.mxu0 0.0
        %2618 = vmatpush1.msra.mxu0 0.0
        %2619 = vmatprep.subr.mxu0 0.0
        %2620 = vmatpush1.msra.mxu0 0.0
        %2621 = vmatprep.subr.mxu0 0.0
        %2622 = vmatpush1.msra.mxu0 0.0
        %2623 = vmatprep.subr.mxu0 0.0
        %2624 = vmatpush1.msra.mxu0 0.0
        %2625 = vmatprep.subr.mxu0 0.0
        %2626 = vmatpush1.msra.mxu0 0.0
        %2627 = vmatprep.subr.mxu0 0.0
        %2628 = vmatpush1.msra.mxu0 0.0
        %2629 = vmatprep.subr.mxu0 0.0
        %2630 = vmatpush1.msra.mxu0 0.0
        %2631 = vmatprep.subr.mxu0 0.0
        %2632 = vmatpush1.msra.mxu0 0.0
        %2633 = vmatprep.subr.mxu0 0.0
        %2634 = vmatpush1.msra.mxu0 0.0
        %2635 = vmatprep.subr.mxu0 0.0
        %2636 = vmatpush1.msra.mxu0 0.0
        %2637 = vmatprep.subr.mxu0 0.0
        %2638 = vmatpush1.msra.mxu0 %v2428
        %2639 = vmatprep.subr.mxu0 0.0
        %2640 = vmatpush1.msra.mxu0 %v2427
        %2641 = vmatprep.subr.mxu0 0.0
        %2642 = vmatpush1.msra.mxu0 %v2426
        %2643 = vmatprep.subr.mxu0 0.0
        %2644 = vmatpush1.msra.mxu0 %v2425
        %2645 = vmatprep.subr.mxu0 0.0
        %2646 = vmatpush2.msra.mxu0 0.0
        %2647 = vmatprep.subr.mxu0 0.0
        %2648 = vmatpush2.msra.mxu0 0.0
        %2649 = vmatprep.subr.mxu0 0.0
        %2650 = vmatpush2.msra.mxu0 0.0
        %2651 = vmatprep.subr.mxu0 0.0
        %2652 = vmatpush2.msra.mxu0 0.0
        %2653 = vmatprep.subr.mxu0 0.0
        %2654 = vmatpush2.msra.mxu0 0.0
        %2655 = vmatprep.subr.mxu0 0.0
        %2656 = vmatpush2.msra.mxu0 0.0
        %2657 = vmatprep.subr.mxu0 0.0
        %2658 = vmatpush2.msra.mxu0 0.0
        %2659 = vmatprep.subr.mxu0 0.0
        %2660 = vmatpush2.msra.mxu0 0.0
        %2661 = vmatprep.subr.mxu0 0.0
        %2662 = vmatpush2.msra.mxu0 0.0
        %2663 = vmatprep.subr.mxu0 0.0
        %2664 = vmatpush2.msra.mxu0 0.0
        %2665 = vmatprep.subr.mxu0 0.0
        %2666 = vmatpush2.msra.mxu0 0.0
        %2667 = vmatprep.subr.mxu0 0.0
        %2668 = vmatpush2.msra.mxu0 0.0
        %2669 = vmatprep.subr.mxu0 0.0
        %2670 = vmatpush2.msra.mxu0 0.0
        %2671 = vmatprep.subr.mxu0 0.0
        %2672 = vmatpush2.msra.mxu0 0.0
        %2673 = vmatprep.subr.mxu0 0.0
        %2674 = vmatpush2.msra.mxu0 0.0
        %2675 = vmatprep.subr.mxu0 0.0
        %2676 = vmatpush2.msra.mxu0 0.0
        %2677 = vmatprep.mubr.f32.mxu0 0.0
        %2678 = vmatmul.mubr.f32.gmra.mxu0 %v2471
        %v2679 = vpop.f32.mrf.mxu0
        %v2680 = vadd.f32 %v2612, %v2679
        %v2681 = vpop.f32.mrf.mxu0
        %2682 = vdwg.mxu0
        %v2683 = vsel %vm186, %v2680, 0.0
        %2684 = vadd.xlane.f32.xlu0 %v2683
        %v2685 = vpop.xlane.xlu0 %2684
        %v2686 = vmul.f32 %v2685, %v263
        %v2687 = vsub.f32 %v2680, %v2686
        %v2688 = vmul.f32 %v2687, %v2687
        %v2689 = vsel %vm186, %v2688, 0.0
        %2690 = vadd.xlane.f32.xlu0 %v2689
        %v2691 = vpop.xlane.xlu0 %2690
        %v2692 = vmul.f32 %v2691, %v263
        %v2693 = vadd.f32 %v2692, 1e-05
        %v2694 = vrsqrt.pop %v2693
        %v2695 = vmul.f32 %v2687, %v2694
        %v2696 = vlaneseq
        %v2697 = vshrl.u32 %v2696, 7
        %v2698 = vsub.s32 0, %v2697
        %v2699 = vrot.slane %v2430, %v2698
        %v2700 = vmul.f32 %v2695, %v2699
        %v2701 = vlaneseq
        %v2702 = vshrl.u32 %v2701, 7
        %v2703 = vsub.s32 0, %v2702
        %v2704 = vrot.slane %v2431, %v2703
        %v2705 = vadd.f32 %v2700, %v2704
        %v2706 = vmax.f32 %v2705, 0.0
        %v2707 = vsel %vm2543, %v2568, %v2608
        %v2708 = vlaneseq
        %v2709 = vshrl.u32 %v2708, 7
        %v2710 = vsub.s32 0, %v2709
        %v2711 = vrot.slane %v2448, %v2710
        %2712 = vmatprep.subr.mxu0 0.0
        %2713 = vmatpush1.msra.mxu0 %v2447
        %2714 = vmatprep.subr.mxu0 0.0
        %2715 = vmatpush1.msra.mxu0 %v2446
        %2716 = vmatprep.subr.mxu0 0.0
        %2717 = vmatpush1.msra.mxu0 %v2445
        %2718 = vmatprep.subr.mxu0 0.0
        %2719 = vmatpush1.msra.mxu0 %v2444
        %2720 = vmatprep.subr.mxu0 0.0
        %2721 = vmatpush1.msra.mxu0 %v2443
        %2722 = vmatprep.subr.mxu0 0.0
        %2723 = vmatpush1.msra.mxu0 %v2442
        %2724 = vmatprep.subr.mxu0 0.0
        %2725 = vmatpush1.msra.mxu0 %v2441
        %2726 = vmatprep.subr.mxu0 0.0
        %2727 = vmatpush1.msra.mxu0 %v2440
        %2728 = vmatprep.subr.mxu0 0.0
        %2729 = vmatpush1.msra.mxu0 %v2439
        %2730 = vmatprep.subr.mxu0 0.0
        %2731 = vmatpush1.msra.mxu0 %v2438
        %2732 = vmatprep.subr.mxu0 0.0
        %2733 = vmatpush1.msra.mxu0 %v2437
        %2734 = vmatprep.subr.mxu0 0.0
        %2735 = vmatpush1.msra.mxu0 %v2436
        %2736 = vmatprep.subr.mxu0 0.0
        %2737 = vmatpush1.msra.mxu0 %v2435
        %2738 = vmatprep.subr.mxu0 0.0
        %2739 = vmatpush1.msra.mxu0 %v2434
        %2740 = vmatprep.subr.mxu0 0.0
        %2741 = vmatpush1.msra.mxu0 %v2433
        %2742 = vmatprep.subr.mxu0 0.0
        %2743 = vmatpush1.msra.mxu0 %v2432
        %2744 = vmatprep.subr.mxu0 0.0
        %2745 = vmatpush2.msra.mxu0 0.0
        %2746 = vmatprep.subr.mxu0 0.0
        %2747 = vmatpush2.msra.mxu0 0.0
        %2748 = vmatprep.subr.mxu0 0.0
        %2749 = vmatpush2.msra.mxu0 0.0
        %2750 = vmatprep.subr.mxu0 0.0
        %2751 = vmatpush2.msra.mxu0 0.0
        %2752 = vmatprep.subr.mxu0 0.0
        %2753 = vmatpush2.msra.mxu0 0.0
        %2754 = vmatprep.subr.mxu0 0.0
        %2755 = vmatpush2.msra.mxu0 0.0
        %2756 = vmatprep.subr.mxu0 0.0
        %2757 = vmatpush2.msra.mxu0 0.0
        %2758 = vmatprep.subr.mxu0 0.0
        %2759 = vmatpush2.msra.mxu0 0.0
        %2760 = vmatprep.subr.mxu0 0.0
        %2761 = vmatpush2.msra.mxu0 0.0
        %2762 = vmatprep.subr.mxu0 0.0
        %2763 = vmatpush2.msra.mxu0 0.0
        %2764 = vmatprep.subr.mxu0 0.0
        %2765 = vmatpush2.msra.mxu0 0.0
        %2766 = vmatprep.subr.mxu0 0.0
        %2767 = vmatpush2.msra.mxu0 0.0
        %2768 = vmatprep.subr.mxu0 0.0
        %2769 = vmatpush2.msra.mxu0 0.0
        %2770 = vmatprep.subr.mxu0 0.0
        %2771 = vmatpush2.msra.mxu0 0.0
        %2772 = vmatprep.subr.mxu0 0.0
        %2773 = vmatpush2.msra.mxu0 0.0
        %2774 = vmatprep.subr.mxu0 0.0
        %2775 = vmatpush2.msra.mxu0 0.0
        %2776 = vmatprep.mubr.f32.mxu0 0.0
        %2777 = vmatmul.mubr.f32.gmra.mxu0 %v2707
        %v2778 = vpop.f32.mrf.mxu0
        %v2779 = vadd.f32 %v2711, %v2778
        %v2780 = vpop.f32.mrf.mxu0
        %2781 = vdwg.mxu0
        %v2782 = vsel %vm186, %v2779, 0.0
        %2783 = vadd.xlane.f32.xlu0 %v2782
        %v2784 = vpop.xlane.xlu0 %2783
        %v2785 = vmul.f32 %v2784, %v263
        %v2786 = vsub.f32 %v2779, %v2785
        %v2787 = vmul.f32 %v2786, %v2786
        %v2788 = vsel %vm186, %v2787, 0.0
        %2789 = vadd.xlane.f32.xlu0 %v2788
        %v2790 = vpop.xlane.xlu0 %2789
        %v2791 = vmul.f32 %v2790, %v263
        %v2792 = vadd.f32 %v2791, 1e-05
        %v2793 = vrsqrt.pop %v2792
        %v2794 = vmul.f32 %v2786, %v2793
        %v2795 = vlaneseq
        %v2796 = vshrl.u32 %v2795, 7
        %v2797 = vsub.s32 0, %v2796
        %v2798 = vrot.slane %v2449, %v2797
        %v2799 = vmul.f32 %v2794, %v2798
        %v2800 = vlaneseq
        %v2801 = vshrl.u32 %v2800, 7
        %v2802 = vsub.s32 0, %v2801
        %v2803 = vrot.slane %v2450, %v2802
        %v2804 = vadd.f32 %v2799, %v2803
        %v2805 = vmax.f32 %v2804, 0.0
        %2807 = vrot.lane.b32.xlu0 %v2779, 96
        %v2808 = vpop.permute.xlu0 %2807
        %v2810 = vsel %vm186, %v2808, 0.0
        %2811 = vadd.xlane.f32.xlu0 %v2810
        %v2812 = vpop.xlane.xlu0 %2811
        %v2813 = vmul.f32 %v2812, %v263
        %v2814 = vsub.f32 %v2779, %v2813
        %v2815 = vmul.f32 %v2814, %v2814
        %2817 = vrot.lane.b32.xlu0 %v2815, 96
        %v2818 = vpop.permute.xlu0 %2817
        %v2820 = vsel %vm186, %v2818, 0.0
        %2821 = vadd.xlane.f32.xlu0 %v2820
        %v2822 = vpop.xlane.xlu0 %2821
        %v2823 = vmul.f32 %v2822, %v263
        %v2824 = vadd.f32 %v2823, 1e-05
        %v2825 = vrsqrt.pop %v2824
        %v2826 = vmul.f32 %v2814, %v2825
        %v2827 = vlaneseq
        %v2828 = vshrl.u32 %v2827, 7
        %v2829 = vsub.s32 0, %v2828
        %v2830 = vrot.slane %v2451, %v2829
        %2832 = vrot.lane.b32.xlu0 %v2830, 32
        %v2833 = vpop.permute.xlu0 %2832
        %v2835 = vmul.f32 %v2826, %v2833
        %v2836 = vlaneseq
        %v2837 = vshrl.u32 %v2836, 7
        %v2838 = vsub.s32 0, %v2837
        %v2839 = vrot.slane %v2452, %v2838
        %2841 = vrot.lane.b32.xlu0 %v2839, 32
        %v2842 = vpop.permute.xlu0 %2841
        %v2844 = vadd.f32 %v2835, %v2842
        %v2845 = vmax.f32 %v2844, 0.0
        %2847 = vrot.lane.b32.xlu0 %v2706, 64
        %v2848 = vpop.permute.xlu0 %2847
        %v2850 = vsel %vm186, %v2805, %v2845
        %v2851 = vsel %vm2543, %v2850, %v2848
        %v2852 = vlaneseq
        %v2853 = vshrl.u32 %v2852, 7
        %v2854 = vsub.s32 0, %v2853
        %v2855 = vrot.slane %v2465, %v2854
        %vm2856 = vcmask 785408
        %v2858 = vsel %vm2856, %v2851, 0
        %2860 = vmatprep.subr.mxu0 0.0
        %2861 = vmatpush1.msra.mxu0 0.0
        %2862 = vmatprep.subr.mxu0 0.0
        %2863 = vmatpush1.msra.mxu0 0.0
        %2864 = vmatprep.subr.mxu0 0.0
        %2865 = vmatpush1.msra.mxu0 0.0
        %2866 = vmatprep.subr.mxu0 0.0
        %2867 = vmatpush1.msra.mxu0 0.0
        %2868 = vmatprep.subr.mxu0 0.0
        %2869 = vmatpush1.msra.mxu0 %v2464
        %2870 = vmatprep.subr.mxu0 0.0
        %2871 = vmatpush1.msra.mxu0 %v2463
        %2872 = vmatprep.subr.mxu0 0.0
        %2873 = vmatpush1.msra.mxu0 %v2462
        %2874 = vmatprep.subr.mxu0 0.0
        %2875 = vmatpush1.msra.mxu0 %v2461
        %2876 = vmatprep.subr.mxu0 0.0
        %2877 = vmatpush1.msra.mxu0 %v2460
        %2878 = vmatprep.subr.mxu0 0.0
        %2879 = vmatpush1.msra.mxu0 %v2459
        %2880 = vmatprep.subr.mxu0 0.0
        %2881 = vmatpush1.msra.mxu0 %v2458
        %2882 = vmatprep.subr.mxu0 0.0
        %2883 = vmatpush1.msra.mxu0 %v2457
        %2884 = vmatprep.subr.mxu0 0.0
        %2885 = vmatpush1.msra.mxu0 %v2456
        %2886 = vmatprep.subr.mxu0 0.0
        %2887 = vmatpush1.msra.mxu0 %v2455
        %2888 = vmatprep.subr.mxu0 0.0
        %2889 = vmatpush1.msra.mxu0 %v2454
        %2890 = vmatprep.subr.mxu0 0.0
        %2891 = vmatpush1.msra.mxu0 %v2453
        %2892 = vmatprep.subr.mxu0 0.0
        %2893 = vmatpush2.msra.mxu0 0.0
        %2894 = vmatprep.subr.mxu0 0.0
        %2895 = vmatpush2.msra.mxu0 0.0
        %2896 = vmatprep.subr.mxu0 0.0
        %2897 = vmatpush2.msra.mxu0 0.0
        %2898 = vmatprep.subr.mxu0 0.0
        %2899 = vmatpush2.msra.mxu0 0.0
        %2900 = vmatprep.subr.mxu0 0.0
        %2901 = vmatpush2.msra.mxu0 0.0
        %2902 = vmatprep.subr.mxu0 0.0
        %2903 = vmatpush2.msra.mxu0 0.0
        %2904 = vmatprep.subr.mxu0 0.0
        %2905 = vmatpush2.msra.mxu0 0.0
        %2906 = vmatprep.subr.mxu0 0.0
        %2907 = vmatpush2.msra.mxu0 0.0
        %2908 = vmatprep.subr.mxu0 0.0
        %2909 = vmatpush2.msra.mxu0 0.0
        %2910 = vmatprep.subr.mxu0 0.0
        %2911 = vmatpush2.msra.mxu0 0.0
        %2912 = vmatprep.subr.mxu0 0.0
        %2913 = vmatpush2.msra.mxu0 0.0
        %2914 = vmatprep.subr.mxu0 0.0
        %2915 = vmatpush2.msra.mxu0 0.0
        %2916 = vmatprep.subr.mxu0 0.0
        %2917 = vmatpush2.msra.mxu0 0.0
        %2918 = vmatprep.subr.mxu0 0.0
        %2919 = vmatpush2.msra.mxu0 0.0
        %2920 = vmatprep.subr.mxu0 0.0
        %2921 = vmatpush2.msra.mxu0 0.0
        %2922 = vmatprep.subr.mxu0 0.0
        %2923 = vmatpush2.msra.mxu0 0.0
        %2924 = vmatprep.mubr.f32.mxu0 0.0
        %2925 = vmatmul.mubr.f32.gmra.mxu0 %v2858
        %v2926 = vpop.f32.mrf.mxu0
        %v2927 = vadd.f32 %v2855, %v2926
        %v2928 = vpop.f32.mrf.mxu0
        %2929 = vdwg.mxu0
        %2930 = vst [vmem:[%s173] sm:$0xff] %v2927
        %s2931 = sand.u32 %s75, 1
        %s2932 = scalar_lea.sflag [#allocation4], %s2931
        %s2933 = sand.u32 %s75, 1
        %s2934 = smul.addr %s2933, 8
        %s2935 = scalar_lea.vmem [#allocation7], %s2934
        // Predicated region
        $region37: #{tpu_custom_call.1} parent=27 // pred_check
          %p2936 = pneg %p85
        $region38: #{tpu_custom_call.1} parent=27 // pred_check_branch
          %2938 = sbr.rel (%p2936) target = $region40
        $region39: #{tpu_custom_call.1} parent=27 // pred_region
          %s2940 = ssub.s32 128, 128
          %2941 = vsyncadd %s2932, %s2940
          %s2942 = smul.addr %s20, 128
          %s2943 = scalar_lea.hbm %s2, %s2942
          %s2945 = sshll.u32 %s2935, 4
          %s2946 = int_to_ptr.vmem [resolvable:$true] %s2945
          %2948 = dma.vmem_to_hbm [thread:$0]  %s2946, 128, %s2943, %s2932
        $region40: #{tpu_custom_call.1} parent=27 // pred_fallthru
          _
      $region28: #{tpu_custom_call.1} parent=5 // pred_fallthru
        _
      %p2949 = scmp.le.s32.totalorder 2, %s15
      // Predicated region
      $region41: #{tpu_custom_call.1} parent=5 // pred_check
        %p2950 = pneg %p2949
      $region42: #{tpu_custom_call.1} parent=5 // pred_check_branch
        %2952 = sbr.rel (%p2950) target = $region44
      $region43: #{tpu_custom_call.1} parent=5 // pred_region
        %s2953 = ssub.s32 %s15, 2
        // Predicated region
        $region45: #{tpu_custom_call.1} parent=43 // pred_check
          %p2954 = pneg %p91
        $region46: #{tpu_custom_call.1} parent=43 // pred_check_branch
          %2956 = sbr.rel (%p2954) target = $region48
        $region47: #{tpu_custom_call.1} parent=43 // pred_region
          %s2957 = sand.u32 %s76, 1
          %s2958 = scalar_lea.sflag [#allocation4], %s2957
          %s2959 = sand.u32 %s76, 1
          %s2960 = smul.addr %s2959, 8
          %s2961 = scalar_lea.vmem [#allocation7], %s2960
          %2962 = dma.done %s2958, 128
        $region48: #{tpu_custom_call.1} parent=43 // pred_fallthru
          _
      $region44: #{tpu_custom_call.1} parent=5 // pred_fallthru
        _
    $region6: #{tpu_custom_call.1} parent=1 // loop_footer
      %s19 = sadd.s32 1, %s15
    $region7: #{tpu_custom_call.1} parent=1 // loop_footer_branch
      %14 = sbr.rel target = $region3
    $region8: #{tpu_custom_call.1} parent=1 // loop_exit
      _
    %2963 = vsyncpa [#allocation3], 1
    %s2964 = scalar_lea.sflag [#allocation3], 1
    %2965 = vsyncpa %s2964, 1
    %2966 = vsyncpa [#allocation6], 1
    %2967 = vsyncpa [#allocation4], 1
    %s2968 = scalar_lea.sflag [#allocation4], 1
    %2969 = vsyncpa %s2968, 1

</llo_original>
